<compile_context>
chip_gen: v7x
topology: tpu7x:2x2x1
jax: 0.10.0
libtpu: 0.0.40
codegen_flags: <defaults>
</compile_context>

<pallas_src>
import math
import functools

import jax
import jax.numpy as jnp
import numpy as np
from jax.experimental import pallas as pl
from jax.experimental.pallas import tpu as pltpu


# ----------------------------- in-kernel helpers -----------------------------

def _layernorm(x, g, b, eps=1e-5):
    # PyTorch nn.LayerNorm: biased variance, eps inside sqrt. All f32.
    mu = jnp.mean(x, axis=-1, keepdims=True)
    var = jnp.mean((x - mu) ** 2, axis=-1, keepdims=True)
    return (x - mu) * jax.lax.rsqrt(var + eps) * g + b


def _mha(q_in, kv_in, mask, wqkv, bqkv, wo, bo, n_heads):
    """Batched-head multi-head attention for a single batch element.

    q_in : (Sq, D) f32     kv_in: (Sk, D) f32     mask: (Sq, Sk) f32 (keep != 0)
    wqkv : (3, H, D, dk) bf16   bqkv: (3, H, 1, dk) f32
    wo   : (H, dk, D)    bf16   bo  : (1, D)       f32
    """
    H = n_heads
    Sq, D = q_in.shape
    Sk = kv_in.shape[0]
    dk = D // H
    scale = 1.0 / math.sqrt(dk)

    # bf16 MXU operands; heads on a leading batch axis -> batched matmuls,
    # no lane slicing / concatenation. Reuse the broadcast when q_in is kv_in
    # (self-attention).
    qb = jnp.broadcast_to(q_in.astype(jnp.bfloat16)[None], (H, Sq, D))
    kb = qb if kv_in is q_in else jnp.broadcast_to(
        kv_in.astype(jnp.bfloat16)[None], (H, Sk, D))

    # Q is pre-scaled by 1/sqrt(dk) in f32 (fewer elements than the scores).
    q = (jnp.einsum('hsd,hdf->hsf', qb, wqkv[0],
                    preferred_element_type=jnp.float32) + bqkv[0]) * scale
    k = jnp.einsum('hsd,hdf->hsf', kb, wqkv[1],
                   preferred_element_type=jnp.float32) + bqkv[1]    # (H,Sk,dk)
    v = jnp.einsum('hsd,hdf->hsf', kb, wqkv[2],
                   preferred_element_type=jnp.float32) + bqkv[2]    # (H,Sk,dk)

    scores = jnp.einsum('hqf,hkf->hqk', q.astype(jnp.bfloat16),
                        k.astype(jnp.bfloat16),
                        preferred_element_type=jnp.float32)          # (H,Sq,Sk)

    # masked_fill(mask == 0, -1e9) as an additive bias, built once per call.
    bias = jnp.where(mask != 0.0, 0.0, -1e9).astype(jnp.float32)    # (Sq,Sk)
    scores = scores + bias[None]

    # softmax in f32; divide goes to the EUP slot.
    m = jnp.max(scores, axis=-1, keepdims=True)
    e = jnp.exp(scores - m)
    p = e * pl.reciprocal(jnp.sum(e, axis=-1, keepdims=True), approx=True)

    ctx = jnp.einsum('hqk,hkf->hqf', p.astype(jnp.bfloat16),
                     v.astype(jnp.bfloat16),
                     preferred_element_type=jnp.float32)             # (H,Sq,dk)

    # output projection: concat-over-heads @ Wo  ==  sum_h (ctx_h @ Wo_h)
    outh = jnp.einsum('hqf,hfd->hqd', ctx.astype(jnp.bfloat16), wo,
                      preferred_element_type=jnp.float32)            # (H,Sq,D)
    return jnp.sum(outh, axis=0) + bo                                # (Sq,D)


# --------------------------------- kernel ------------------------------------

def decoder_layer_kernel(q_ref, enc_ref, tmask_ref, smask_ref,
                         wqkv_s_ref, bqkv_s_ref, wo_s_ref, bo_s_ref,
                         wqkv_c_ref, bqkv_c_ref, wo_c_ref, bo_c_ref,
                         w1_ref, b1_ref, w2_ref, b2_ref,
                         ln_g_ref, ln_b_ref,
                         out_ref, *, n_heads):
    x = q_ref[...]            # (S, D)  decoder query for this batch element
    enc = enc_ref[...]        # (Se, D) encoder states (cross-attn keys/values)

    # --- self attention sub-layer ---
    norm_query = _layernorm(x, ln_g_ref[0], ln_b_ref[0])
    sa = _mha(norm_query, norm_query, tmask_ref[...],
              wqkv_s_ref[...], bqkv_s_ref[...], wo_s_ref[...], bo_s_ref[...],
              n_heads)
    att1 = x + sa                                   # drop1 = identity (eval)

    # --- cross attention sub-layer ---
    norm_att1 = _layernorm(att1, ln_g_ref[1], ln_b_ref[1])
    ca = _mha(norm_att1, enc, smask_ref[...],
              wqkv_c_ref[...], bqkv_c_ref[...], wo_c_ref[...], bo_c_ref[...],
              n_heads)
    att2 = att1 + ca                                # drop2 = identity (eval)

    # --- position-wise FFN sub-layer ---
    norm_att2 = _layernorm(att2, ln_g_ref[2], ln_b_ref[2])
    h = jnp.maximum(
        jnp.dot(norm_att2.astype(jnp.bfloat16), w1_ref[...],
                preferred_element_type=jnp.float32) + b1_ref[...], 0.0)
    ffn = jnp.dot(h.astype(jnp.bfloat16), w2_ref[...],
                  preferred_element_type=jnp.float32) + b2_ref[...]
    out_ref[...] = att2 + ffn                       # drop3 = identity (eval)


# -------------------------------- wrapper ------------------------------------

def _pack_mha_params(W, b, n_heads):
    """(4,D,D)/(4,D) q,k,v,o params -> head-major bf16 weights + f32 biases."""
    D = W.shape[-1]
    dk = D // n_heads
    wqkv = jnp.transpose(W[:3].reshape(3, D, n_heads, dk),
                         (0, 2, 1, 3)).astype(jnp.bfloat16)   # (3, H, D, dk)
    bqkv = b[:3].reshape(3, n_heads, 1, dk).astype(jnp.float32)
    wo = W[3].reshape(n_heads, dk, D).astype(jnp.bfloat16)    # (H, dk, D)
    bo = b[3].reshape(1, D).astype(jnp.float32)
    return wqkv, bqkv, wo, bo


def decoder_layer(query, enc_states, params, target_mask, source_mask, *, n_heads):
    B, S, D = query.shape
    Se = enc_states.shape[1]
    F = params["w_ffn1"].shape[1]

    wqkv_s, bqkv_s, wo_s, bo_s = _pack_mha_params(
        params["w_self"], params["b_self"], n_heads)
    wqkv_c, bqkv_c, wo_c, bo_c = _pack_mha_params(
        params["w_cross"], params["b_cross"], n_heads)
    w1 = params["w_ffn1"].astype(jnp.bfloat16)
    b1 = params["b_ffn1"].reshape(1, F).astype(jnp.float32)
    w2 = params["w_ffn2"].astype(jnp.bfloat16)
    b2 = params["b_ffn2"].reshape(1, D).astype(jnp.float32)
    ln_g = params["ln_g"].reshape(3, 1, D).astype(jnp.float32)
    ln_b = params["ln_b"].reshape(3, 1, D).astype(jnp.float32)

    # Constant index_map -> Pallas keeps these blocks resident (no re-DMA
    # across grid steps).
    full = lambda a: pl.BlockSpec(a.shape, lambda b: (0,) * a.ndim)

    return pl.pallas_call(
        functools.partial(decoder_layer_kernel, n_heads=n_heads),
        out_shape=jax.ShapeDtypeStruct((B, S, D), jnp.float32),
        grid_spec=pltpu.PrefetchScalarGridSpec(
            num_scalar_prefetch=0,
            grid=(B,),
            in_specs=[
                pl.BlockSpec((None, S, D), lambda b: (b, 0, 0)),    # query
                pl.BlockSpec((None, Se, D), lambda b: (b, 0, 0)),   # enc states
                pl.BlockSpec((None, S, S), lambda b: (b, 0, 0)),    # target mask
                pl.BlockSpec((None, S, Se), lambda b: (b, 0, 0)),   # source mask
                full(wqkv_s), full(bqkv_s), full(wo_s), full(bo_s), # self attn
                full(wqkv_c), full(bqkv_c), full(wo_c), full(bo_c), # cross attn
                full(w1), full(b1), full(w2), full(b2),             # FFN
                full(ln_g), full(ln_b),                             # LayerNorms
            ],
            out_specs=pl.BlockSpec((None, S, D), lambda b: (b, 0, 0)),
        ),
        compiler_params=pltpu.CompilerParams(
            dimension_semantics=("parallel",),       # >=2 parallel steps: feeds both v7x TCs
            vmem_limit_bytes=64 * 1024 * 1024),
    )(query.astype(jnp.float32), enc_states.astype(jnp.float32),
      target_mask.astype(jnp.float32), source_mask.astype(jnp.float32),
      wqkv_s, bqkv_s, wo_s, bo_s, wqkv_c, bqkv_c, wo_c, bo_c,
      w1, b1, w2, b2, ln_g, ln_b)


# ------------------------------ pure-JAX ref ----------------------------------

def _ref_mha(q_in, kv_in, mask, W, b, n_heads):
    B, Sq, D = q_in.shape
    Sk = kv_in.shape[1]
    dk = D // n_heads
    Q = (q_in @ W[0] + b[0]).reshape(B, Sq, n_heads, dk).transpose(0, 2, 1, 3)
    K = (kv_in @ W[1] + b[1]).reshape(B, Sk, n_heads, dk).transpose(0, 2, 1, 3)
    V = (kv_in @ W[2] + b[2]).reshape(B, Sk, n_heads, dk).transpose(0, 2, 1, 3)
    scores = jnp.einsum("bhqd,bhkd->bhqk", Q, K) / math.sqrt(dk)
    scores = jnp.where(mask[:, None] == 0, -1e9, scores)
    alphas = jax.nn.softmax(scores, axis=-1)
    ctx = jnp.einsum("bhqk,bhkd->bhqd", alphas, V)
    ctx = ctx.transpose(0, 2, 1, 3).reshape(B, Sq, D)
    return ctx @ W[3] + b[3]


def _ref_ln(x, g, b, eps=1e-5):
    mu = x.mean(-1, keepdims=True)
    var = ((x - mu) ** 2).mean(-1, keepdims=True)
    return (x - mu) / jnp.sqrt(var + eps) * g + b


def decoder_layer_ref(query, enc, p, tmask, smask, n_heads):
    nq = _ref_ln(query, p["ln_g"][0], p["ln_b"][0])
    att1 = query + _ref_mha(nq, nq, tmask, p["w_self"], p["b_self"], n_heads)
    na1 = _ref_ln(att1, p["ln_g"][1], p["ln_b"][1])
    att2 = att1 + _ref_mha(na1, enc, smask, p["w_cross"], p["b_cross"], n_heads)
    na2 = _ref_ln(att2, p["ln_g"][2], p["ln_b"][2])
    ffn = jnp.maximum(na2 @ p["w_ffn1"] + p["b_ffn1"], 0.0) @ p["w_ffn2"] + p["b_ffn2"]
    return att2 + ffn


# --------------------------------- main ---------------------------------------

if __name__ == "__main__":
    B, S, Se, D, H, F = 2, 8, 8, 32, 4, 64   # batch, tgt seq, src seq, d_model, heads, ff_units

    key = jax.random.PRNGKey(0)
    ks = jax.random.split(key, 12)
    scale = 0.1

    params = {
        "w_self":  scale * jax.random.normal(ks[0], (4, D, D), jnp.float32),
        "b_self":  scale * jax.random.normal(ks[1], (4, D), jnp.float32),
        "w_cross": scale * jax.random.normal(ks[2], (4, D, D), jnp.float32),
        "b_cross": scale * jax.random.normal(ks[3], (4, D), jnp.float32),
        "w_ffn1":  scale * jax.random.normal(ks[4], (D, F), jnp.float32),
        "b_ffn1":  scale * jax.random.normal(ks[5], (F,), jnp.float32),
        "w_ffn2":  scale * jax.random.normal(ks[6], (F, D), jnp.float32),
        "b_ffn2":  scale * jax.random.normal(ks[7], (D,), jnp.float32),
        "ln_g":    jnp.ones((3, D), jnp.float32),
        "ln_b":    jnp.zeros((3, D), jnp.float32),
    }

    query = jax.random.normal(ks[8], (B, S, D), jnp.float32)
    enc_states = jax.random.normal(ks[9], (B, Se, D), jnp.float32)

    # Causal target mask, all-ones source mask (mask==0 positions get -1e9).
    target_mask = jnp.broadcast_to(
        jnp.tril(jnp.ones((S, S), jnp.float32)), (B, S, S))
    source_mask = jnp.ones((B, S, Se), jnp.float32)

    out = decoder_layer(query, enc_states, params, target_mask, source_mask,
                        n_heads=H)
    out = jax.block_until_ready(out)

    ref = decoder_layer_ref(query, enc_states, params, target_mask, source_mask, H)
    # Tolerance accounts for bf16 MXU operands (f32 accumulation) vs f32 reference.
    np.testing.assert_allclose(np.asarray(out), np.asarray(ref),
                               rtol=3e-2, atol=3e-2)

    print("KERNEL_OK")
</pallas_src>

<mosaic_0001>
module attributes {stable_mosaic.version = 11 : i64} {
  func.func @decoder_layer_kernel(%arg0: i32, %arg1: memref<1x8x32xf32, #tpu.memory_space<vmem>>, %arg2: memref<1x8x32xf32, #tpu.memory_space<vmem>>, %arg3: memref<1x8x8xf32, #tpu.memory_space<vmem>>, %arg4: memref<1x8x8xf32, #tpu.memory_space<vmem>>, %arg5: memref<3x4x32x8xbf16, #tpu.memory_space<vmem>>, %arg6: memref<3x4x1x8xf32, #tpu.memory_space<vmem>>, %arg7: memref<4x8x32xbf16, #tpu.memory_space<vmem>>, %arg8: memref<1x32xf32, #tpu.memory_space<vmem>>, %arg9: memref<3x4x32x8xbf16, #tpu.memory_space<vmem>>, %arg10: memref<3x4x1x8xf32, #tpu.memory_space<vmem>>, %arg11: memref<4x8x32xbf16, #tpu.memory_space<vmem>>, %arg12: memref<1x32xf32, #tpu.memory_space<vmem>>, %arg13: memref<32x64xbf16, #tpu.memory_space<vmem>>, %arg14: memref<1x64xf32, #tpu.memory_space<vmem>>, %arg15: memref<64x32xbf16, #tpu.memory_space<vmem>>, %arg16: memref<1x32xf32, #tpu.memory_space<vmem>>, %arg17: memref<3x1x32xf32, #tpu.memory_space<vmem>>, %arg18: memref<3x1x32xf32, #tpu.memory_space<vmem>>, %arg19: memref<1x8x32xf32, #tpu.memory_space<vmem>>) attributes {dimension_semantics = [#tpu.dimension_semantics<parallel>], iteration_bounds = array<i64: 2>, scalar_prefetch = 0 : i64, scratch_operands = 0 : i64, tpu.core_type = #tpu.core_type<tc>, window_params = [{transform_indices = @transform_0, window_bounds = array<i64: 1, 8, 32>}, {transform_indices = @transform_1, window_bounds = array<i64: 1, 8, 32>}, {transform_indices = @transform_2, window_bounds = array<i64: 1, 8, 8>}, {transform_indices = @transform_3, window_bounds = array<i64: 1, 8, 8>}, {pipeline_mode = #tpu.pipeline_mode<synchronous>, transform_indices = @transform_4, window_bounds = array<i64: 3, 4, 32, 8>}, {pipeline_mode = #tpu.pipeline_mode<synchronous>, transform_indices = @transform_5, window_bounds = array<i64: 3, 4, 1, 8>}, {pipeline_mode = #tpu.pipeline_mode<synchronous>, transform_indices = @transform_6, window_bounds = array<i64: 4, 8, 32>}, {pipeline_mode = #tpu.pipeline_mode<synchronous>, transform_indices = @transform_7, window_bounds = array<i64: 1, 32>}, {pipeline_mode = #tpu.pipeline_mode<synchronous>, transform_indices = @transform_8, window_bounds = array<i64: 3, 4, 32, 8>}, {pipeline_mode = #tpu.pipeline_mode<synchronous>, transform_indices = @transform_9, window_bounds = array<i64: 3, 4, 1, 8>}, {pipeline_mode = #tpu.pipeline_mode<synchronous>, transform_indices = @transform_10, window_bounds = array<i64: 4, 8, 32>}, {pipeline_mode = #tpu.pipeline_mode<synchronous>, transform_indices = @transform_11, window_bounds = array<i64: 1, 32>}, {pipeline_mode = #tpu.pipeline_mode<synchronous>, transform_indices = @transform_12, window_bounds = array<i64: 32, 64>}, {pipeline_mode = #tpu.pipeline_mode<synchronous>, transform_indices = @transform_13, window_bounds = array<i64: 1, 64>}, {pipeline_mode = #tpu.pipeline_mode<synchronous>, transform_indices = @transform_14, window_bounds = array<i64: 64, 32>}, {pipeline_mode = #tpu.pipeline_mode<synchronous>, transform_indices = @transform_15, window_bounds = array<i64: 1, 32>}, {pipeline_mode = #tpu.pipeline_mode<synchronous>, transform_indices = @transform_16, window_bounds = array<i64: 3, 1, 32>}, {pipeline_mode = #tpu.pipeline_mode<synchronous>, transform_indices = @transform_17, window_bounds = array<i64: 3, 1, 32>}, {transform_indices = @transform_18, window_bounds = array<i64: 1, 8, 32>}]} {
    %c0 = arith.constant 0 : index
    %c0_0 = arith.constant 0 : index
    %c0_1 = arith.constant 0 : index
    %0 = vector.load %arg1[%c0, %c0_0, %c0_1] : memref<1x8x32xf32, #tpu.memory_space<vmem>>, vector<1x8x32xf32>
    %1 = vector.shape_cast %0 : vector<1x8x32xf32> to vector<8x32xf32>
    %c0_2 = arith.constant 0 : index
    %c0_3 = arith.constant 0 : index
    %c0_4 = arith.constant 0 : index
    %2 = vector.load %arg2[%c0_2, %c0_3, %c0_4] : memref<1x8x32xf32, #tpu.memory_space<vmem>>, vector<1x8x32xf32>
    %3 = vector.shape_cast %2 : vector<1x8x32xf32> to vector<8x32xf32>
    %c0_5 = arith.constant 0 : index
    %c0_6 = arith.constant 0 : index
    %c0_7 = arith.constant 0 : index
    %4 = vector.load %arg17[%c0_5, %c0_6, %c0_7] : memref<3x1x32xf32, #tpu.memory_space<vmem>>, vector<1x1x32xf32>
    %5 = vector.shape_cast %4 : vector<1x1x32xf32> to vector<1x32xf32>
    %c0_8 = arith.constant 0 : index
    %c0_9 = arith.constant 0 : index
    %c0_10 = arith.constant 0 : index
    %6 = vector.load %arg18[%c0_8, %c0_9, %c0_10] : memref<3x1x32xf32, #tpu.memory_space<vmem>>, vector<1x1x32xf32>
    %7 = vector.shape_cast %6 : vector<1x1x32xf32> to vector<1x32xf32>
    %cst = arith.constant dense<0.000000e+00> : vector<8xf32>
    %8 = vector.multi_reduction <add>, %1, %cst [1] : vector<8x32xf32> to vector<8xf32>
    %9 = vector.shape_cast %8 : vector<8xf32> to vector<8x1xf32>
    %cst_11 = arith.constant 3.200000e+01 : f32
    %10 = vector.broadcast %cst_11 : f32 to vector<8x1xf32>
    %11 = arith.divf %9, %10 : vector<8x1xf32>
    %12 = vector.broadcast %11 : vector<8x1xf32> to vector<8x32xf32>
    %13 = arith.subf %1, %12 : vector<8x32xf32>
    %14 = arith.mulf %13, %13 : vector<8x32xf32>
    %cst_12 = arith.constant dense<0.000000e+00> : vector<8xf32>
    %15 = vector.multi_reduction <add>, %14, %cst_12 [1] : vector<8x32xf32> to vector<8xf32>
    %16 = vector.shape_cast %15 : vector<8xf32> to vector<8x1xf32>
    %cst_13 = arith.constant 3.200000e+01 : f32
    %17 = vector.broadcast %cst_13 : f32 to vector<8x1xf32>
    %18 = arith.divf %16, %17 : vector<8x1xf32>
    %19 = vector.broadcast %11 : vector<8x1xf32> to vector<8x32xf32>
    %20 = arith.subf %1, %19 : vector<8x32xf32>
    %cst_14 = arith.constant 9.99999974E-6 : f32
    %21 = vector.broadcast %cst_14 : f32 to vector<8x1xf32>
    %22 = arith.addf %18, %21 : vector<8x1xf32>
    %23 = math.rsqrt %22 : vector<8x1xf32>
    %24 = vector.broadcast %23 : vector<8x1xf32> to vector<8x32xf32>
    %25 = arith.mulf %20, %24 : vector<8x32xf32>
    %26 = vector.broadcast %5 : vector<1x32xf32> to vector<8x32xf32>
    %27 = arith.mulf %25, %26 : vector<8x32xf32>
    %28 = vector.broadcast %7 : vector<1x32xf32> to vector<8x32xf32>
    %29 = arith.addf %27, %28 : vector<8x32xf32>
    %c0_15 = arith.constant 0 : index
    %c0_16 = arith.constant 0 : index
    %c0_17 = arith.constant 0 : index
    %30 = vector.load %arg3[%c0_15, %c0_16, %c0_17] : memref<1x8x8xf32, #tpu.memory_space<vmem>>, vector<1x8x8xf32>
    %31 = vector.shape_cast %30 : vector<1x8x8xf32> to vector<8x8xf32>
    %c0_18 = arith.constant 0 : index
    %c0_19 = arith.constant 0 : index
    %c0_20 = arith.constant 0 : index
    %c0_21 = arith.constant 0 : index
    %32 = vector.load %arg5[%c0_18, %c0_19, %c0_20, %c0_21] : memref<3x4x32x8xbf16, #tpu.memory_space<vmem>>, vector<3x4x32x8xbf16>
    %c0_22 = arith.constant 0 : index
    %c0_23 = arith.constant 0 : index
    %c0_24 = arith.constant 0 : index
    %c0_25 = arith.constant 0 : index
    %33 = vector.load %arg6[%c0_22, %c0_23, %c0_24, %c0_25] : memref<3x4x1x8xf32, #tpu.memory_space<vmem>>, vector<3x4x1x8xf32>
    %c0_26 = arith.constant 0 : index
    %c0_27 = arith.constant 0 : index
    %c0_28 = arith.constant 0 : index
    %34 = vector.load %arg7[%c0_26, %c0_27, %c0_28] : memref<4x8x32xbf16, #tpu.memory_space<vmem>>, vector<4x8x32xbf16>
    %c0_29 = arith.constant 0 : index
    %c0_30 = arith.constant 0 : index
    %35 = vector.load %arg8[%c0_29, %c0_30] : memref<1x32xf32, #tpu.memory_space<vmem>>, vector<1x32xf32>
    %36 = arith.truncf %29 : vector<8x32xf32> to vector<8x32xbf16>
    %37 = vector.shape_cast %36 : vector<8x32xbf16> to vector<1x8x32xbf16>
    %38 = vector.shape_cast %37 : vector<1x8x32xbf16> to vector<1x8x32xbf16>
    %39 = vector.broadcast %38 : vector<1x8x32xbf16> to vector<4x8x32xbf16>
    %40 = vector.extract_strided_slice %32 {offsets = [0, 0, 0, 0], sizes = [1, 4, 32, 8], strides = [1, 1, 1, 1]} : vector<3x4x32x8xbf16> to vector<1x4x32x8xbf16>
    %41 = vector.shape_cast %40 : vector<1x4x32x8xbf16> to vector<4x32x8xbf16>
    "tpu.trace_start"() <{level = 10 : i32, message = "hsd,hdf->hsf"}> : () -> ()
    %cst_31 = arith.constant dense<0.000000e+00> : vector<4x8x8xf32>
    %42 = tpu.matmul %39, %41, %cst_31 {dimension_numbers = #tpu.dot_dimension_numbers<[2], [1], [1], [2], [0, 0, 0, 1, 1, 2], [0], [0]>} : vector<4x8x32xbf16>, vector<4x32x8xbf16>, vector<4x8x8xf32> -> vector<4x8x8xf32>
    "tpu.trace_stop"() : () -> ()
    %43 = vector.extract_strided_slice %33 {offsets = [0, 0, 0, 0], sizes = [1, 4, 1, 8], strides = [1, 1, 1, 1]} : vector<3x4x1x8xf32> to vector<1x4x1x8xf32>
    %44 = vector.shape_cast %43 : vector<1x4x1x8xf32> to vector<4x1x8xf32>
    %45 = vector.broadcast %44 : vector<4x1x8xf32> to vector<4x8x8xf32>
    %46 = arith.addf %42, %45 : vector<4x8x8xf32>
    %cst_32 = arith.constant 0.353553385 : f32
    %47 = vector.broadcast %cst_32 : f32 to vector<4x8x8xf32>
    %48 = arith.mulf %46, %47 : vector<4x8x8xf32>
    %49 = vector.extract_strided_slice %32 {offsets = [1, 0, 0, 0], sizes = [1, 4, 32, 8], strides = [1, 1, 1, 1]} : vector<3x4x32x8xbf16> to vector<1x4x32x8xbf16>
    %50 = vector.shape_cast %49 : vector<1x4x32x8xbf16> to vector<4x32x8xbf16>
    "tpu.trace_start"() <{level = 10 : i32, message = "hsd,hdf->hsf"}> : () -> ()
    %cst_33 = arith.constant dense<0.000000e+00> : vector<4x8x8xf32>
    %51 = tpu.matmul %39, %50, %cst_33 {dimension_numbers = #tpu.dot_dimension_numbers<[2], [1], [1], [2], [0, 0, 0, 1, 1, 2], [0], [0]>} : vector<4x8x32xbf16>, vector<4x32x8xbf16>, vector<4x8x8xf32> -> vector<4x8x8xf32>
    "tpu.trace_stop"() : () -> ()
    %52 = vector.extract_strided_slice %33 {offsets = [1, 0, 0, 0], sizes = [1, 4, 1, 8], strides = [1, 1, 1, 1]} : vector<3x4x1x8xf32> to vector<1x4x1x8xf32>
    %53 = vector.shape_cast %52 : vector<1x4x1x8xf32> to vector<4x1x8xf32>
    %54 = vector.broadcast %53 : vector<4x1x8xf32> to vector<4x8x8xf32>
    %55 = arith.addf %51, %54 : vector<4x8x8xf32>
    %56 = vector.extract_strided_slice %32 {offsets = [2, 0, 0, 0], sizes = [1, 4, 32, 8], strides = [1, 1, 1, 1]} : vector<3x4x32x8xbf16> to vector<1x4x32x8xbf16>
    %57 = vector.shape_cast %56 : vector<1x4x32x8xbf16> to vector<4x32x8xbf16>
    "tpu.trace_start"() <{level = 10 : i32, message = "hsd,hdf->hsf"}> : () -> ()
    %cst_34 = arith.constant dense<0.000000e+00> : vector<4x8x8xf32>
    %58 = tpu.matmul %39, %57, %cst_34 {dimension_numbers = #tpu.dot_dimension_numbers<[2], [1], [1], [2], [0, 0, 0, 1, 1, 2], [0], [0]>} : vector<4x8x32xbf16>, vector<4x32x8xbf16>, vector<4x8x8xf32> -> vector<4x8x8xf32>
    "tpu.trace_stop"() : () -> ()
    %59 = vector.extract_strided_slice %33 {offsets = [2, 0, 0, 0], sizes = [1, 4, 1, 8], strides = [1, 1, 1, 1]} : vector<3x4x1x8xf32> to vector<1x4x1x8xf32>
    %60 = vector.shape_cast %59 : vector<1x4x1x8xf32> to vector<4x1x8xf32>
    %61 = vector.broadcast %60 : vector<4x1x8xf32> to vector<4x8x8xf32>
    %62 = arith.addf %58, %61 : vector<4x8x8xf32>
    %63 = arith.truncf %48 : vector<4x8x8xf32> to vector<4x8x8xbf16>
    %64 = arith.truncf %55 : vector<4x8x8xf32> to vector<4x8x8xbf16>
    "tpu.trace_start"() <{level = 10 : i32, message = "hqf,hkf->hqk"}> : () -> ()
    %cst_35 = arith.constant dense<0.000000e+00> : vector<4x8x8xf32>
    %65 = tpu.matmul %63, %64, %cst_35 {dimension_numbers = #tpu.dot_dimension_numbers<[2], [2], [1], [1], [0, 0, 0, 1, 1, 1], [0], [0]>} : vector<4x8x8xbf16>, vector<4x8x8xbf16>, vector<4x8x8xf32> -> vector<4x8x8xf32>
    %cst_36 = arith.constant 0.000000e+00 : f32
    "tpu.trace_stop"() : () -> ()
    %66 = vector.broadcast %cst_36 : f32 to vector<8x8xf32>
    %67 = arith.cmpf one, %31, %66 : vector<8x8xf32>
    %cst_37 = arith.constant 0.000000e+00 : f32
    %cst_38 = arith.constant -1.000000e+09 : f32
    %68 = vector.broadcast %cst_37 : f32 to vector<8x8xf32>
    %69 = vector.broadcast %cst_38 : f32 to vector<8x8xf32>
    %70 = arith.select %67, %68, %69 : vector<8x8xi1>, vector<8x8xf32>
    %71 = vector.shape_cast %70 : vector<8x8xf32> to vector<1x8x8xf32>
    %72 = vector.broadcast %71 : vector<1x8x8xf32> to vector<4x8x8xf32>
    %73 = arith.addf %65, %72 : vector<4x8x8xf32>
    %cst_39 = arith.constant dense<0xFF800000> : vector<4x8xf32>
    %74 = vector.multi_reduction <maximumf>, %73, %cst_39 [2] : vector<4x8x8xf32> to vector<4x8xf32>
    %75 = vector.shape_cast %74 : vector<4x8xf32> to vector<4x8x1xf32>
    %76 = vector.broadcast %75 : vector<4x8x1xf32> to vector<4x8x8xf32>
    %77 = arith.subf %73, %76 : vector<4x8x8xf32>
    %78 = math.exp %77 : vector<4x8x8xf32>
    %cst_40 = arith.constant dense<0.000000e+00> : vector<4x8xf32>
    %79 = vector.multi_reduction <add>, %78, %cst_40 [2] : vector<4x8x8xf32> to vector<4x8xf32>
    %80 = vector.shape_cast %79 : vector<4x8xf32> to vector<4x8x1xf32>
    %81 = tpu.reciprocal %80 {approx = true} : vector<4x8x1xf32> -> vector<4x8x1xf32>
    %82 = vector.broadcast %81 : vector<4x8x1xf32> to vector<4x8x8xf32>
    %83 = arith.mulf %78, %82 : vector<4x8x8xf32>
    %84 = arith.truncf %83 : vector<4x8x8xf32> to vector<4x8x8xbf16>
    %85 = arith.truncf %62 : vector<4x8x8xf32> to vector<4x8x8xbf16>
    "tpu.trace_start"() <{level = 10 : i32, message = "hqk,hkf->hqf"}> : () -> ()
    %cst_41 = arith.constant dense<0.000000e+00> : vector<4x8x8xf32>
    %86 = tpu.matmul %84, %85, %cst_41 {dimension_numbers = #tpu.dot_dimension_numbers<[2], [1], [1], [2], [0, 0, 0, 1, 1, 2], [0], [0]>} : vector<4x8x8xbf16>, vector<4x8x8xbf16>, vector<4x8x8xf32> -> vector<4x8x8xf32>
    "tpu.trace_stop"() : () -> ()
    %87 = arith.truncf %86 : vector<4x8x8xf32> to vector<4x8x8xbf16>
    "tpu.trace_start"() <{level = 10 : i32, message = "hqf,hfd->hqd"}> : () -> ()
    %cst_42 = arith.constant dense<0.000000e+00> : vector<4x8x32xf32>
    %88 = tpu.matmul %87, %34, %cst_42 {dimension_numbers = #tpu.dot_dimension_numbers<[2], [1], [1], [2], [0, 0, 0, 1, 1, 2], [0], [0]>} : vector<4x8x8xbf16>, vector<4x8x32xbf16>, vector<4x8x32xf32> -> vector<4x8x32xf32>
    "tpu.trace_stop"() : () -> ()
    %cst_43 = arith.constant dense<0.000000e+00> : vector<8x32xf32>
    %89 = vector.multi_reduction <add>, %88, %cst_43 [0] : vector<4x8x32xf32> to vector<8x32xf32>
    %90 = vector.broadcast %35 : vector<1x32xf32> to vector<8x32xf32>
    %91 = arith.addf %89, %90 : vector<8x32xf32>
    %92 = arith.addf %1, %91 : vector<8x32xf32>
    %c1 = arith.constant 1 : index
    %c0_44 = arith.constant 0 : index
    %c0_45 = arith.constant 0 : index
    %93 = vector.load %arg17[%c1, %c0_44, %c0_45] : memref<3x1x32xf32, #tpu.memory_space<vmem>>, vector<1x1x32xf32>
    %94 = vector.shape_cast %93 : vector<1x1x32xf32> to vector<1x32xf32>
    %c1_46 = arith.constant 1 : index
    %c0_47 = arith.constant 0 : index
    %c0_48 = arith.constant 0 : index
    %95 = vector.load %arg18[%c1_46, %c0_47, %c0_48] : memref<3x1x32xf32, #tpu.memory_space<vmem>>, vector<1x1x32xf32>
    %96 = vector.shape_cast %95 : vector<1x1x32xf32> to vector<1x32xf32>
    %cst_49 = arith.constant dense<0.000000e+00> : vector<8xf32>
    %97 = vector.multi_reduction <add>, %92, %cst_49 [1] : vector<8x32xf32> to vector<8xf32>
    %98 = vector.shape_cast %97 : vector<8xf32> to vector<8x1xf32>
    %cst_50 = arith.constant 3.200000e+01 : f32
    %99 = vector.broadcast %cst_50 : f32 to vector<8x1xf32>
    %100 = arith.divf %98, %99 : vector<8x1xf32>
    %101 = vector.broadcast %100 : vector<8x1xf32> to vector<8x32xf32>
    %102 = arith.subf %92, %101 : vector<8x32xf32>
    %103 = arith.mulf %102, %102 : vector<8x32xf32>
    %cst_51 = arith.constant dense<0.000000e+00> : vector<8xf32>
    %104 = vector.multi_reduction <add>, %103, %cst_51 [1] : vector<8x32xf32> to vector<8xf32>
    %105 = vector.shape_cast %104 : vector<8xf32> to vector<8x1xf32>
    %cst_52 = arith.constant 3.200000e+01 : f32
    %106 = vector.broadcast %cst_52 : f32 to vector<8x1xf32>
    %107 = arith.divf %105, %106 : vector<8x1xf32>
    %108 = vector.broadcast %100 : vector<8x1xf32> to vector<8x32xf32>
    %109 = arith.subf %92, %108 : vector<8x32xf32>
    %cst_53 = arith.constant 9.99999974E-6 : f32
    %110 = vector.broadcast %cst_53 : f32 to vector<8x1xf32>
    %111 = arith.addf %107, %110 : vector<8x1xf32>
    %112 = math.rsqrt %111 : vector<8x1xf32>
    %113 = vector.broadcast %112 : vector<8x1xf32> to vector<8x32xf32>
    %114 = arith.mulf %109, %113 : vector<8x32xf32>
    %115 = vector.broadcast %94 : vector<1x32xf32> to vector<8x32xf32>
    %116 = arith.mulf %114, %115 : vector<8x32xf32>
    %117 = vector.broadcast %96 : vector<1x32xf32> to vector<8x32xf32>
    %118 = arith.addf %116, %117 : vector<8x32xf32>
    %c0_54 = arith.constant 0 : index
    %c0_55 = arith.constant 0 : index
    %c0_56 = arith.constant 0 : index
    %119 = vector.load %arg4[%c0_54, %c0_55, %c0_56] : memref<1x8x8xf32, #tpu.memory_space<vmem>>, vector<1x8x8xf32>
    %120 = vector.shape_cast %119 : vector<1x8x8xf32> to vector<8x8xf32>
    %c0_57 = arith.constant 0 : index
    %c0_58 = arith.constant 0 : index
    %c0_59 = arith.constant 0 : index
    %c0_60 = arith.constant 0 : index
    %121 = vector.load %arg9[%c0_57, %c0_58, %c0_59, %c0_60] : memref<3x4x32x8xbf16, #tpu.memory_space<vmem>>, vector<3x4x32x8xbf16>
    %c0_61 = arith.constant 0 : index
    %c0_62 = arith.constant 0 : index
    %c0_63 = arith.constant 0 : index
    %c0_64 = arith.constant 0 : index
    %122 = vector.load %arg10[%c0_61, %c0_62, %c0_63, %c0_64] : memref<3x4x1x8xf32, #tpu.memory_space<vmem>>, vector<3x4x1x8xf32>
    %c0_65 = arith.constant 0 : index
    %c0_66 = arith.constant 0 : index
    %c0_67 = arith.constant 0 : index
    %123 = vector.load %arg11[%c0_65, %c0_66, %c0_67] : memref<4x8x32xbf16, #tpu.memory_space<vmem>>, vector<4x8x32xbf16>
    %c0_68 = arith.constant 0 : index
    %c0_69 = arith.constant 0 : index
    %124 = vector.load %arg12[%c0_68, %c0_69] : memref<1x32xf32, #tpu.memory_space<vmem>>, vector<1x32xf32>
    %125 = arith.truncf %118 : vector<8x32xf32> to vector<8x32xbf16>
    %126 = vector.shape_cast %125 : vector<8x32xbf16> to vector<1x8x32xbf16>
    %127 = vector.shape_cast %126 : vector<1x8x32xbf16> to vector<1x8x32xbf16>
    %128 = vector.broadcast %127 : vector<1x8x32xbf16> to vector<4x8x32xbf16>
    %129 = arith.truncf %3 : vector<8x32xf32> to vector<8x32xbf16>
    %130 = vector.shape_cast %129 : vector<8x32xbf16> to vector<1x8x32xbf16>
    %131 = vector.shape_cast %130 : vector<1x8x32xbf16> to vector<1x8x32xbf16>
    %132 = vector.broadcast %131 : vector<1x8x32xbf16> to vector<4x8x32xbf16>
    %133 = vector.extract_strided_slice %121 {offsets = [0, 0, 0, 0], sizes = [1, 4, 32, 8], strides = [1, 1, 1, 1]} : vector<3x4x32x8xbf16> to vector<1x4x32x8xbf16>
    %134 = vector.shape_cast %133 : vector<1x4x32x8xbf16> to vector<4x32x8xbf16>
    "tpu.trace_start"() <{level = 10 : i32, message = "hsd,hdf->hsf"}> : () -> ()
    %cst_70 = arith.constant dense<0.000000e+00> : vector<4x8x8xf32>
    %135 = tpu.matmul %128, %134, %cst_70 {dimension_numbers = #tpu.dot_dimension_numbers<[2], [1], [1], [2], [0, 0, 0, 1, 1, 2], [0], [0]>} : vector<4x8x32xbf16>, vector<4x32x8xbf16>, vector<4x8x8xf32> -> vector<4x8x8xf32>
    "tpu.trace_stop"() : () -> ()
    %136 = vector.extract_strided_slice %122 {offsets = [0, 0, 0, 0], sizes = [1, 4, 1, 8], strides = [1, 1, 1, 1]} : vector<3x4x1x8xf32> to vector<1x4x1x8xf32>
    %137 = vector.shape_cast %136 : vector<1x4x1x8xf32> to vector<4x1x8xf32>
    %138 = vector.broadcast %137 : vector<4x1x8xf32> to vector<4x8x8xf32>
    %139 = arith.addf %135, %138 : vector<4x8x8xf32>
    %cst_71 = arith.constant 0.353553385 : f32
    %140 = vector.broadcast %cst_71 : f32 to vector<4x8x8xf32>
    %141 = arith.mulf %139, %140 : vector<4x8x8xf32>
    %142 = vector.extract_strided_slice %121 {offsets = [1, 0, 0, 0], sizes = [1, 4, 32, 8], strides = [1, 1, 1, 1]} : vector<3x4x32x8xbf16> to vector<1x4x32x8xbf16>
    %143 = vector.shape_cast %142 : vector<1x4x32x8xbf16> to vector<4x32x8xbf16>
    "tpu.trace_start"() <{level = 10 : i32, message = "hsd,hdf->hsf"}> : () -> ()
    %cst_72 = arith.constant dense<0.000000e+00> : vector<4x8x8xf32>
    %144 = tpu.matmul %132, %143, %cst_72 {dimension_numbers = #tpu.dot_dimension_numbers<[2], [1], [1], [2], [0, 0, 0, 1, 1, 2], [0], [0]>} : vector<4x8x32xbf16>, vector<4x32x8xbf16>, vector<4x8x8xf32> -> vector<4x8x8xf32>
    "tpu.trace_stop"() : () -> ()
    %145 = vector.extract_strided_slice %122 {offsets = [1, 0, 0, 0], sizes = [1, 4, 1, 8], strides = [1, 1, 1, 1]} : vector<3x4x1x8xf32> to vector<1x4x1x8xf32>
    %146 = vector.shape_cast %145 : vector<1x4x1x8xf32> to vector<4x1x8xf32>
    %147 = vector.broadcast %146 : vector<4x1x8xf32> to vector<4x8x8xf32>
    %148 = arith.addf %144, %147 : vector<4x8x8xf32>
    %149 = vector.extract_strided_slice %121 {offsets = [2, 0, 0, 0], sizes = [1, 4, 32, 8], strides = [1, 1, 1, 1]} : vector<3x4x32x8xbf16> to vector<1x4x32x8xbf16>
    %150 = vector.shape_cast %149 : vector<1x4x32x8xbf16> to vector<4x32x8xbf16>
    "tpu.trace_start"() <{level = 10 : i32, message = "hsd,hdf->hsf"}> : () -> ()
    %cst_73 = arith.constant dense<0.000000e+00> : vector<4x8x8xf32>
    %151 = tpu.matmul %132, %150, %cst_73 {dimension_numbers = #tpu.dot_dimension_numbers<[2], [1], [1], [2], [0, 0, 0, 1, 1, 2], [0], [0]>} : vector<4x8x32xbf16>, vector<4x32x8xbf16>, vector<4x8x8xf32> -> vector<4x8x8xf32>
    "tpu.trace_stop"() : () -> ()
    %152 = vector.extract_strided_slice %122 {offsets = [2, 0, 0, 0], sizes = [1, 4, 1, 8], strides = [1, 1, 1, 1]} : vector<3x4x1x8xf32> to vector<1x4x1x8xf32>
    %153 = vector.shape_cast %152 : vector<1x4x1x8xf32> to vector<4x1x8xf32>
    %154 = vector.broadcast %153 : vector<4x1x8xf32> to vector<4x8x8xf32>
    %155 = arith.addf %151, %154 : vector<4x8x8xf32>
    %156 = arith.truncf %141 : vector<4x8x8xf32> to vector<4x8x8xbf16>
    %157 = arith.truncf %148 : vector<4x8x8xf32> to vector<4x8x8xbf16>
    "tpu.trace_start"() <{level = 10 : i32, message = "hqf,hkf->hqk"}> : () -> ()
    %cst_74 = arith.constant dense<0.000000e+00> : vector<4x8x8xf32>
    %158 = tpu.matmul %156, %157, %cst_74 {dimension_numbers = #tpu.dot_dimension_numbers<[2], [2], [1], [1], [0, 0, 0, 1, 1, 1], [0], [0]>} : vector<4x8x8xbf16>, vector<4x8x8xbf16>, vector<4x8x8xf32> -> vector<4x8x8xf32>
    %cst_75 = arith.constant 0.000000e+00 : f32
    "tpu.trace_stop"() : () -> ()
    %159 = vector.broadcast %cst_75 : f32 to vector<8x8xf32>
    %160 = arith.cmpf one, %120, %159 : vector<8x8xf32>
    %cst_76 = arith.constant 0.000000e+00 : f32
    %cst_77 = arith.constant -1.000000e+09 : f32
    %161 = vector.broadcast %cst_76 : f32 to vector<8x8xf32>
    %162 = vector.broadcast %cst_77 : f32 to vector<8x8xf32>
    %163 = arith.select %160, %161, %162 : vector<8x8xi1>, vector<8x8xf32>
    %164 = vector.shape_cast %163 : vector<8x8xf32> to vector<1x8x8xf32>
    %165 = vector.broadcast %164 : vector<1x8x8xf32> to vector<4x8x8xf32>
    %166 = arith.addf %158, %165 : vector<4x8x8xf32>
    %cst_78 = arith.constant dense<0xFF800000> : vector<4x8xf32>
    %167 = vector.multi_reduction <maximumf>, %166, %cst_78 [2] : vector<4x8x8xf32> to vector<4x8xf32>
    %168 = vector.shape_cast %167 : vector<4x8xf32> to vector<4x8x1xf32>
    %169 = vector.broadcast %168 : vector<4x8x1xf32> to vector<4x8x8xf32>
    %170 = arith.subf %166, %169 : vector<4x8x8xf32>
    %171 = math.exp %170 : vector<4x8x8xf32>
    %cst_79 = arith.constant dense<0.000000e+00> : vector<4x8xf32>
    %172 = vector.multi_reduction <add>, %171, %cst_79 [2] : vector<4x8x8xf32> to vector<4x8xf32>
    %173 = vector.shape_cast %172 : vector<4x8xf32> to vector<4x8x1xf32>
    %174 = tpu.reciprocal %173 {approx = true} : vector<4x8x1xf32> -> vector<4x8x1xf32>
    %175 = vector.broadcast %174 : vector<4x8x1xf32> to vector<4x8x8xf32>
    %176 = arith.mulf %171, %175 : vector<4x8x8xf32>
    %177 = arith.truncf %176 : vector<4x8x8xf32> to vector<4x8x8xbf16>
    %178 = arith.truncf %155 : vector<4x8x8xf32> to vector<4x8x8xbf16>
    "tpu.trace_start"() <{level = 10 : i32, message = "hqk,hkf->hqf"}> : () -> ()
    %cst_80 = arith.constant dense<0.000000e+00> : vector<4x8x8xf32>
    %179 = tpu.matmul %177, %178, %cst_80 {dimension_numbers = #tpu.dot_dimension_numbers<[2], [1], [1], [2], [0, 0, 0, 1, 1, 2], [0], [0]>} : vector<4x8x8xbf16>, vector<4x8x8xbf16>, vector<4x8x8xf32> -> vector<4x8x8xf32>
    "tpu.trace_stop"() : () -> ()
    %180 = arith.truncf %179 : vector<4x8x8xf32> to vector<4x8x8xbf16>
    "tpu.trace_start"() <{level = 10 : i32, message = "hqf,hfd->hqd"}> : () -> ()
    %cst_81 = arith.constant dense<0.000000e+00> : vector<4x8x32xf32>
    %181 = tpu.matmul %180, %123, %cst_81 {dimension_numbers = #tpu.dot_dimension_numbers<[2], [1], [1], [2], [0, 0, 0, 1, 1, 2], [0], [0]>} : vector<4x8x8xbf16>, vector<4x8x32xbf16>, vector<4x8x32xf32> -> vector<4x8x32xf32>
    "tpu.trace_stop"() : () -> ()
    %cst_82 = arith.constant dense<0.000000e+00> : vector<8x32xf32>
    %182 = vector.multi_reduction <add>, %181, %cst_82 [0] : vector<4x8x32xf32> to vector<8x32xf32>
    %183 = vector.broadcast %124 : vector<1x32xf32> to vector<8x32xf32>
    %184 = arith.addf %182, %183 : vector<8x32xf32>
    %185 = arith.addf %92, %184 : vector<8x32xf32>
    %c2 = arith.constant 2 : index
    %c0_83 = arith.constant 0 : index
    %c0_84 = arith.constant 0 : index
    %186 = vector.load %arg17[%c2, %c0_83, %c0_84] : memref<3x1x32xf32, #tpu.memory_space<vmem>>, vector<1x1x32xf32>
    %187 = vector.shape_cast %186 : vector<1x1x32xf32> to vector<1x32xf32>
    %c2_85 = arith.constant 2 : index
    %c0_86 = arith.constant 0 : index
    %c0_87 = arith.constant 0 : index
    %188 = vector.load %arg18[%c2_85, %c0_86, %c0_87] : memref<3x1x32xf32, #tpu.memory_space<vmem>>, vector<1x1x32xf32>
    %189 = vector.shape_cast %188 : vector<1x1x32xf32> to vector<1x32xf32>
    %cst_88 = arith.constant dense<0.000000e+00> : vector<8xf32>
    %190 = vector.multi_reduction <add>, %185, %cst_88 [1] : vector<8x32xf32> to vector<8xf32>
    %191 = vector.shape_cast %190 : vector<8xf32> to vector<8x1xf32>
    %cst_89 = arith.constant 3.200000e+01 : f32
    %192 = vector.broadcast %cst_89 : f32 to vector<8x1xf32>
    %193 = arith.divf %191, %192 : vector<8x1xf32>
    %194 = vector.broadcast %193 : vector<8x1xf32> to vector<8x32xf32>
    %195 = arith.subf %185, %194 : vector<8x32xf32>
    %196 = arith.mulf %195, %195 : vector<8x32xf32>
    %cst_90 = arith.constant dense<0.000000e+00> : vector<8xf32>
    %197 = vector.multi_reduction <add>, %196, %cst_90 [1] : vector<8x32xf32> to vector<8xf32>
    %198 = vector.shape_cast %197 : vector<8xf32> to vector<8x1xf32>
    %cst_91 = arith.constant 3.200000e+01 : f32
    %199 = vector.broadcast %cst_91 : f32 to vector<8x1xf32>
    %200 = arith.divf %198, %199 : vector<8x1xf32>
    %201 = vector.broadcast %193 : vector<8x1xf32> to vector<8x32xf32>
    %202 = arith.subf %185, %201 : vector<8x32xf32>
    %cst_92 = arith.constant 9.99999974E-6 : f32
    %203 = vector.broadcast %cst_92 : f32 to vector<8x1xf32>
    %204 = arith.addf %200, %203 : vector<8x1xf32>
    %205 = math.rsqrt %204 : vector<8x1xf32>
    %206 = vector.broadcast %205 : vector<8x1xf32> to vector<8x32xf32>
    %207 = arith.mulf %202, %206 : vector<8x32xf32>
    %208 = vector.broadcast %187 : vector<1x32xf32> to vector<8x32xf32>
    %209 = arith.mulf %207, %208 : vector<8x32xf32>
    %210 = vector.broadcast %189 : vector<1x32xf32> to vector<8x32xf32>
    %211 = arith.addf %209, %210 : vector<8x32xf32>
    %212 = arith.truncf %211 : vector<8x32xf32> to vector<8x32xbf16>
    %c0_93 = arith.constant 0 : index
    %c0_94 = arith.constant 0 : index
    %213 = vector.load %arg13[%c0_93, %c0_94] : memref<32x64xbf16, #tpu.memory_space<vmem>>, vector<32x64xbf16>
    %cst_95 = arith.constant dense<0.000000e+00> : vector<8x64xf32>
    %214 = tpu.matmul %212, %213, %cst_95 {dimension_numbers = #tpu.dot_dimension_numbers<[1], [0], [0], [1], [0, 0, 1, 1], [], []>} : vector<8x32xbf16>, vector<32x64xbf16>, vector<8x64xf32> -> vector<8x64xf32>
    %c0_96 = arith.constant 0 : index
    %c0_97 = arith.constant 0 : index
    %215 = vector.load %arg14[%c0_96, %c0_97] : memref<1x64xf32, #tpu.memory_space<vmem>>, vector<1x64xf32>
    %216 = vector.broadcast %215 : vector<1x64xf32> to vector<8x64xf32>
    %217 = arith.addf %214, %216 : vector<8x64xf32>
    %cst_98 = arith.constant 0.000000e+00 : f32
    %218 = vector.broadcast %cst_98 : f32 to vector<8x64xf32>
    %219 = arith.maximumf %217, %218 : vector<8x64xf32>
    %220 = arith.truncf %219 : vector<8x64xf32> to vector<8x64xbf16>
    %c0_99 = arith.constant 0 : index
    %c0_100 = arith.constant 0 : index
    %221 = vector.load %arg15[%c0_99, %c0_100] : memref<64x32xbf16, #tpu.memory_space<vmem>>, vector<64x32xbf16>
    %cst_101 = arith.constant dense<0.000000e+00> : vector<8x32xf32>
    %222 = tpu.matmul %220, %221, %cst_101 {dimension_numbers = #tpu.dot_dimension_numbers<[1], [0], [0], [1], [0, 0, 1, 1], [], []>} : vector<8x64xbf16>, vector<64x32xbf16>, vector<8x32xf32> -> vector<8x32xf32>
    %c0_102 = arith.constant 0 : index
    %c0_103 = arith.constant 0 : index
    %223 = vector.load %arg16[%c0_102, %c0_103] : memref<1x32xf32, #tpu.memory_space<vmem>>, vector<1x32xf32>
    %224 = vector.broadcast %223 : vector<1x32xf32> to vector<8x32xf32>
    %225 = arith.addf %222, %224 : vector<8x32xf32>
    %226 = arith.addf %185, %225 : vector<8x32xf32>
    %c0_104 = arith.constant 0 : index
    %c0_105 = arith.constant 0 : index
    %c0_106 = arith.constant 0 : index
    %227 = vector.load %arg19[%c0_104, %c0_105, %c0_106] : memref<1x8x32xf32, #tpu.memory_space<vmem>>, vector<1x8x32xf32>
    %228 = vector.shape_cast %227 : vector<1x8x32xf32> to vector<8x32xf32>
    %229 = vector.shape_cast %226 : vector<8x32xf32> to vector<1x8x32xf32>
    tpu.vector_store %arg19[%c0_104, %c0_105, %c0_106], %229 {strides = array<i32>} : memref<1x8x32xf32, #tpu.memory_space<vmem>>, vector<1x8x32xf32>,
    return
  }
  func.func @transform_0(%arg0: i32) -> (i32, i32, i32) {
    %c0_i32 = arith.constant 0 : i32
    %c0_i32_0 = arith.constant 0 : i32
    %c0_i32_1 = arith.constant 0 : i32
    return %arg0, %c0_i32, %c0_i32_0 : i32, i32, i32
  }
  func.func @transform_1(%arg0: i32) -> (i32, i32, i32) {
    %c0_i32 = arith.constant 0 : i32
    %c0_i32_0 = arith.constant 0 : i32
    %c0_i32_1 = arith.constant 0 : i32
    return %arg0, %c0_i32, %c0_i32_0 : i32, i32, i32
  }
  func.func @transform_2(%arg0: i32) -> (i32, i32, i32) {
    %c0_i32 = arith.constant 0 : i32
    %c0_i32_0 = arith.constant 0 : i32
    %c0_i32_1 = arith.constant 0 : i32
    return %arg0, %c0_i32, %c0_i32_0 : i32, i32, i32
  }
  func.func @transform_3(%arg0: i32) -> (i32, i32, i32) {
    %c0_i32 = arith.constant 0 : i32
    %c0_i32_0 = arith.constant 0 : i32
    %c0_i32_1 = arith.constant 0 : i32
    return %arg0, %c0_i32, %c0_i32_0 : i32, i32, i32
  }
  func.func @transform_4(%arg0: i32) -> (i32, i32, i32, i32) {
    %c0_i32 = arith.constant 0 : i32
    %c0_i32_0 = arith.constant 0 : i32
    %c0_i32_1 = arith.constant 0 : i32
    %c0_i32_2 = arith.constant 0 : i32
    %c0_i32_3 = arith.constant 0 : i32
    return %c0_i32, %c0_i32_0, %c0_i32_1, %c0_i32_2 : i32, i32, i32, i32
  }
  func.func @transform_5(%arg0: i32) -> (i32, i32, i32, i32) {
    %c0_i32 = arith.constant 0 : i32
    %c0_i32_0 = arith.constant 0 : i32
    %c0_i32_1 = arith.constant 0 : i32
    %c0_i32_2 = arith.constant 0 : i32
    %c0_i32_3 = arith.constant 0 : i32
    return %c0_i32, %c0_i32_0, %c0_i32_1, %c0_i32_2 : i32, i32, i32, i32
  }
  func.func @transform_6(%arg0: i32) -> (i32, i32, i32) {
    %c0_i32 = arith.constant 0 : i32
    %c0_i32_0 = arith.constant 0 : i32
    %c0_i32_1 = arith.constant 0 : i32
    %c0_i32_2 = arith.constant 0 : i32
    return %c0_i32, %c0_i32_0, %c0_i32_1 : i32, i32, i32
  }
  func.func @transform_7(%arg0: i32) -> (i32, i32) {
    %c0_i32 = arith.constant 0 : i32
    %c0_i32_0 = arith.constant 0 : i32
    %c0_i32_1 = arith.constant 0 : i32
    return %c0_i32, %c0_i32_0 : i32, i32
  }
  func.func @transform_8(%arg0: i32) -> (i32, i32, i32, i32) {
    %c0_i32 = arith.constant 0 : i32
    %c0_i32_0 = arith.constant 0 : i32
    %c0_i32_1 = arith.constant 0 : i32
    %c0_i32_2 = arith.constant 0 : i32
    %c0_i32_3 = arith.constant 0 : i32
    return %c0_i32, %c0_i32_0, %c0_i32_1, %c0_i32_2 : i32, i32, i32, i32
  }
  func.func @transform_9(%arg0: i32) -> (i32, i32, i32, i32) {
    %c0_i32 = arith.constant 0 : i32
    %c0_i32_0 = arith.constant 0 : i32
    %c0_i32_1 = arith.constant 0 : i32
    %c0_i32_2 = arith.constant 0 : i32
    %c0_i32_3 = arith.constant 0 : i32
    return %c0_i32, %c0_i32_0, %c0_i32_1, %c0_i32_2 : i32, i32, i32, i32
  }
  func.func @transform_10(%arg0: i32) -> (i32, i32, i32) {
    %c0_i32 = arith.constant 0 : i32
    %c0_i32_0 = arith.constant 0 : i32
    %c0_i32_1 = arith.constant 0 : i32
    %c0_i32_2 = arith.constant 0 : i32
    return %c0_i32, %c0_i32_0, %c0_i32_1 : i32, i32, i32
  }
  func.func @transform_11(%arg0: i32) -> (i32, i32) {
    %c0_i32 = arith.constant 0 : i32
    %c0_i32_0 = arith.constant 0 : i32
    %c0_i32_1 = arith.constant 0 : i32
    return %c0_i32, %c0_i32_0 : i32, i32
  }
  func.func @transform_12(%arg0: i32) -> (i32, i32) {
    %c0_i32 = arith.constant 0 : i32
    %c0_i32_0 = arith.constant 0 : i32
    %c0_i32_1 = arith.constant 0 : i32
    return %c0_i32, %c0_i32_0 : i32, i32
  }
  func.func @transform_13(%arg0: i32) -> (i32, i32) {
    %c0_i32 = arith.constant 0 : i32
    %c0_i32_0 = arith.constant 0 : i32
    %c0_i32_1 = arith.constant 0 : i32
    return %c0_i32, %c0_i32_0 : i32, i32
  }
  func.func @transform_14(%arg0: i32) -> (i32, i32) {
    %c0_i32 = arith.constant 0 : i32
    %c0_i32_0 = arith.constant 0 : i32
    %c0_i32_1 = arith.constant 0 : i32
    return %c0_i32, %c0_i32_0 : i32, i32
  }
  func.func @transform_15(%arg0: i32) -> (i32, i32) {
    %c0_i32 = arith.constant 0 : i32
    %c0_i32_0 = arith.constant 0 : i32
    %c0_i32_1 = arith.constant 0 : i32
    return %c0_i32, %c0_i32_0 : i32, i32
  }
  func.func @transform_16(%arg0: i32) -> (i32, i32, i32) {
    %c0_i32 = arith.constant 0 : i32
    %c0_i32_0 = arith.constant 0 : i32
    %c0_i32_1 = arith.constant 0 : i32
    %c0_i32_2 = arith.constant 0 : i32
    return %c0_i32, %c0_i32_0, %c0_i32_1 : i32, i32, i32
  }
  func.func @transform_17(%arg0: i32) -> (i32, i32, i32) {
    %c0_i32 = arith.constant 0 : i32
    %c0_i32_0 = arith.constant 0 : i32
    %c0_i32_1 = arith.constant 0 : i32
    %c0_i32_2 = arith.constant 0 : i32
    return %c0_i32, %c0_i32_0, %c0_i32_1 : i32, i32, i32
  }
  func.func @transform_18(%arg0: i32) -> (i32, i32, i32) {
    %c0_i32 = arith.constant 0 : i32
    %c0_i32_0 = arith.constant 0 : i32
    %c0_i32_1 = arith.constant 0 : i32
    return %arg0, %c0_i32, %c0_i32_0 : i32, i32, i32
  }
}

</mosaic_0001>

<llo_original>
// kernel: tpu_custom_call.1
$region0: #{tpu_custom_call.1}
  #allocation0 [shape = 'u32[]', space=smem, size = 0x4, offset = 0x4, fixed_abs, tag = 'smem constant byte address 0x4 - core index']
  #allocation1 [shape = 'u32[144,128]{1,0:T(1,128)}', space=vmem, size = 0x12000, scoped, tag = 'internal scratch']
  %s0 = inlined_call_operand.hbm [shape: f32[2,8,32], index: 0, kind: input, shape index: {}]
  %s1 = inlined_call_operand.hbm [shape: f32[2,8,32], index: 1, kind: input, shape index: {}]
  %s2 = inlined_call_operand.hbm [shape: f32[2,8,8], index: 2, kind: input, shape index: {}]
  %s3 = inlined_call_operand.hbm [shape: f32[2,8,8], index: 3, kind: input, shape index: {}]
  %s4 = inlined_call_operand.hbm [shape: bf16[3,4,32,8], index: 4, kind: input, shape index: {}]
  %s5 = inlined_call_operand.hbm [shape: f32[3,4,1,8], index: 5, kind: input, shape index: {}]
  %s6 = inlined_call_operand.hbm [shape: bf16[4,8,32], index: 6, kind: input, shape index: {}]
  %s7 = inlined_call_operand.hbm [shape: f32[1,32], index: 7, kind: input, shape index: {}]
  %s8 = inlined_call_operand.hbm [shape: bf16[3,4,32,8], index: 8, kind: input, shape index: {}]
  %s9 = inlined_call_operand.hbm [shape: f32[3,4,1,8], index: 9, kind: input, shape index: {}]
  %s10 = inlined_call_operand.hbm [shape: bf16[4,8,32], index: 10, kind: input, shape index: {}]
  %s11 = inlined_call_operand.hbm [shape: f32[1,32], index: 11, kind: input, shape index: {}]
  %s12 = inlined_call_operand.hbm [shape: bf16[32,64], index: 12, kind: input, shape index: {}]
  %s13 = inlined_call_operand.hbm [shape: f32[1,64], index: 13, kind: input, shape index: {}]
  %s14 = inlined_call_operand.hbm [shape: bf16[64,32], index: 14, kind: input, shape index: {}]
  %s15 = inlined_call_operand.hbm [shape: f32[1,32], index: 15, kind: input, shape index: {}]
  %s16 = inlined_call_operand.hbm [shape: f32[3,1,32], index: 16, kind: input, shape index: {}]
  %s17 = inlined_call_operand.hbm [shape: f32[3,1,32], index: 17, kind: input, shape index: {}]
  %s18 = inlined_call_operand.hbm [shape: f32[2,8,32], index: 18, kind: output, shape index: {}]
  %s19 = sld [smem:[#allocation0]]
  $region177: #{tpu_custom_call.1} parent=0
    _
  %s21 = ssub.s32 1, %s19
  %s22 = scalar_select 0, %s21, %s19
  $region1: #{tpu_custom_call.1} parent=0
    #allocation2 [shape = 'u8[8192]{0}', space=vmem, size = 0x2000, scoped, tag = 'input window, operand 0']
    #allocation3 [shape = 's32[2]{0}', space=sflag, size = 0x8, scoped, tag = 'scoped memory for tpu_custom_call.1']
    #allocation4 [shape = 's32[2]{0}', space=sflag, size = 0x8, scoped, tag = 'scoped memory for tpu_custom_call.1']
    #allocation5 [shape = 'u8[8192]{0}', space=vmem, size = 0x2000, scoped, tag = 'input window, operand 1']
    #allocation6 [shape = 's32[2]{0}', space=sflag, size = 0x8, scoped, tag = 'scoped memory for tpu_custom_call.1']
    #allocation7 [shape = 'u8[8192]{0}', space=vmem, size = 0x2000, scoped, tag = 'input window, operand 2']
    #allocation8 [shape = 'u8[8192]{0}', space=vmem, size = 0x2000, scoped, tag = 'input window, operand 3']
    #allocation9 [shape = 's32[2]{0}', space=sflag, size = 0x8, scoped, tag = 'scoped memory for tpu_custom_call.1']
    #allocation10 [shape = 'u8[98304]{0}', space=vmem, size = 0x18000, scoped, tag = 'input window, operand 4, single buffered']
    #allocation11 [shape = 'u8[6144]{0}', space=vmem, size = 0x1800, scoped, tag = 'input window, operand 5, single buffered']
    #allocation12 [shape = 's32[1]{0}', space=sflag, size = 0x4, scoped, tag = 'scoped memory for tpu_custom_call.1']
    #allocation13 [shape = 'u8[8192]{0}', space=vmem, size = 0x2000, scoped, tag = 'input window, operand 6, single buffered']
    #allocation14 [shape = 'u8[512]{0}', space=vmem, size = 0x400, scoped, tag = 'input window, operand 7, single buffered']
    #allocation15 [shape = 's32[1]{0}', space=sflag, size = 0x4, scoped, tag = 'scoped memory for tpu_custom_call.1']
    #allocation16 [shape = 'u8[98304]{0}', space=vmem, size = 0x18000, scoped, tag = 'input window, operand 8, single buffered']
    #allocation17 [shape = 'u8[6144]{0}', space=vmem, size = 0x1800, scoped, tag = 'input window, operand 9, single buffered']
    #allocation18 [shape = 's32[1]{0}', space=sflag, size = 0x4, scoped, tag = 'scoped memory for tpu_custom_call.1']
    #allocation19 [shape = 'u8[8192]{0}', space=vmem, size = 0x2000, scoped, tag = 'input window, operand 10, single buffered']
    #allocation20 [shape = 'u8[512]{0}', space=vmem, size = 0x400, scoped, tag = 'input window, operand 11, single buffered']
    #allocation21 [shape = 's32[1]{0}', space=sflag, size = 0x4, scoped, tag = 'scoped memory for tpu_custom_call.1']
    #allocation22 [shape = 'u8[8192]{0}', space=vmem, size = 0x2000, scoped, tag = 'input window, operand 12, single buffered']
    #allocation23 [shape = 'u8[512]{0}', space=vmem, size = 0x400, scoped, tag = 'input window, operand 13, single buffered']
    #allocation24 [shape = 's32[1]{0}', space=sflag, size = 0x4, scoped, tag = 'scoped memory for tpu_custom_call.1']
    #allocation25 [shape = 'u8[16384]{0}', space=vmem, size = 0x4000, scoped, tag = 'input window, operand 14, single buffered']
    #allocation26 [shape = 'u8[512]{0}', space=vmem, size = 0x400, scoped, tag = 'input window, operand 15, single buffered']
    #allocation27 [shape = 's32[1]{0}', space=sflag, size = 0x4, scoped, tag = 'scoped memory for tpu_custom_call.1']
    #allocation28 [shape = 'u8[1536]{0}', space=vmem, size = 0x800, scoped, tag = 'input window, operand 16, single buffered']
    #allocation29 [shape = 'u8[1536]{0}', space=vmem, size = 0x800, scoped, tag = 'input window, operand 17, single buffered']
    #allocation30 [shape = 's32[1]{0}', space=sflag, size = 0x4, scoped, tag = 'scoped memory for tpu_custom_call.1']
    #allocation31 [shape = 'u8[8192]{0}', space=vmem, size = 0x2000, scoped, tag = 'output window, operand 0']
    %23 = vsyncpa [#allocation3], 0
    %s24 = scalar_lea.sflag [#allocation3], 1
    %25 = vsyncpa %s24, 0
    %26 = vsyncpa [#allocation6], 0
    %s27 = scalar_lea.sflag [#allocation6], 1
    %28 = vsyncpa %s27, 0
    %29 = vsyncpa [#allocation9], 0
    %s30 = scalar_lea.sflag [#allocation9], 1
    %31 = vsyncpa %s30, 0
    %32 = vsyncpa [#allocation12], 0
    %33 = vsyncpa [#allocation15], 0
    %34 = vsyncpa [#allocation18], 0
    %35 = vsyncpa [#allocation21], 0
    %36 = vsyncpa [#allocation24], 0
    %37 = vsyncpa [#allocation27], 0
    %38 = vsyncpa [#allocation30], 0
    %39 = vsyncpa [#allocation4], 0
    %s40 = scalar_lea.sflag [#allocation4], 1
    %41 = vsyncpa %s40, 0
    loop: start=0, step=1, limit=4
    $region2: #{tpu_custom_call.1} parent=1 // loop_pre_header
      _
    $region3: #{tpu_custom_call.1} parent=1 // loop_header
      %s43 = sphi 0, %s47
      %p44 = scmp.ge.s32.totalorder %s43, 4
      %s53 = sphi 0, %s55
      %s56 = sphi 0, %s53
      %s57 = sphi 0, %s56
      %s73 = sphi 0, %s57
      %s79 = sphi 0, %s81
      %s82 = sphi 0, %s79
      %s83 = sphi 0, %s82
      %s99 = sphi 0, %s83
      %s105 = sphi 0, %s107
      %s108 = sphi 0, %s105
      %s109 = sphi 0, %s108
      %s125 = sphi 0, %s109
      %s131 = sphi 0, %s133
      %s134 = sphi 0, %s131
      %s135 = sphi 0, %s134
      %s151 = sphi 0, %s135
      %s155 = sphi 0, %s155
      %s157 = sphi 0, %s155
      %s158 = sphi 0, %s157
      %s172 = sphi 0, %s158
      %s176 = sphi 0, %s176
      %s178 = sphi 0, %s176
      %s179 = sphi 0, %s178
      %s193 = sphi 0, %s179
      %s197 = sphi 0, %s197
      %s199 = sphi 0, %s197
      %s200 = sphi 0, %s199
      %s214 = sphi 0, %s200
      %s218 = sphi 0, %s218
      %s220 = sphi 0, %s218
      %s221 = sphi 0, %s220
      %s235 = sphi 0, %s221
      %s239 = sphi 0, %s239
      %s241 = sphi 0, %s239
      %s242 = sphi 0, %s241
      %s256 = sphi 0, %s242
      %s260 = sphi 0, %s260
      %s262 = sphi 0, %s260
      %s263 = sphi 0, %s262
      %s277 = sphi 0, %s263
      %s281 = sphi 0, %s281
      %s283 = sphi 0, %s281
      %s284 = sphi 0, %s283
      %s298 = sphi 0, %s284
      %s302 = sphi 0, %s302
      %s304 = sphi 0, %s302
      %s305 = sphi 0, %s304
      %s319 = sphi 0, %s305
      %s323 = sphi 0, %s323
      %s325 = sphi 0, %s323
      %s326 = sphi 0, %s325
      %s340 = sphi 0, %s326
      %s344 = sphi 0, %s344
      %s346 = sphi 0, %s344
      %s347 = sphi 0, %s346
      %s361 = sphi 0, %s347
      %s365 = sphi 0, %s365
      %s367 = sphi 0, %s365
      %s368 = sphi 0, %s367
      %s382 = sphi 0, %s368
      %s386 = sphi 0, %s386
      %s388 = sphi 0, %s386
      %s389 = sphi 0, %s388
      %s403 = sphi 0, %s389
      %s407 = sphi 0, %s407
      %s409 = sphi 0, %s407
      %s410 = sphi 0, %s409
      %s424 = sphi 0, %s410
      %s428 = sphi 0, %s428
      %s430 = sphi 0, %s428
      %s431 = sphi 0, %s430
      %s445 = sphi 0, %s431
      %s451 = sphi 0, %s453
      %s454 = sphi 0, %s451
      %s455 = sphi 0, %s454
      %s471 = sphi 0, %s455
    $region4: #{tpu_custom_call.1} parent=1 // loop_header_branch
      %46 = sbr.rel (%p44) target = $region8
    $region5: #{tpu_custom_call.1} parent=1 // loop_body
      %s48 = ssub.s32 %s43, 1
      %s49 = ssub.s32 %s43, 2
      %s50 = sadd.s32 %s43, 1
      %s51 = ssub.s32 %s43, %s50
      %p52 = scmp.eq.s32.totalorder %s51, 0
      %s54 = sadd.s32 %s53, 1
      %s55 = scalar_select %p52, %s53, %s54
      %p58 = pneg %p52
      %p59 = scmp.eq.s32.totalorder %s43, 1
      %p60 = por %p58, %p59
      %p61 = scmp.ne.s32.totalorder %s53, %s56
      %p62 = scmp.eq.s32.totalorder %s43, 0
      %p63 = por %p61, %p62
      %p64 = scmp.ne.s32.totalorder %s53, %s56
      %p65 = scmp.eq.s32.totalorder %s48, 1
      %p66 = por %p64, %p65
      %p67 = scmp.ne.s32.totalorder %s56, %s57
      %p68 = scmp.eq.s32.totalorder %s48, 0
      %p69 = por %p67, %p68
      %p70 = scmp.ne.s32.totalorder %s56, %s57
      %p71 = scmp.eq.s32.totalorder %s49, 1
      %p72 = por %p70, %p71
      %p74 = scmp.ne.s32.totalorder %s57, %s73
      %p75 = scmp.eq.s32.totalorder %s49, 0
      %p76 = por %p74, %p75
      %s77 = ssub.s32 %s43, %s50
      %p78 = scmp.eq.s32.totalorder %s77, 0
      %s80 = sadd.s32 %s79, 1
      %s81 = scalar_select %p78, %s79, %s80
      %p84 = pneg %p78
      %p85 = scmp.eq.s32.totalorder %s43, 1
      %p86 = por %p84, %p85
      %p87 = scmp.ne.s32.totalorder %s79, %s82
      %p88 = scmp.eq.s32.totalorder %s43, 0
      %p89 = por %p87, %p88
      %p90 = scmp.ne.s32.totalorder %s79, %s82
      %p91 = scmp.eq.s32.totalorder %s48, 1
      %p92 = por %p90, %p91
      %p93 = scmp.ne.s32.totalorder %s82, %s83
      %p94 = scmp.eq.s32.totalorder %s48, 0
      %p95 = por %p93, %p94
      %p96 = scmp.ne.s32.totalorder %s82, %s83
      %p97 = scmp.eq.s32.totalorder %s49, 1
      %p98 = por %p96, %p97
      %p100 = scmp.ne.s32.totalorder %s83, %s99
      %p101 = scmp.eq.s32.totalorder %s49, 0
      %p102 = por %p100, %p101
      %s103 = ssub.s32 %s43, %s50
      %p104 = scmp.eq.s32.totalorder %s103, 0
      %s106 = sadd.s32 %s105, 1
      %s107 = scalar_select %p104, %s105, %s106
      %p110 = pneg %p104
      %p111 = scmp.eq.s32.totalorder %s43, 1
      %p112 = por %p110, %p111
      %p113 = scmp.ne.s32.totalorder %s105, %s108
      %p114 = scmp.eq.s32.totalorder %s43, 0
      %p115 = por %p113, %p114
      %p116 = scmp.ne.s32.totalorder %s105, %s108
      %p117 = scmp.eq.s32.totalorder %s48, 1
      %p118 = por %p116, %p117
      %p119 = scmp.ne.s32.totalorder %s108, %s109
      %p120 = scmp.eq.s32.totalorder %s48, 0
      %p121 = por %p119, %p120
      %p122 = scmp.ne.s32.totalorder %s108, %s109
      %p123 = scmp.eq.s32.totalorder %s49, 1
      %p124 = por %p122, %p123
      %p126 = scmp.ne.s32.totalorder %s109, %s125
      %p127 = scmp.eq.s32.totalorder %s49, 0
      %p128 = por %p126, %p127
      %s129 = ssub.s32 %s43, %s50
      %p130 = scmp.eq.s32.totalorder %s129, 0
      %s132 = sadd.s32 %s131, 1
      %s133 = scalar_select %p130, %s131, %s132
      %p136 = pneg %p130
      %p137 = scmp.eq.s32.totalorder %s43, 1
      %p138 = por %p136, %p137
      %p139 = scmp.ne.s32.totalorder %s131, %s134
      %p140 = scmp.eq.s32.totalorder %s43, 0
      %p141 = por %p139, %p140
      %p142 = scmp.ne.s32.totalorder %s131, %s134
      %p143 = scmp.eq.s32.totalorder %s48, 1
      %p144 = por %p142, %p143
      %p145 = scmp.ne.s32.totalorder %s134, %s135
      %p146 = scmp.eq.s32.totalorder %s48, 0
      %p147 = por %p145, %p146
      %p148 = scmp.ne.s32.totalorder %s134, %s135
      %p149 = scmp.eq.s32.totalorder %s49, 1
      %p150 = por %p148, %p149
      %p152 = scmp.ne.s32.totalorder %s135, %s151
      %p153 = scmp.eq.s32.totalorder %s49, 0
      %p154 = por %p152, %p153
      %s156 = sadd.s32 %s155, 1
      %p159 = scmp.eq.s32.totalorder %s43, 1
      %p160 = scmp.ne.s32.totalorder %s155, %s157
      %p161 = scmp.eq.s32.totalorder %s43, 0
      %p162 = por %p160, %p161
      %p163 = scmp.ne.s32.totalorder %s155, %s157
      %p164 = scmp.eq.s32.totalorder %s48, 1
      %p165 = por %p163, %p164
      %p166 = scmp.ne.s32.totalorder %s157, %s158
      %p167 = scmp.eq.s32.totalorder %s48, 0
      %p168 = por %p166, %p167
      %p169 = scmp.ne.s32.totalorder %s157, %s158
      %p170 = scmp.eq.s32.totalorder %s49, 1
      %p171 = por %p169, %p170
      %p173 = scmp.ne.s32.totalorder %s158, %s172
      %p174 = scmp.eq.s32.totalorder %s49, 0
      %p175 = por %p173, %p174
      %s177 = sadd.s32 %s176, 1
      %p180 = scmp.eq.s32.totalorder %s43, 1
      %p181 = scmp.ne.s32.totalorder %s176, %s178
      %p182 = scmp.eq.s32.totalorder %s43, 0
      %p183 = por %p181, %p182
      %p184 = scmp.ne.s32.totalorder %s176, %s178
      %p185 = scmp.eq.s32.totalorder %s48, 1
      %p186 = por %p184, %p185
      %p187 = scmp.ne.s32.totalorder %s178, %s179
      %p188 = scmp.eq.s32.totalorder %s48, 0
      %p189 = por %p187, %p188
      %p190 = scmp.ne.s32.totalorder %s178, %s179
      %p191 = scmp.eq.s32.totalorder %s49, 1
      %p192 = por %p190, %p191
      %p194 = scmp.ne.s32.totalorder %s179, %s193
      %p195 = scmp.eq.s32.totalorder %s49, 0
      %p196 = por %p194, %p195
      %s198 = sadd.s32 %s197, 1
      %p201 = scmp.eq.s32.totalorder %s43, 1
      %p202 = scmp.ne.s32.totalorder %s197, %s199
      %p203 = scmp.eq.s32.totalorder %s43, 0
      %p204 = por %p202, %p203
      %p205 = scmp.ne.s32.totalorder %s197, %s199
      %p206 = scmp.eq.s32.totalorder %s48, 1
      %p207 = por %p205, %p206
      %p208 = scmp.ne.s32.totalorder %s199, %s200
      %p209 = scmp.eq.s32.totalorder %s48, 0
      %p210 = por %p208, %p209
      %p211 = scmp.ne.s32.totalorder %s199, %s200
      %p212 = scmp.eq.s32.totalorder %s49, 1
      %p213 = por %p211, %p212
      %p215 = scmp.ne.s32.totalorder %s200, %s214
      %p216 = scmp.eq.s32.totalorder %s49, 0
      %p217 = por %p215, %p216
      %s219 = sadd.s32 %s218, 1
      %p222 = scmp.eq.s32.totalorder %s43, 1
      %p223 = scmp.ne.s32.totalorder %s218, %s220
      %p224 = scmp.eq.s32.totalorder %s43, 0
      %p225 = por %p223, %p224
      %p226 = scmp.ne.s32.totalorder %s218, %s220
      %p227 = scmp.eq.s32.totalorder %s48, 1
      %p228 = por %p226, %p227
      %p229 = scmp.ne.s32.totalorder %s220, %s221
      %p230 = scmp.eq.s32.totalorder %s48, 0
      %p231 = por %p229, %p230
      %p232 = scmp.ne.s32.totalorder %s220, %s221
      %p233 = scmp.eq.s32.totalorder %s49, 1
      %p234 = por %p232, %p233
      %p236 = scmp.ne.s32.totalorder %s221, %s235
      %p237 = scmp.eq.s32.totalorder %s49, 0
      %p238 = por %p236, %p237
      %s240 = sadd.s32 %s239, 1
      %p243 = scmp.eq.s32.totalorder %s43, 1
      %p244 = scmp.ne.s32.totalorder %s239, %s241
      %p245 = scmp.eq.s32.totalorder %s43, 0
      %p246 = por %p244, %p245
      %p247 = scmp.ne.s32.totalorder %s239, %s241
      %p248 = scmp.eq.s32.totalorder %s48, 1
      %p249 = por %p247, %p248
      %p250 = scmp.ne.s32.totalorder %s241, %s242
      %p251 = scmp.eq.s32.totalorder %s48, 0
      %p252 = por %p250, %p251
      %p253 = scmp.ne.s32.totalorder %s241, %s242
      %p254 = scmp.eq.s32.totalorder %s49, 1
      %p255 = por %p253, %p254
      %p257 = scmp.ne.s32.totalorder %s242, %s256
      %p258 = scmp.eq.s32.totalorder %s49, 0
      %p259 = por %p257, %p258
      %s261 = sadd.s32 %s260, 1
      %p264 = scmp.eq.s32.totalorder %s43, 1
      %p265 = scmp.ne.s32.totalorder %s260, %s262
      %p266 = scmp.eq.s32.totalorder %s43, 0
      %p267 = por %p265, %p266
      %p268 = scmp.ne.s32.totalorder %s260, %s262
      %p269 = scmp.eq.s32.totalorder %s48, 1
      %p270 = por %p268, %p269
      %p271 = scmp.ne.s32.totalorder %s262, %s263
      %p272 = scmp.eq.s32.totalorder %s48, 0
      %p273 = por %p271, %p272
      %p274 = scmp.ne.s32.totalorder %s262, %s263
      %p275 = scmp.eq.s32.totalorder %s49, 1
      %p276 = por %p274, %p275
      %p278 = scmp.ne.s32.totalorder %s263, %s277
      %p279 = scmp.eq.s32.totalorder %s49, 0
      %p280 = por %p278, %p279
      %s282 = sadd.s32 %s281, 1
      %p285 = scmp.eq.s32.totalorder %s43, 1
      %p286 = scmp.ne.s32.totalorder %s281, %s283
      %p287 = scmp.eq.s32.totalorder %s43, 0
      %p288 = por %p286, %p287
      %p289 = scmp.ne.s32.totalorder %s281, %s283
      %p290 = scmp.eq.s32.totalorder %s48, 1
      %p291 = por %p289, %p290
      %p292 = scmp.ne.s32.totalorder %s283, %s284
      %p293 = scmp.eq.s32.totalorder %s48, 0
      %p294 = por %p292, %p293
      %p295 = scmp.ne.s32.totalorder %s283, %s284
      %p296 = scmp.eq.s32.totalorder %s49, 1
      %p297 = por %p295, %p296
      %p299 = scmp.ne.s32.totalorder %s284, %s298
      %p300 = scmp.eq.s32.totalorder %s49, 0
      %p301 = por %p299, %p300
      %s303 = sadd.s32 %s302, 1
      %p306 = scmp.eq.s32.totalorder %s43, 1
      %p307 = scmp.ne.s32.totalorder %s302, %s304
      %p308 = scmp.eq.s32.totalorder %s43, 0
      %p309 = por %p307, %p308
      %p310 = scmp.ne.s32.totalorder %s302, %s304
      %p311 = scmp.eq.s32.totalorder %s48, 1
      %p312 = por %p310, %p311
      %p313 = scmp.ne.s32.totalorder %s304, %s305
      %p314 = scmp.eq.s32.totalorder %s48, 0
      %p315 = por %p313, %p314
      %p316 = scmp.ne.s32.totalorder %s304, %s305
      %p317 = scmp.eq.s32.totalorder %s49, 1
      %p318 = por %p316, %p317
      %p320 = scmp.ne.s32.totalorder %s305, %s319
      %p321 = scmp.eq.s32.totalorder %s49, 0
      %p322 = por %p320, %p321
      %s324 = sadd.s32 %s323, 1
      %p327 = scmp.eq.s32.totalorder %s43, 1
      %p328 = scmp.ne.s32.totalorder %s323, %s325
      %p329 = scmp.eq.s32.totalorder %s43, 0
      %p330 = por %p328, %p329
      %p331 = scmp.ne.s32.totalorder %s323, %s325
      %p332 = scmp.eq.s32.totalorder %s48, 1
      %p333 = por %p331, %p332
      %p334 = scmp.ne.s32.totalorder %s325, %s326
      %p335 = scmp.eq.s32.totalorder %s48, 0
      %p336 = por %p334, %p335
      %p337 = scmp.ne.s32.totalorder %s325, %s326
      %p338 = scmp.eq.s32.totalorder %s49, 1
      %p339 = por %p337, %p338
      %p341 = scmp.ne.s32.totalorder %s326, %s340
      %p342 = scmp.eq.s32.totalorder %s49, 0
      %p343 = por %p341, %p342
      %s345 = sadd.s32 %s344, 1
      %p348 = scmp.eq.s32.totalorder %s43, 1
      %p349 = scmp.ne.s32.totalorder %s344, %s346
      %p350 = scmp.eq.s32.totalorder %s43, 0
      %p351 = por %p349, %p350
      %p352 = scmp.ne.s32.totalorder %s344, %s346
      %p353 = scmp.eq.s32.totalorder %s48, 1
      %p354 = por %p352, %p353
      %p355 = scmp.ne.s32.totalorder %s346, %s347
      %p356 = scmp.eq.s32.totalorder %s48, 0
      %p357 = por %p355, %p356
      %p358 = scmp.ne.s32.totalorder %s346, %s347
      %p359 = scmp.eq.s32.totalorder %s49, 1
      %p360 = por %p358, %p359
      %p362 = scmp.ne.s32.totalorder %s347, %s361
      %p363 = scmp.eq.s32.totalorder %s49, 0
      %p364 = por %p362, %p363
      %s366 = sadd.s32 %s365, 1
      %p369 = scmp.eq.s32.totalorder %s43, 1
      %p370 = scmp.ne.s32.totalorder %s365, %s367
      %p371 = scmp.eq.s32.totalorder %s43, 0
      %p372 = por %p370, %p371
      %p373 = scmp.ne.s32.totalorder %s365, %s367
      %p374 = scmp.eq.s32.totalorder %s48, 1
      %p375 = por %p373, %p374
      %p376 = scmp.ne.s32.totalorder %s367, %s368
      %p377 = scmp.eq.s32.totalorder %s48, 0
      %p378 = por %p376, %p377
      %p379 = scmp.ne.s32.totalorder %s367, %s368
      %p380 = scmp.eq.s32.totalorder %s49, 1
      %p381 = por %p379, %p380
      %p383 = scmp.ne.s32.totalorder %s368, %s382
      %p384 = scmp.eq.s32.totalorder %s49, 0
      %p385 = por %p383, %p384
      %s387 = sadd.s32 %s386, 1
      %p390 = scmp.eq.s32.totalorder %s43, 1
      %p391 = scmp.ne.s32.totalorder %s386, %s388
      %p392 = scmp.eq.s32.totalorder %s43, 0
      %p393 = por %p391, %p392
      %p394 = scmp.ne.s32.totalorder %s386, %s388
      %p395 = scmp.eq.s32.totalorder %s48, 1
      %p396 = por %p394, %p395
      %p397 = scmp.ne.s32.totalorder %s388, %s389
      %p398 = scmp.eq.s32.totalorder %s48, 0
      %p399 = por %p397, %p398
      %p400 = scmp.ne.s32.totalorder %s388, %s389
      %p401 = scmp.eq.s32.totalorder %s49, 1
      %p402 = por %p400, %p401
      %p404 = scmp.ne.s32.totalorder %s389, %s403
      %p405 = scmp.eq.s32.totalorder %s49, 0
      %p406 = por %p404, %p405
      %s408 = sadd.s32 %s407, 1
      %p411 = scmp.eq.s32.totalorder %s43, 1
      %p412 = scmp.ne.s32.totalorder %s407, %s409
      %p413 = scmp.eq.s32.totalorder %s43, 0
      %p414 = por %p412, %p413
      %p415 = scmp.ne.s32.totalorder %s407, %s409
      %p416 = scmp.eq.s32.totalorder %s48, 1
      %p417 = por %p415, %p416
      %p418 = scmp.ne.s32.totalorder %s409, %s410
      %p419 = scmp.eq.s32.totalorder %s48, 0
      %p420 = por %p418, %p419
      %p421 = scmp.ne.s32.totalorder %s409, %s410
      %p422 = scmp.eq.s32.totalorder %s49, 1
      %p423 = por %p421, %p422
      %p425 = scmp.ne.s32.totalorder %s410, %s424
      %p426 = scmp.eq.s32.totalorder %s49, 0
      %p427 = por %p425, %p426
      %s429 = sadd.s32 %s428, 1
      %p432 = scmp.eq.s32.totalorder %s43, 1
      %p433 = scmp.ne.s32.totalorder %s428, %s430
      %p434 = scmp.eq.s32.totalorder %s43, 0
      %p435 = por %p433, %p434
      %p436 = scmp.ne.s32.totalorder %s428, %s430
      %p437 = scmp.eq.s32.totalorder %s48, 1
      %p438 = por %p436, %p437
      %p439 = scmp.ne.s32.totalorder %s430, %s431
      %p440 = scmp.eq.s32.totalorder %s48, 0
      %p441 = por %p439, %p440
      %p442 = scmp.ne.s32.totalorder %s430, %s431
      %p443 = scmp.eq.s32.totalorder %s49, 1
      %p444 = por %p442, %p443
      %p446 = scmp.ne.s32.totalorder %s431, %s445
      %p447 = scmp.eq.s32.totalorder %s49, 0
      %p448 = por %p446, %p447
      %s449 = ssub.s32 %s43, %s50
      %p450 = scmp.eq.s32.totalorder %s449, 0
      %s452 = sadd.s32 %s451, 1
      %s453 = scalar_select %p450, %s451, %s452
      %p456 = pneg %p450
      %p457 = scmp.eq.s32.totalorder %s43, 1
      %p458 = por %p456, %p457
      %p459 = scmp.ne.s32.totalorder %s451, %s454
      %p460 = scmp.eq.s32.totalorder %s43, 0
      %p461 = por %p459, %p460
      %p462 = scmp.ne.s32.totalorder %s451, %s454
      %p463 = scmp.eq.s32.totalorder %s48, 1
      %p464 = por %p462, %p463
      %p465 = scmp.ne.s32.totalorder %s454, %s455
      %p466 = scmp.eq.s32.totalorder %s48, 0
      %p467 = por %p465, %p466
      %p468 = scmp.ne.s32.totalorder %s454, %s455
      %p469 = scmp.eq.s32.totalorder %s49, 1
      %p470 = por %p468, %p469
      %p472 = scmp.ne.s32.totalorder %s455, %s471
      %p473 = scmp.eq.s32.totalorder %s49, 0
      %p474 = por %p472, %p473
      %p475 = scmp.le.s32.totalorder 1, %s43
      %p476 = scmp.lt.s32.totalorder %s43, 3
      %p477 = pnand %p475, %p476
      %p478 = pneg %p477
      // Predicated region
      $region9: #{tpu_custom_call.1} parent=5 // pred_check
        _
      $region10: #{tpu_custom_call.1} parent=5 // pred_check_branch
        %480 = sbr.rel (%p477) target = $region12
      $region11: #{tpu_custom_call.1} parent=5 // pred_region
        %s481 = ssub.s32 %s43, 1
        // Predicated region
        $region13: #{tpu_custom_call.1} parent=11 // pred_check
          %p482 = pneg %p168
        $region14: #{tpu_custom_call.1} parent=11 // pred_check_branch
          %484 = sbr.rel (%p482) target = $region16
        $region15: #{tpu_custom_call.1} parent=11 // pred_region
          %s486 = ssub.s32 3072, 3072
          %487 = vsyncadd [#allocation9], %s486
          %s488 = sshll.u32 [#allocation10], 4
          %s489 = int_to_ptr.vmem [resolvable:$true] %s488
          %494 = dma.hbm_to_vmem [thread:$0]  %s4, 3072, %s489, [#allocation9], 64, 64, 4
        $region16: #{tpu_custom_call.1} parent=11 // pred_fallthru
          _
        // Predicated region
        $region17: #{tpu_custom_call.1} parent=11 // pred_check
          %p495 = pneg %p189
        $region18: #{tpu_custom_call.1} parent=11 // pred_check_branch
          %497 = sbr.rel (%p495) target = $region20
        $region19: #{tpu_custom_call.1} parent=11 // pred_region
          %s499 = ssub.s32 192, 192
          %500 = vsyncadd [#allocation12], %s499
          %s501 = sshll.u32 [#allocation11], 4
          %s502 = int_to_ptr.vmem [resolvable:$true] %s501
          %507 = dma.hbm_to_vmem [thread:$0]  %s5, 192, %s502, [#allocation12], 16, 16, 1
        $region20: #{tpu_custom_call.1} parent=11 // pred_fallthru
          _
        // Predicated region
        $region21: #{tpu_custom_call.1} parent=11 // pred_check
          %p508 = pneg %p210
        $region22: #{tpu_custom_call.1} parent=11 // pred_check_branch
          %510 = sbr.rel (%p508) target = $region24
        $region23: #{tpu_custom_call.1} parent=11 // pred_region
          %s512 = ssub.s32 256, 256
          %513 = vsyncadd [#allocation12], %s512
          %s514 = sshll.u32 [#allocation13], 4
          %s515 = int_to_ptr.vmem [resolvable:$true] %s514
          %520 = dma.hbm_to_vmem [thread:$0]  %s6, 256, %s515, [#allocation12], 64, 64, 4
        $region24: #{tpu_custom_call.1} parent=11 // pred_fallthru
          _
        // Predicated region
        $region25: #{tpu_custom_call.1} parent=11 // pred_check
          %p521 = pneg %p231
        $region26: #{tpu_custom_call.1} parent=11 // pred_check_branch
          %523 = sbr.rel (%p521) target = $region28
        $region27: #{tpu_custom_call.1} parent=11 // pred_region
          %s525 = ssub.s32 16, 16
          %526 = vsyncadd [#allocation15], %s525
          %s528 = sshll.u32 [#allocation14], 4
          %s529 = int_to_ptr.vmem [resolvable:$true] %s528
          %531 = dma.hbm_to_vmem [thread:$0]  %s7, 16, %s529, [#allocation15]
        $region28: #{tpu_custom_call.1} parent=11 // pred_fallthru
          _
        // Predicated region
        $region29: #{tpu_custom_call.1} parent=11 // pred_check
          %p532 = pneg %p252
        $region30: #{tpu_custom_call.1} parent=11 // pred_check_branch
          %534 = sbr.rel (%p532) target = $region32
        $region31: #{tpu_custom_call.1} parent=11 // pred_region
          %s536 = ssub.s32 3072, 3072
          %537 = vsyncadd [#allocation15], %s536
          %s538 = sshll.u32 [#allocation16], 4
          %s539 = int_to_ptr.vmem [resolvable:$true] %s538
          %544 = dma.hbm_to_vmem [thread:$0]  %s8, 3072, %s539, [#allocation15], 64, 64, 4
        $region32: #{tpu_custom_call.1} parent=11 // pred_fallthru
          _
        // Predicated region
        $region33: #{tpu_custom_call.1} parent=11 // pred_check
          %p545 = pneg %p273
        $region34: #{tpu_custom_call.1} parent=11 // pred_check_branch
          %547 = sbr.rel (%p545) target = $region36
        $region35: #{tpu_custom_call.1} parent=11 // pred_region
          %s549 = ssub.s32 192, 192
          %550 = vsyncadd [#allocation18], %s549
          %s551 = sshll.u32 [#allocation17], 4
          %s552 = int_to_ptr.vmem [resolvable:$true] %s551
          %557 = dma.hbm_to_vmem [thread:$0]  %s9, 192, %s552, [#allocation18], 16, 16, 1
        $region36: #{tpu_custom_call.1} parent=11 // pred_fallthru
          _
        // Predicated region
        $region37: #{tpu_custom_call.1} parent=11 // pred_check
          %p558 = pneg %p294
        $region38: #{tpu_custom_call.1} parent=11 // pred_check_branch
          %560 = sbr.rel (%p558) target = $region40
        $region39: #{tpu_custom_call.1} parent=11 // pred_region
          %s562 = ssub.s32 256, 256
          %563 = vsyncadd [#allocation18], %s562
          %s564 = sshll.u32 [#allocation19], 4
          %s565 = int_to_ptr.vmem [resolvable:$true] %s564
          %570 = dma.hbm_to_vmem [thread:$0]  %s10, 256, %s565, [#allocation18], 64, 64, 4
        $region40: #{tpu_custom_call.1} parent=11 // pred_fallthru
          _
        // Predicated region
        $region41: #{tpu_custom_call.1} parent=11 // pred_check
          %p571 = pneg %p315
        $region42: #{tpu_custom_call.1} parent=11 // pred_check_branch
          %573 = sbr.rel (%p571) target = $region44
        $region43: #{tpu_custom_call.1} parent=11 // pred_region
          %s575 = ssub.s32 16, 16
          %576 = vsyncadd [#allocation21], %s575
          %s578 = sshll.u32 [#allocation20], 4
          %s579 = int_to_ptr.vmem [resolvable:$true] %s578
          %581 = dma.hbm_to_vmem [thread:$0]  %s11, 16, %s579, [#allocation21]
        $region44: #{tpu_custom_call.1} parent=11 // pred_fallthru
          _
        // Predicated region
        $region45: #{tpu_custom_call.1} parent=11 // pred_check
          %p582 = pneg %p336
        $region46: #{tpu_custom_call.1} parent=11 // pred_check_branch
          %584 = sbr.rel (%p582) target = $region48
        $region47: #{tpu_custom_call.1} parent=11 // pred_region
          %s586 = ssub.s32 256, 256
          %587 = vsyncadd [#allocation21], %s586
          %s588 = sshll.u32 [#allocation22], 4
          %s589 = int_to_ptr.vmem [resolvable:$true] %s588
          %594 = dma.hbm_to_vmem [thread:$0]  %s12, 256, %s589, [#allocation21], 64, 64, 4
        $region48: #{tpu_custom_call.1} parent=11 // pred_fallthru
          _
        // Predicated region
        $region49: #{tpu_custom_call.1} parent=11 // pred_check
          %p595 = pneg %p357
        $region50: #{tpu_custom_call.1} parent=11 // pred_check_branch
          %597 = sbr.rel (%p595) target = $region52
        $region51: #{tpu_custom_call.1} parent=11 // pred_region
          %s599 = ssub.s32 16, 16
          %600 = vsyncadd [#allocation24], %s599
          %s602 = sshll.u32 [#allocation23], 4
          %s603 = int_to_ptr.vmem [resolvable:$true] %s602
          %605 = dma.hbm_to_vmem [thread:$0]  %s13, 16, %s603, [#allocation24]
        $region52: #{tpu_custom_call.1} parent=11 // pred_fallthru
          _
        // Predicated region
        $region53: #{tpu_custom_call.1} parent=11 // pred_check
          %p606 = pneg %p378
        $region54: #{tpu_custom_call.1} parent=11 // pred_check_branch
          %608 = sbr.rel (%p606) target = $region56
        $region55: #{tpu_custom_call.1} parent=11 // pred_region
          %s610 = ssub.s32 512, 512
          %611 = vsyncadd [#allocation24], %s610
          %s612 = sshll.u32 [#allocation25], 4
          %s613 = int_to_ptr.vmem [resolvable:$true] %s612
          %618 = dma.hbm_to_vmem [thread:$0]  %s14, 512, %s613, [#allocation24], 64, 64, 4
        $region56: #{tpu_custom_call.1} parent=11 // pred_fallthru
          _
        // Predicated region
        $region57: #{tpu_custom_call.1} parent=11 // pred_check
          %p619 = pneg %p399
        $region58: #{tpu_custom_call.1} parent=11 // pred_check_branch
          %621 = sbr.rel (%p619) target = $region60
        $region59: #{tpu_custom_call.1} parent=11 // pred_region
          %s623 = ssub.s32 16, 16
          %624 = vsyncadd [#allocation27], %s623
          %s626 = sshll.u32 [#allocation26], 4
          %s627 = int_to_ptr.vmem [resolvable:$true] %s626
          %629 = dma.hbm_to_vmem [thread:$0]  %s15, 16, %s627, [#allocation27]
        $region60: #{tpu_custom_call.1} parent=11 // pred_fallthru
          _
        // Predicated region
        $region61: #{tpu_custom_call.1} parent=11 // pred_check
          %p630 = pneg %p420
        $region62: #{tpu_custom_call.1} parent=11 // pred_check_branch
          %632 = sbr.rel (%p630) target = $region64
        $region63: #{tpu_custom_call.1} parent=11 // pred_region
          %s634 = ssub.s32 48, 48
          %635 = vsyncadd [#allocation27], %s634
          %s636 = sshll.u32 [#allocation28], 4
          %s637 = int_to_ptr.vmem [resolvable:$true] %s636
          %642 = dma.hbm_to_vmem [thread:$0]  %s16, 48, %s637, [#allocation27], 16, 16, 1
        $region64: #{tpu_custom_call.1} parent=11 // pred_fallthru
          _
        // Predicated region
        $region65: #{tpu_custom_call.1} parent=11 // pred_check
          %p643 = pneg %p441
        $region66: #{tpu_custom_call.1} parent=11 // pred_check_branch
          %645 = sbr.rel (%p643) target = $region68
        $region67: #{tpu_custom_call.1} parent=11 // pred_region
          %s647 = ssub.s32 48, 48
          %648 = vsyncadd [#allocation30], %s647
          %s649 = sshll.u32 [#allocation29], 4
          %s650 = int_to_ptr.vmem [resolvable:$true] %s649
          %655 = dma.hbm_to_vmem [thread:$0]  %s17, 48, %s650, [#allocation30], 16, 16, 1
        $region68: #{tpu_custom_call.1} parent=11 // pred_fallthru
          _
      $region12: #{tpu_custom_call.1} parent=5 // pred_fallthru
        _
      %p656 = scmp.lt.s32.totalorder %s43, 2
      // Predicated region
      $region69: #{tpu_custom_call.1} parent=5 // pred_check
        %p657 = pneg %p656
      $region70: #{tpu_custom_call.1} parent=5 // pred_check_branch
        %659 = sbr.rel (%p657) target = $region72
      $region71: #{tpu_custom_call.1} parent=5 // pred_region
        // Predicated region
        $region73: #{tpu_custom_call.1} parent=71 // pred_check
          %p660 = pneg %p63
        $region74: #{tpu_custom_call.1} parent=71 // pred_check_branch
          %662 = sbr.rel (%p660) target = $region76
        $region75: #{tpu_custom_call.1} parent=71 // pred_region
          %s663 = sand.u32 %s53, 1
          %s664 = scalar_lea.sflag [#allocation3], %s663
          %s665 = sand.u32 %s53, 1
          %s666 = smul.addr %s665, 8
          %s667 = scalar_lea.vmem [#allocation2], %s666
          %s669 = ssub.s32 128, 128
          %670 = vsyncadd %s664, %s669
          %s671 = smul.addr %s43, 128
          %s672 = scalar_lea.hbm %s0, %s671
          %s674 = sshll.u32 %s667, 4
          %s675 = int_to_ptr.vmem [resolvable:$true] %s674
          %677 = dma.hbm_to_vmem [thread:$0]  %s672, 128, %s675, %s664
        $region76: #{tpu_custom_call.1} parent=71 // pred_fallthru
          _
        // Predicated region
        $region77: #{tpu_custom_call.1} parent=71 // pred_check
          %p678 = pneg %p89
        $region78: #{tpu_custom_call.1} parent=71 // pred_check_branch
          %680 = sbr.rel (%p678) target = $region80
        $region79: #{tpu_custom_call.1} parent=71 // pred_region
          %s681 = sand.u32 %s43, 1
          %s682 = scalar_lea.sflag [#allocation6], %s681
          %s683 = sand.u32 %s79, 1
          %s684 = smul.addr %s683, 8
          %s685 = scalar_lea.vmem [#allocation5], %s684
          %s687 = ssub.s32 128, 128
          %688 = vsyncadd %s682, %s687
          %s689 = smul.addr %s43, 128
          %s690 = scalar_lea.hbm %s1, %s689
          %s692 = sshll.u32 %s685, 4
          %s693 = int_to_ptr.vmem [resolvable:$true] %s692
          %695 = dma.hbm_to_vmem [thread:$0]  %s690, 128, %s693, %s682
        $region80: #{tpu_custom_call.1} parent=71 // pred_fallthru
          _
        // Predicated region
        $region81: #{tpu_custom_call.1} parent=71 // pred_check
          %p696 = pneg %p115
        $region82: #{tpu_custom_call.1} parent=71 // pred_check_branch
          %698 = sbr.rel (%p696) target = $region84
        $region83: #{tpu_custom_call.1} parent=71 // pred_region
          %s699 = sand.u32 %s43, 1
          %s700 = scalar_lea.sflag [#allocation6], %s699
          %s701 = sand.u32 %s105, 1
          %s702 = smul.addr %s701, 8
          %s703 = scalar_lea.vmem [#allocation7], %s702
          %s705 = ssub.s32 128, 128
          %706 = vsyncadd %s700, %s705
          %s707 = smul.addr %s43, 128
          %s708 = scalar_lea.hbm %s2, %s707
          %s710 = sshll.u32 %s703, 4
          %s711 = int_to_ptr.vmem [resolvable:$true] %s710
          %713 = dma.hbm_to_vmem [thread:$0]  %s708, 128, %s711, %s700
        $region84: #{tpu_custom_call.1} parent=71 // pred_fallthru
          _
        // Predicated region
        $region85: #{tpu_custom_call.1} parent=71 // pred_check
          %p714 = pneg %p141
        $region86: #{tpu_custom_call.1} parent=71 // pred_check_branch
          %716 = sbr.rel (%p714) target = $region88
        $region87: #{tpu_custom_call.1} parent=71 // pred_region
          %s717 = sand.u32 %s43, 1
          %s718 = scalar_lea.sflag [#allocation9], %s717
          %s719 = sand.u32 %s131, 1
          %s720 = smul.addr %s719, 8
          %s721 = scalar_lea.vmem [#allocation8], %s720
          %s723 = ssub.s32 128, 128
          %724 = vsyncadd %s718, %s723
          %s725 = smul.addr %s43, 128
          %s726 = scalar_lea.hbm %s3, %s725
          %s728 = sshll.u32 %s721, 4
          %s729 = int_to_ptr.vmem [resolvable:$true] %s728
          %731 = dma.hbm_to_vmem [thread:$0]  %s726, 128, %s729, %s718
        $region88: #{tpu_custom_call.1} parent=71 // pred_fallthru
          _
      $region72: #{tpu_custom_call.1} parent=5 // pred_fallthru
        _
      %p732 = scmp.le.s32.totalorder 1, %s43
      %p733 = scmp.lt.s32.totalorder %s43, 3
      %p734 = pnand %p732, %p733
      %p735 = pneg %p734
      // Predicated region
      $region89: #{tpu_custom_call.1} parent=5 // pred_check
        _
      $region90: #{tpu_custom_call.1} parent=5 // pred_check_branch
        %737 = sbr.rel (%p734) target = $region92
      $region91: #{tpu_custom_call.1} parent=5 // pred_region
        %s738 = ssub.s32 %s43, 1
        %s739 = sand.u32 %s56, 1
        %s740 = scalar_lea.sflag [#allocation3], %s739
        %s741 = sand.u32 %s56, 1
        %s742 = smul.addr %s741, 8
        %s743 = scalar_lea.vmem [#allocation2], %s742
        // Predicated region
        $region93: #{tpu_custom_call.1} parent=91 // pred_check
          %p744 = pneg %p69
        $region94: #{tpu_custom_call.1} parent=91 // pred_check_branch
          %746 = sbr.rel (%p744) target = $region96
        $region95: #{tpu_custom_call.1} parent=91 // pred_region
          %747 = dma.done %s740, 128
        $region96: #{tpu_custom_call.1} parent=91 // pred_fallthru
          _
        %s748 = sand.u32 %s48, 1
        %s749 = scalar_lea.sflag [#allocation6], %s748
        %s750 = sand.u32 %s82, 1
        %s751 = smul.addr %s750, 8
        %s752 = scalar_lea.vmem [#allocation5], %s751
        // Predicated region
        $region97: #{tpu_custom_call.1} parent=91 // pred_check
          %p753 = pneg %p95
        $region98: #{tpu_custom_call.1} parent=91 // pred_check_branch
          %755 = sbr.rel (%p753) target = $region100
        $region99: #{tpu_custom_call.1} parent=91 // pred_region
          %756 = dma.done %s749, 128
        $region100: #{tpu_custom_call.1} parent=91 // pred_fallthru
          _
        %s757 = sand.u32 %s48, 1
        %s758 = scalar_lea.sflag [#allocation6], %s757
        %s759 = sand.u32 %s108, 1
        %s760 = smul.addr %s759, 8
        %s761 = scalar_lea.vmem [#allocation7], %s760
        // Predicated region
        $region101: #{tpu_custom_call.1} parent=91 // pred_check
          %p762 = pneg %p121
        $region102: #{tpu_custom_call.1} parent=91 // pred_check_branch
          %764 = sbr.rel (%p762) target = $region104
        $region103: #{tpu_custom_call.1} parent=91 // pred_region
          %765 = dma.done %s758, 128
        $region104: #{tpu_custom_call.1} parent=91 // pred_fallthru
          _
        %s766 = sand.u32 %s48, 1
        %s767 = scalar_lea.sflag [#allocation9], %s766
        %s768 = sand.u32 %s134, 1
        %s769 = smul.addr %s768, 8
        %s770 = scalar_lea.vmem [#allocation8], %s769
        // Predicated region
        $region105: #{tpu_custom_call.1} parent=91 // pred_check
          %p771 = pneg %p147
        $region106: #{tpu_custom_call.1} parent=91 // pred_check_branch
          %773 = sbr.rel (%p771) target = $region108
        $region107: #{tpu_custom_call.1} parent=91 // pred_region
          %774 = dma.done %s767, 128
        $region108: #{tpu_custom_call.1} parent=91 // pred_fallthru
          _
        // Predicated region
        $region109: #{tpu_custom_call.1} parent=91 // pred_check
          %p775 = pneg %p168
        $region110: #{tpu_custom_call.1} parent=91 // pred_check_branch
          %777 = sbr.rel (%p775) target = $region112
        $region111: #{tpu_custom_call.1} parent=91 // pred_region
          %778 = dma.done [#allocation9], 3072
        $region112: #{tpu_custom_call.1} parent=91 // pred_fallthru
          _
        // Predicated region
        $region113: #{tpu_custom_call.1} parent=91 // pred_check
          %p779 = pneg %p189
        $region114: #{tpu_custom_call.1} parent=91 // pred_check_branch
          %781 = sbr.rel (%p779) target = $region116
        $region115: #{tpu_custom_call.1} parent=91 // pred_region
          %782 = dma.done [#allocation12], 192
        $region116: #{tpu_custom_call.1} parent=91 // pred_fallthru
          _
        // Predicated region
        $region117: #{tpu_custom_call.1} parent=91 // pred_check
          %p783 = pneg %p210
        $region118: #{tpu_custom_call.1} parent=91 // pred_check_branch
          %785 = sbr.rel (%p783) target = $region120
        $region119: #{tpu_custom_call.1} parent=91 // pred_region
          %786 = dma.done [#allocation12], 256
        $region120: #{tpu_custom_call.1} parent=91 // pred_fallthru
          _
        // Predicated region
        $region121: #{tpu_custom_call.1} parent=91 // pred_check
          %p787 = pneg %p231
        $region122: #{tpu_custom_call.1} parent=91 // pred_check_branch
          %789 = sbr.rel (%p787) target = $region124
        $region123: #{tpu_custom_call.1} parent=91 // pred_region
          %790 = dma.done [#allocation15], 16
        $region124: #{tpu_custom_call.1} parent=91 // pred_fallthru
          _
        // Predicated region
        $region125: #{tpu_custom_call.1} parent=91 // pred_check
          %p791 = pneg %p252
        $region126: #{tpu_custom_call.1} parent=91 // pred_check_branch
          %793 = sbr.rel (%p791) target = $region128
        $region127: #{tpu_custom_call.1} parent=91 // pred_region
          %794 = dma.done [#allocation15], 3072
        $region128: #{tpu_custom_call.1} parent=91 // pred_fallthru
          _
        // Predicated region
        $region129: #{tpu_custom_call.1} parent=91 // pred_check
          %p795 = pneg %p273
        $region130: #{tpu_custom_call.1} parent=91 // pred_check_branch
          %797 = sbr.rel (%p795) target = $region132
        $region131: #{tpu_custom_call.1} parent=91 // pred_region
          %798 = dma.done [#allocation18], 192
        $region132: #{tpu_custom_call.1} parent=91 // pred_fallthru
          _
        // Predicated region
        $region133: #{tpu_custom_call.1} parent=91 // pred_check
          %p799 = pneg %p294
        $region134: #{tpu_custom_call.1} parent=91 // pred_check_branch
          %801 = sbr.rel (%p799) target = $region136
        $region135: #{tpu_custom_call.1} parent=91 // pred_region
          %802 = dma.done [#allocation18], 256
        $region136: #{tpu_custom_call.1} parent=91 // pred_fallthru
          _
        // Predicated region
        $region137: #{tpu_custom_call.1} parent=91 // pred_check
          %p803 = pneg %p315
        $region138: #{tpu_custom_call.1} parent=91 // pred_check_branch
          %805 = sbr.rel (%p803) target = $region140
        $region139: #{tpu_custom_call.1} parent=91 // pred_region
          %806 = dma.done [#allocation21], 16
        $region140: #{tpu_custom_call.1} parent=91 // pred_fallthru
          _
        // Predicated region
        $region141: #{tpu_custom_call.1} parent=91 // pred_check
          %p807 = pneg %p336
        $region142: #{tpu_custom_call.1} parent=91 // pred_check_branch
          %809 = sbr.rel (%p807) target = $region144
        $region143: #{tpu_custom_call.1} parent=91 // pred_region
          %810 = dma.done [#allocation21], 256
        $region144: #{tpu_custom_call.1} parent=91 // pred_fallthru
          _
        // Predicated region
        $region145: #{tpu_custom_call.1} parent=91 // pred_check
          %p811 = pneg %p357
        $region146: #{tpu_custom_call.1} parent=91 // pred_check_branch
          %813 = sbr.rel (%p811) target = $region148
        $region147: #{tpu_custom_call.1} parent=91 // pred_region
          %814 = dma.done [#allocation24], 16
        $region148: #{tpu_custom_call.1} parent=91 // pred_fallthru
          _
        // Predicated region
        $region149: #{tpu_custom_call.1} parent=91 // pred_check
          %p815 = pneg %p378
        $region150: #{tpu_custom_call.1} parent=91 // pred_check_branch
          %817 = sbr.rel (%p815) target = $region152
        $region151: #{tpu_custom_call.1} parent=91 // pred_region
          %818 = dma.done [#allocation24], 512
        $region152: #{tpu_custom_call.1} parent=91 // pred_fallthru
          _
        // Predicated region
        $region153: #{tpu_custom_call.1} parent=91 // pred_check
          %p819 = pneg %p399
        $region154: #{tpu_custom_call.1} parent=91 // pred_check_branch
          %821 = sbr.rel (%p819) target = $region156
        $region155: #{tpu_custom_call.1} parent=91 // pred_region
          %822 = dma.done [#allocation27], 16
        $region156: #{tpu_custom_call.1} parent=91 // pred_fallthru
          _
        // Predicated region
        $region157: #{tpu_custom_call.1} parent=91 // pred_check
          %p823 = pneg %p420
        $region158: #{tpu_custom_call.1} parent=91 // pred_check_branch
          %825 = sbr.rel (%p823) target = $region160
        $region159: #{tpu_custom_call.1} parent=91 // pred_region
          %826 = dma.done [#allocation27], 48
        $region160: #{tpu_custom_call.1} parent=91 // pred_fallthru
          _
        // Predicated region
        $region161: #{tpu_custom_call.1} parent=91 // pred_check
          %p827 = pneg %p441
        $region162: #{tpu_custom_call.1} parent=91 // pred_check_branch
          %829 = sbr.rel (%p827) target = $region164
        $region163: #{tpu_custom_call.1} parent=91 // pred_region
          %830 = dma.done [#allocation30], 48
        $region164: #{tpu_custom_call.1} parent=91 // pred_fallthru
          _
        %s831 = sand.u32 %s56, 1
        %s832 = scalar_lea.sflag [#allocation3], %s831
        %s833 = sand.u32 %s56, 1
        %s834 = smul.addr %s833, 8
        %s835 = scalar_lea.vmem [#allocation2], %s834
        %p836 = pneg %p69
        %p837 = pneg %p66
        %s838 = sand.u32 %s48, 1
        %s839 = scalar_lea.sflag [#allocation6], %s838
        %s840 = sand.u32 %s82, 1
        %s841 = smul.addr %s840, 8
        %s842 = scalar_lea.vmem [#allocation5], %s841
        %p843 = pneg %p95
        %p844 = pneg %p92
        %s845 = sand.u32 %s48, 1
        %s846 = scalar_lea.sflag [#allocation6], %s845
        %s847 = sand.u32 %s108, 1
        %s848 = smul.addr %s847, 8
        %s849 = scalar_lea.vmem [#allocation7], %s848
        %p850 = pneg %p121
        %p851 = pneg %p118
        %s852 = sand.u32 %s48, 1
        %s853 = scalar_lea.sflag [#allocation9], %s852
        %s854 = sand.u32 %s134, 1
        %s855 = smul.addr %s854, 8
        %s856 = scalar_lea.vmem [#allocation8], %s855
        %p857 = pneg %p147
        %p858 = pneg %p144
        %p859 = pneg %p168
        %p860 = pneg %p165
        %p861 = pneg %p189
        %p862 = pneg %p186
        %p863 = pneg %p210
        %p864 = pneg %p207
        %p865 = pneg %p231
        %p866 = pneg %p228
        %p867 = pneg %p252
        %p868 = pneg %p249
        %p869 = pneg %p273
        %p870 = pneg %p270
        %p871 = pneg %p294
        %p872 = pneg %p291
        %p873 = pneg %p315
        %p874 = pneg %p312
        %p875 = pneg %p336
        %p876 = pneg %p333
        %p877 = pneg %p357
        %p878 = pneg %p354
        %p879 = pneg %p378
        %p880 = pneg %p375
        %p881 = pneg %p399
        %p882 = pneg %p396
        %p883 = pneg %p420
        %p884 = pneg %p417
        %p885 = pneg %p441
        %p886 = pneg %p438
        %p887 = pneg %p467
        %p888 = pneg %p464
        %s889 = sand.u32 %s454, 1
        %s890 = scalar_lea.sflag [#allocation4], %s889
        %s891 = sand.u32 %s454, 1
        %s892 = smul.addr %s891, 8
        %s893 = scalar_lea.vmem [#allocation31], %s892
        %v895 = vld [vmem:[%s743] sm:$0xff]
        %v896 = vld [vmem:[%s752] sm:$0xff]
        %v897 = vld [vmem:[#allocation28] sm:$0x1]
        %v898 = vld [vmem:[#allocation29] sm:$0x1]
        %vm899 = vcmask 261120
        %v900 = vsel %vm899, %v895, 0.0
        %901 = vadd.xlane.f32.xlu0 %v900
        %v902 = vpop.xlane.xlu0 %901
        %v903 = vrcp.pop 32.0
        %v904 = vmul.f32 %v902, %v903
        %v905 = vsub.f32 %v895, %v904
        %v906 = vmul.f32 %v905, %v905
        %v907 = vsel %vm899, %v906, 0.0
        %908 = vadd.xlane.f32.xlu0 %v907
        %v909 = vpop.xlane.xlu0 %908
        %v910 = vmul.f32 %v909, %v903
        %v911 = vadd.f32 %v910, 1e-05
        %v912 = vrsqrt.pop %v911
        %v913 = vmul.f32 %v905, %v912
        %v915 = vlaneseq
        %v916 = vshrl.u32 %v915, 7
        %v917 = vsub.s32 0, %v916
        %v918 = vrot.slane %v897, %v917
        %v920 = vmul.f32 %v913, %v918
        %v922 = vlaneseq
        %v923 = vshrl.u32 %v922, 7
        %v924 = vsub.s32 0, %v923
        %v925 = vrot.slane %v898, %v924
        %v927 = vadd.f32 %v920, %v925
        %v928 = vld [vmem:[%s761] sm:$0xff]
        %v929 = vld [vmem:[#allocation10] sm:$0xf]
        %v930 = vld [vmem:[#allocation10 + $0x4] sm:$0xf]
        %v931 = vld [vmem:[#allocation10 + $0x8] sm:$0xf]
        %v932 = vld [vmem:[#allocation10 + $0xc] sm:$0xf]
        %v933 = vld [vmem:[#allocation10 + $0x10] sm:$0xf]
        %v934 = vld [vmem:[#allocation10 + $0x14] sm:$0xf]
        %v935 = vld [vmem:[#allocation10 + $0x18] sm:$0xf]
        %v936 = vld [vmem:[#allocation10 + $0x1c] sm:$0xf]
        %v937 = vld [vmem:[#allocation10 + $0x20] sm:$0xf]
        %v938 = vld [vmem:[#allocation10 + $0x24] sm:$0xf]
        %v939 = vld [vmem:[#allocation10 + $0x28] sm:$0xf]
        %v940 = vld [vmem:[#allocation10 + $0x2c] sm:$0xf]
        %v941 = vld [vmem:[#allocation10 + $0x30] sm:$0xf]
        %v942 = vld [vmem:[#allocation10 + $0x34] sm:$0xf]
        %v943 = vld [vmem:[#allocation10 + $0x38] sm:$0xf]
        %v944 = vld [vmem:[#allocation10 + $0x3c] sm:$0xf]
        %v945 = vld [vmem:[#allocation10 + $0x40] sm:$0xf]
        %v946 = vld [vmem:[#allocation10 + $0x44] sm:$0xf]
        %v947 = vld [vmem:[#allocation10 + $0x48] sm:$0xf]
        %v948 = vld [vmem:[#allocation10 + $0x4c] sm:$0xf]
        %v949 = vld [vmem:[#allocation10 + $0x50] sm:$0xf]
        %v950 = vld [vmem:[#allocation10 + $0x54] sm:$0xf]
        %v951 = vld [vmem:[#allocation10 + $0x58] sm:$0xf]
        %v952 = vld [vmem:[#allocation10 + $0x5c] sm:$0xf]
        %v953 = vld [vmem:[#allocation10 + $0x60] sm:$0xf]
        %v954 = vld [vmem:[#allocation10 + $0x64] sm:$0xf]
        %v955 = vld [vmem:[#allocation10 + $0x68] sm:$0xf]
        %v956 = vld [vmem:[#allocation10 + $0x6c] sm:$0xf]
        %v957 = vld [vmem:[#allocation10 + $0x70] sm:$0xf]
        %v958 = vld [vmem:[#allocation10 + $0x74] sm:$0xf]
        %v959 = vld [vmem:[#allocation10 + $0x78] sm:$0xf]
        %v960 = vld [vmem:[#allocation10 + $0x7c] sm:$0xf]
        %v961 = vld [vmem:[#allocation10 + $0x80] sm:$0xf]
        %v962 = vld [vmem:[#allocation10 + $0x84] sm:$0xf]
        %v963 = vld [vmem:[#allocation10 + $0x88] sm:$0xf]
        %v964 = vld [vmem:[#allocation10 + $0x8c] sm:$0xf]
        %v965 = vld [vmem:[#allocation10 + $0x90] sm:$0xf]
        %v966 = vld [vmem:[#allocation10 + $0x94] sm:$0xf]
        %v967 = vld [vmem:[#allocation10 + $0x98] sm:$0xf]
        %v968 = vld [vmem:[#allocation10 + $0x9c] sm:$0xf]
        %v969 = vld [vmem:[#allocation10 + $0xa0] sm:$0xf]
        %v970 = vld [vmem:[#allocation10 + $0xa4] sm:$0xf]
        %v971 = vld [vmem:[#allocation10 + $0xa8] sm:$0xf]
        %v972 = vld [vmem:[#allocation10 + $0xac] sm:$0xf]
        %v973 = vld [vmem:[#allocation10 + $0xb0] sm:$0xf]
        %v974 = vld [vmem:[#allocation10 + $0xb4] sm:$0xf]
        %v975 = vld [vmem:[#allocation10 + $0xb8] sm:$0xf]
        %v976 = vld [vmem:[#allocation10 + $0xbc] sm:$0xf]
        %v977 = vld [vmem:[#allocation11] sm:$0x1]
        %v978 = vld [vmem:[#allocation11 + $0x1] sm:$0x1]
        %v979 = vld [vmem:[#allocation11 + $0x2] sm:$0x1]
        %v980 = vld [vmem:[#allocation11 + $0x3] sm:$0x1]
        %v981 = vld [vmem:[#allocation11 + $0x4] sm:$0x1]
        %v982 = vld [vmem:[#allocation11 + $0x5] sm:$0x1]
        %v983 = vld [vmem:[#allocation11 + $0x6] sm:$0x1]
        %v984 = vld [vmem:[#allocation11 + $0x7] sm:$0x1]
        %v985 = vld [vmem:[#allocation11 + $0x8] sm:$0x1]
        %v986 = vld [vmem:[#allocation11 + $0x9] sm:$0x1]
        %v987 = vld [vmem:[#allocation11 + $0xa] sm:$0x1]
        %v988 = vld [vmem:[#allocation11 + $0xb] sm:$0x1]
        %v989 = vld [vmem:[#allocation13] sm:$0xf]
        %v990 = vld [vmem:[#allocation13 + $0x4] sm:$0xf]
        %v991 = vld [vmem:[#allocation13 + $0x8] sm:$0xf]
        %v992 = vld [vmem:[#allocation13 + $0xc] sm:$0xf]
        %v993 = vld [vmem:[#allocation14] sm:$0x1]
        %v994 = vpack.c.bf16 %v927, %v927
        %v999 = vlaneseq
        %v1000 = vshrl.u32 %v999, 7
        %v1001 = vsub.s32 0, %v1000
        %v1002 = vrot.slane %v977, %v1001
        %v1003 = vlaneseq
        %v1004 = vshrl.u32 %v1003, 7
        %v1005 = vsub.s32 0, %v1004
        %v1006 = vrot.slane %v978, %v1005
        %v1007 = vlaneseq
        %v1008 = vshrl.u32 %v1007, 7
        %v1009 = vsub.s32 0, %v1008
        %v1010 = vrot.slane %v979, %v1009
        %v1011 = vlaneseq
        %v1012 = vshrl.u32 %v1011, 7
        %v1013 = vsub.s32 0, %v1012
        %v1014 = vrot.slane %v980, %v1013
        %v1023 = vunpack.c.l.b16 %v929
        %v1024 = vunpack.c.l.b16 %v930
        %v1025 = vunpack.c.l.b16 %v931
        %v1026 = vunpack.c.l.b16 %v932
        %v1027 = vpack.c.b16 %v1024, %v1023
        %v1028 = vpack.c.b16 %v1026, %v1025
        %v1032 = vsel %vm899, %v994, 0
        %1034 = vmatprep.subr.bf16.mxu0 0
        %1035 = vmatpush1.bf16.msra.mxu0 %v1027
        %1036 = vmatprep.subr.bf16.mxu0 0
        %1037 = vmatpush1.bf16.msra.mxu0 %v1028
        %1038 = vmatprep.subr.bf16.mxu0 0
        %1039 = vmatpush1.bf16.msra.mxu0 0
        %1040 = vmatprep.subr.bf16.mxu0 0
        %1041 = vmatpush1.bf16.msra.mxu0 0
        %1042 = vmatprep.subr.bf16.mxu0 0
        %1043 = vmatpush1.bf16.msra.mxu0 0
        %1044 = vmatprep.subr.bf16.mxu0 0
        %1045 = vmatpush1.bf16.msra.mxu0 0
        %1046 = vmatprep.subr.bf16.mxu0 0
        %1047 = vmatpush1.bf16.msra.mxu0 0
        %1048 = vmatprep.subr.bf16.mxu0 0
        %1049 = vmatpush1.bf16.msra.mxu0 0
        %1050 = vmatprep.subr.bf16.mxu0 0
        %1051 = vmatpush1.bf16.msra.mxu0 0
        %1052 = vmatprep.subr.bf16.mxu0 0
        %1053 = vmatpush1.bf16.msra.mxu0 0
        %1054 = vmatprep.subr.bf16.mxu0 0
        %1055 = vmatpush1.bf16.msra.mxu0 0
        %1056 = vmatprep.subr.bf16.mxu0 0
        %1057 = vmatpush1.bf16.msra.mxu0 0
        %1058 = vmatprep.subr.bf16.mxu0 0
        %1059 = vmatpush1.bf16.msra.mxu0 0
        %1060 = vmatprep.subr.bf16.mxu0 0
        %1061 = vmatpush1.bf16.msra.mxu0 0
        %1062 = vmatprep.subr.bf16.mxu0 0
        %1063 = vmatpush1.bf16.msra.mxu0 0
        %1064 = vmatprep.subr.bf16.mxu0 0
        %1065 = vmatpush1.bf16.msra.mxu0 0
        %1066 = vmatprep.mubr.bf16.mxu0 0
        %1067 = vmatmul.mubr.bf16.gmra.mrb[0].mxu0 %v1032
        %v1068 = vpop.f32.mrb[0].mxu0
        %v1069 = vadd.f32 %v1002, %v1068
        %v1070 = vpop.f32.mrb[0].mxu0
        %v1071 = vpop.f32.mrb[0].mxu0
        %v1072 = vpop.f32.mrb[0].mxu0
        %1073 = vdwg.mxu0
        %v1078 = vunpack.c.l.b16 %v933
        %v1079 = vunpack.c.l.b16 %v934
        %v1080 = vunpack.c.l.b16 %v935
        %v1081 = vunpack.c.l.b16 %v936
        %v1082 = vpack.c.b16 %v1079, %v1078
        %v1083 = vpack.c.b16 %v1081, %v1080
        %1086 = vmatprep.subr.bf16.mxu0 0
        %1087 = vmatpush1.bf16.msra.mxu0 %v1082
        %1088 = vmatprep.subr.bf16.mxu0 0
        %1089 = vmatpush1.bf16.msra.mxu0 %v1083
        %1090 = vmatprep.subr.bf16.mxu0 0
        %1091 = vmatpush1.bf16.msra.mxu0 0
        %1092 = vmatprep.subr.bf16.mxu0 0
        %1093 = vmatpush1.bf16.msra.mxu0 0
        %1094 = vmatprep.subr.bf16.mxu0 0
        %1095 = vmatpush1.bf16.msra.mxu0 0
        %1096 = vmatprep.subr.bf16.mxu0 0
        %1097 = vmatpush1.bf16.msra.mxu0 0
        %1098 = vmatprep.subr.bf16.mxu0 0
        %1099 = vmatpush1.bf16.msra.mxu0 0
        %1100 = vmatprep.subr.bf16.mxu0 0
        %1101 = vmatpush1.bf16.msra.mxu0 0
        %1102 = vmatprep.subr.bf16.mxu0 0
        %1103 = vmatpush1.bf16.msra.mxu0 0
        %1104 = vmatprep.subr.bf16.mxu0 0
        %1105 = vmatpush1.bf16.msra.mxu0 0
        %1106 = vmatprep.subr.bf16.mxu0 0
        %1107 = vmatpush1.bf16.msra.mxu0 0
        %1108 = vmatprep.subr.bf16.mxu0 0
        %1109 = vmatpush1.bf16.msra.mxu0 0
        %1110 = vmatprep.subr.bf16.mxu0 0
        %1111 = vmatpush1.bf16.msra.mxu0 0
        %1112 = vmatprep.subr.bf16.mxu0 0
        %1113 = vmatpush1.bf16.msra.mxu0 0
        %1114 = vmatprep.subr.bf16.mxu0 0
        %1115 = vmatpush1.bf16.msra.mxu0 0
        %1116 = vmatprep.subr.bf16.mxu0 0
        %1117 = vmatpush1.bf16.msra.mxu0 0
        %1118 = vmatprep.mubr.bf16.mxu0 0
        %1119 = vmatmul.mubr.bf16.gmra.mrb[0].mxu0 %v1032
        %v1120 = vpop.f32.mrb[0].mxu0
        %v1121 = vadd.f32 %v1006, %v1120
        %v1122 = vpop.f32.mrb[0].mxu0
        %v1123 = vpop.f32.mrb[0].mxu0
        %v1124 = vpop.f32.mrb[0].mxu0
        %1125 = vdwg.mxu0
        %v1130 = vunpack.c.l.b16 %v937
        %v1131 = vunpack.c.l.b16 %v938
        %v1132 = vunpack.c.l.b16 %v939
        %v1133 = vunpack.c.l.b16 %v940
        %v1134 = vpack.c.b16 %v1131, %v1130
        %v1135 = vpack.c.b16 %v1133, %v1132
        %1138 = vmatprep.subr.bf16.mxu0 0
        %1139 = vmatpush1.bf16.msra.mxu0 %v1134
        %1140 = vmatprep.subr.bf16.mxu0 0
        %1141 = vmatpush1.bf16.msra.mxu0 %v1135
        %1142 = vmatprep.subr.bf16.mxu0 0
        %1143 = vmatpush1.bf16.msra.mxu0 0
        %1144 = vmatprep.subr.bf16.mxu0 0
        %1145 = vmatpush1.bf16.msra.mxu0 0
        %1146 = vmatprep.subr.bf16.mxu0 0
        %1147 = vmatpush1.bf16.msra.mxu0 0
        %1148 = vmatprep.subr.bf16.mxu0 0
        %1149 = vmatpush1.bf16.msra.mxu0 0
        %1150 = vmatprep.subr.bf16.mxu0 0
        %1151 = vmatpush1.bf16.msra.mxu0 0
        %1152 = vmatprep.subr.bf16.mxu0 0
        %1153 = vmatpush1.bf16.msra.mxu0 0
        %1154 = vmatprep.subr.bf16.mxu0 0
        %1155 = vmatpush1.bf16.msra.mxu0 0
        %1156 = vmatprep.subr.bf16.mxu0 0
        %1157 = vmatpush1.bf16.msra.mxu0 0
        %1158 = vmatprep.subr.bf16.mxu0 0
        %1159 = vmatpush1.bf16.msra.mxu0 0
        %1160 = vmatprep.subr.bf16.mxu0 0
        %1161 = vmatpush1.bf16.msra.mxu0 0
        %1162 = vmatprep.subr.bf16.mxu0 0
        %1163 = vmatpush1.bf16.msra.mxu0 0
        %1164 = vmatprep.subr.bf16.mxu0 0
        %1165 = vmatpush1.bf16.msra.mxu0 0
        %1166 = vmatprep.subr.bf16.mxu0 0
        %1167 = vmatpush1.bf16.msra.mxu0 0
        %1168 = vmatprep.subr.bf16.mxu0 0
        %1169 = vmatpush1.bf16.msra.mxu0 0
        %1170 = vmatprep.mubr.bf16.mxu0 0
        %1171 = vmatmul.mubr.bf16.gmra.mrb[0].mxu0 %v1032
        %v1172 = vpop.f32.mrb[0].mxu0
        %v1173 = vadd.f32 %v1010, %v1172
        %v1174 = vpop.f32.mrb[0].mxu0
        %v1175 = vpop.f32.mrb[0].mxu0
        %v1176 = vpop.f32.mrb[0].mxu0
        %1177 = vdwg.mxu0
        %v1182 = vunpack.c.l.b16 %v941
        %v1183 = vunpack.c.l.b16 %v942
        %v1184 = vunpack.c.l.b16 %v943
        %v1185 = vunpack.c.l.b16 %v944
        %v1186 = vpack.c.b16 %v1183, %v1182
        %v1187 = vpack.c.b16 %v1185, %v1184
        %1190 = vmatprep.subr.bf16.mxu0 0
        %1191 = vmatpush1.bf16.msra.mxu0 %v1186
        %1192 = vmatprep.subr.bf16.mxu0 0
        %1193 = vmatpush1.bf16.msra.mxu0 %v1187
        %1194 = vmatprep.subr.bf16.mxu0 0
        %1195 = vmatpush1.bf16.msra.mxu0 0
        %1196 = vmatprep.subr.bf16.mxu0 0
        %1197 = vmatpush1.bf16.msra.mxu0 0
        %1198 = vmatprep.subr.bf16.mxu0 0
        %1199 = vmatpush1.bf16.msra.mxu0 0
        %1200 = vmatprep.subr.bf16.mxu0 0
        %1201 = vmatpush1.bf16.msra.mxu0 0
        %1202 = vmatprep.subr.bf16.mxu0 0
        %1203 = vmatpush1.bf16.msra.mxu0 0
        %1204 = vmatprep.subr.bf16.mxu0 0
        %1205 = vmatpush1.bf16.msra.mxu0 0
        %1206 = vmatprep.subr.bf16.mxu0 0
        %1207 = vmatpush1.bf16.msra.mxu0 0
        %1208 = vmatprep.subr.bf16.mxu0 0
        %1209 = vmatpush1.bf16.msra.mxu0 0
        %1210 = vmatprep.subr.bf16.mxu0 0
        %1211 = vmatpush1.bf16.msra.mxu0 0
        %1212 = vmatprep.subr.bf16.mxu0 0
        %1213 = vmatpush1.bf16.msra.mxu0 0
        %1214 = vmatprep.subr.bf16.mxu0 0
        %1215 = vmatpush1.bf16.msra.mxu0 0
        %1216 = vmatprep.subr.bf16.mxu0 0
        %1217 = vmatpush1.bf16.msra.mxu0 0
        %1218 = vmatprep.subr.bf16.mxu0 0
        %1219 = vmatpush1.bf16.msra.mxu0 0
        %1220 = vmatprep.subr.bf16.mxu0 0
        %1221 = vmatpush1.bf16.msra.mxu0 0
        %1222 = vmatprep.mubr.bf16.mxu0 0
        %1223 = vmatmul.mubr.bf16.gmra.mrb[0].mxu0 %v1032
        %v1224 = vpop.f32.mrb[0].mxu0
        %v1225 = vadd.f32 %v1014, %v1224
        %v1226 = vpop.f32.mrb[0].mxu0
        %v1227 = vpop.f32.mrb[0].mxu0
        %v1228 = vpop.f32.mrb[0].mxu0
        %1229 = vdwg.mxu0
        %v1230 = vmul.f32 %v1069, 0.35355338
        %v1231 = vmul.f32 %v1121, 0.35355338
        %v1232 = vmul.f32 %v1173, 0.35355338
        %v1233 = vmul.f32 %v1225, 0.35355338
        %v1238 = vlaneseq
        %v1239 = vshrl.u32 %v1238, 7
        %v1240 = vsub.s32 0, %v1239
        %v1241 = vrot.slane %v981, %v1240
        %v1242 = vlaneseq
        %v1243 = vshrl.u32 %v1242, 7
        %v1244 = vsub.s32 0, %v1243
        %v1245 = vrot.slane %v982, %v1244
        %v1246 = vlaneseq
        %v1247 = vshrl.u32 %v1246, 7
        %v1248 = vsub.s32 0, %v1247
        %v1249 = vrot.slane %v983, %v1248
        %v1250 = vlaneseq
        %v1251 = vshrl.u32 %v1250, 7
        %v1252 = vsub.s32 0, %v1251
        %v1253 = vrot.slane %v984, %v1252
        %v1262 = vunpack.c.l.b16 %v945
        %v1263 = vunpack.c.l.b16 %v946
        %v1264 = vunpack.c.l.b16 %v947
        %v1265 = vunpack.c.l.b16 %v948
        %v1266 = vpack.c.b16 %v1263, %v1262
        %v1267 = vpack.c.b16 %v1265, %v1264
        %1270 = vmatprep.subr.bf16.mxu0 0
        %1271 = vmatpush1.bf16.msra.mxu0 %v1266
        %1272 = vmatprep.subr.bf16.mxu0 0
        %1273 = vmatpush1.bf16.msra.mxu0 %v1267
        %1274 = vmatprep.subr.bf16.mxu0 0
        %1275 = vmatpush1.bf16.msra.mxu0 0
        %1276 = vmatprep.subr.bf16.mxu0 0
        %1277 = vmatpush1.bf16.msra.mxu0 0
        %1278 = vmatprep.subr.bf16.mxu0 0
        %1279 = vmatpush1.bf16.msra.mxu0 0
        %1280 = vmatprep.subr.bf16.mxu0 0
        %1281 = vmatpush1.bf16.msra.mxu0 0
        %1282 = vmatprep.subr.bf16.mxu0 0
        %1283 = vmatpush1.bf16.msra.mxu0 0
        %1284 = vmatprep.subr.bf16.mxu0 0
        %1285 = vmatpush1.bf16.msra.mxu0 0
        %1286 = vmatprep.subr.bf16.mxu0 0
        %1287 = vmatpush1.bf16.msra.mxu0 0
        %1288 = vmatprep.subr.bf16.mxu0 0
        %1289 = vmatpush1.bf16.msra.mxu0 0
        %1290 = vmatprep.subr.bf16.mxu0 0
        %1291 = vmatpush1.bf16.msra.mxu0 0
        %1292 = vmatprep.subr.bf16.mxu0 0
        %1293 = vmatpush1.bf16.msra.mxu0 0
        %1294 = vmatprep.subr.bf16.mxu0 0
        %1295 = vmatpush1.bf16.msra.mxu0 0
        %1296 = vmatprep.subr.bf16.mxu0 0
        %1297 = vmatpush1.bf16.msra.mxu0 0
        %1298 = vmatprep.subr.bf16.mxu0 0
        %1299 = vmatpush1.bf16.msra.mxu0 0
        %1300 = vmatprep.subr.bf16.mxu0 0
        %1301 = vmatpush1.bf16.msra.mxu0 0
        %1302 = vmatprep.mubr.bf16.mxu0 0
        %1303 = vmatmul.mubr.bf16.gmra.mrb[0].mxu0 %v1032
        %v1304 = vpop.f32.mrb[0].mxu0
        %v1305 = vadd.f32 %v1241, %v1304
        %v1306 = vpop.f32.mrb[0].mxu0
        %v1307 = vpop.f32.mrb[0].mxu0
        %v1308 = vpop.f32.mrb[0].mxu0
        %1309 = vdwg.mxu0
        %v1314 = vunpack.c.l.b16 %v949
        %v1315 = vunpack.c.l.b16 %v950
        %v1316 = vunpack.c.l.b16 %v951
        %v1317 = vunpack.c.l.b16 %v952
        %v1318 = vpack.c.b16 %v1315, %v1314
        %v1319 = vpack.c.b16 %v1317, %v1316
        %1322 = vmatprep.subr.bf16.mxu0 0
        %1323 = vmatpush1.bf16.msra.mxu0 %v1318
        %1324 = vmatprep.subr.bf16.mxu0 0
        %1325 = vmatpush1.bf16.msra.mxu0 %v1319
        %1326 = vmatprep.subr.bf16.mxu0 0
        %1327 = vmatpush1.bf16.msra.mxu0 0
        %1328 = vmatprep.subr.bf16.mxu0 0
        %1329 = vmatpush1.bf16.msra.mxu0 0
        %1330 = vmatprep.subr.bf16.mxu0 0
        %1331 = vmatpush1.bf16.msra.mxu0 0
        %1332 = vmatprep.subr.bf16.mxu0 0
        %1333 = vmatpush1.bf16.msra.mxu0 0
        %1334 = vmatprep.subr.bf16.mxu0 0
        %1335 = vmatpush1.bf16.msra.mxu0 0
        %1336 = vmatprep.subr.bf16.mxu0 0
        %1337 = vmatpush1.bf16.msra.mxu0 0
        %1338 = vmatprep.subr.bf16.mxu0 0
        %1339 = vmatpush1.bf16.msra.mxu0 0
        %1340 = vmatprep.subr.bf16.mxu0 0
        %1341 = vmatpush1.bf16.msra.mxu0 0
        %1342 = vmatprep.subr.bf16.mxu0 0
        %1343 = vmatpush1.bf16.msra.mxu0 0
        %1344 = vmatprep.subr.bf16.mxu0 0
        %1345 = vmatpush1.bf16.msra.mxu0 0
        %1346 = vmatprep.subr.bf16.mxu0 0
        %1347 = vmatpush1.bf16.msra.mxu0 0
        %1348 = vmatprep.subr.bf16.mxu0 0
        %1349 = vmatpush1.bf16.msra.mxu0 0
        %1350 = vmatprep.subr.bf16.mxu0 0
        %1351 = vmatpush1.bf16.msra.mxu0 0
        %1352 = vmatprep.subr.bf16.mxu0 0
        %1353 = vmatpush1.bf16.msra.mxu0 0
        %1354 = vmatprep.mubr.bf16.mxu0 0
        %1355 = vmatmul.mubr.bf16.gmra.mrb[0].mxu0 %v1032
        %v1356 = vpop.f32.mrb[0].mxu0
        %v1357 = vadd.f32 %v1245, %v1356
        %v1358 = vpop.f32.mrb[0].mxu0
        %v1359 = vpop.f32.mrb[0].mxu0
        %v1360 = vpop.f32.mrb[0].mxu0
        %1361 = vdwg.mxu0
        %v1366 = vunpack.c.l.b16 %v953
        %v1367 = vunpack.c.l.b16 %v954
        %v1368 = vunpack.c.l.b16 %v955
        %v1369 = vunpack.c.l.b16 %v956
        %v1370 = vpack.c.b16 %v1367, %v1366
        %v1371 = vpack.c.b16 %v1369, %v1368
        %1374 = vmatprep.subr.bf16.mxu0 0
        %1375 = vmatpush1.bf16.msra.mxu0 %v1370
        %1376 = vmatprep.subr.bf16.mxu0 0
        %1377 = vmatpush1.bf16.msra.mxu0 %v1371
        %1378 = vmatprep.subr.bf16.mxu0 0
        %1379 = vmatpush1.bf16.msra.mxu0 0
        %1380 = vmatprep.subr.bf16.mxu0 0
        %1381 = vmatpush1.bf16.msra.mxu0 0
        %1382 = vmatprep.subr.bf16.mxu0 0
        %1383 = vmatpush1.bf16.msra.mxu0 0
        %1384 = vmatprep.subr.bf16.mxu0 0
        %1385 = vmatpush1.bf16.msra.mxu0 0
        %1386 = vmatprep.subr.bf16.mxu0 0
        %1387 = vmatpush1.bf16.msra.mxu0 0
        %1388 = vmatprep.subr.bf16.mxu0 0
        %1389 = vmatpush1.bf16.msra.mxu0 0
        %1390 = vmatprep.subr.bf16.mxu0 0
        %1391 = vmatpush1.bf16.msra.mxu0 0
        %1392 = vmatprep.subr.bf16.mxu0 0
        %1393 = vmatpush1.bf16.msra.mxu0 0
        %1394 = vmatprep.subr.bf16.mxu0 0
        %1395 = vmatpush1.bf16.msra.mxu0 0
        %1396 = vmatprep.subr.bf16.mxu0 0
        %1397 = vmatpush1.bf16.msra.mxu0 0
        %1398 = vmatprep.subr.bf16.mxu0 0
        %1399 = vmatpush1.bf16.msra.mxu0 0
        %1400 = vmatprep.subr.bf16.mxu0 0
        %1401 = vmatpush1.bf16.msra.mxu0 0
        %1402 = vmatprep.subr.bf16.mxu0 0
        %1403 = vmatpush1.bf16.msra.mxu0 0
        %1404 = vmatprep.subr.bf16.mxu0 0
        %1405 = vmatpush1.bf16.msra.mxu0 0
        %1406 = vmatprep.mubr.bf16.mxu0 0
        %1407 = vmatmul.mubr.bf16.gmra.mrb[0].mxu0 %v1032
        %v1408 = vpop.f32.mrb[0].mxu0
        %v1409 = vadd.f32 %v1249, %v1408
        %v1410 = vpop.f32.mrb[0].mxu0
        %v1411 = vpop.f32.mrb[0].mxu0
        %v1412 = vpop.f32.mrb[0].mxu0
        %1413 = vdwg.mxu0
        %v1418 = vunpack.c.l.b16 %v957
        %v1419 = vunpack.c.l.b16 %v958
        %v1420 = vunpack.c.l.b16 %v959
        %v1421 = vunpack.c.l.b16 %v960
        %v1422 = vpack.c.b16 %v1419, %v1418
        %v1423 = vpack.c.b16 %v1421, %v1420
        %1426 = vmatprep.subr.bf16.mxu0 0
        %1427 = vmatpush1.bf16.msra.mxu0 %v1422
        %1428 = vmatprep.subr.bf16.mxu0 0
        %1429 = vmatpush1.bf16.msra.mxu0 %v1423
        %1430 = vmatprep.subr.bf16.mxu0 0
        %1431 = vmatpush1.bf16.msra.mxu0 0
        %1432 = vmatprep.subr.bf16.mxu0 0
        %1433 = vmatpush1.bf16.msra.mxu0 0
        %1434 = vmatprep.subr.bf16.mxu0 0
        %1435 = vmatpush1.bf16.msra.mxu0 0
        %1436 = vmatprep.subr.bf16.mxu0 0
        %1437 = vmatpush1.bf16.msra.mxu0 0
        %1438 = vmatprep.subr.bf16.mxu0 0
        %1439 = vmatpush1.bf16.msra.mxu0 0
        %1440 = vmatprep.subr.bf16.mxu0 0
        %1441 = vmatpush1.bf16.msra.mxu0 0
        %1442 = vmatprep.subr.bf16.mxu0 0
        %1443 = vmatpush1.bf16.msra.mxu0 0
        %1444 = vmatprep.subr.bf16.mxu0 0
        %1445 = vmatpush1.bf16.msra.mxu0 0
        %1446 = vmatprep.subr.bf16.mxu0 0
        %1447 = vmatpush1.bf16.msra.mxu0 0
        %1448 = vmatprep.subr.bf16.mxu0 0
        %1449 = vmatpush1.bf16.msra.mxu0 0
        %1450 = vmatprep.subr.bf16.mxu0 0
        %1451 = vmatpush1.bf16.msra.mxu0 0
        %1452 = vmatprep.subr.bf16.mxu0 0
        %1453 = vmatpush1.bf16.msra.mxu0 0
        %1454 = vmatprep.subr.bf16.mxu0 0
        %1455 = vmatpush1.bf16.msra.mxu0 0
        %1456 = vmatprep.subr.bf16.mxu0 0
        %1457 = vmatpush1.bf16.msra.mxu0 0
        %1458 = vmatprep.mubr.bf16.mxu0 0
        %1459 = vmatmul.mubr.bf16.gmra.mrb[0].mxu0 %v1032
        %v1460 = vpop.f32.mrb[0].mxu0
        %v1461 = vadd.f32 %v1253, %v1460
        %v1462 = vpop.f32.mrb[0].mxu0
        %v1463 = vpop.f32.mrb[0].mxu0
        %v1464 = vpop.f32.mrb[0].mxu0
        %1465 = vdwg.mxu0
        %v1470 = vlaneseq
        %v1471 = vshrl.u32 %v1470, 7
        %v1472 = vsub.s32 0, %v1471
        %v1473 = vrot.slane %v985, %v1472
        %v1474 = vlaneseq
        %v1475 = vshrl.u32 %v1474, 7
        %v1476 = vsub.s32 0, %v1475
        %v1477 = vrot.slane %v986, %v1476
        %v1478 = vlaneseq
        %v1479 = vshrl.u32 %v1478, 7
        %v1480 = vsub.s32 0, %v1479
        %v1481 = vrot.slane %v987, %v1480
        %v1482 = vlaneseq
        %v1483 = vshrl.u32 %v1482, 7
        %v1484 = vsub.s32 0, %v1483
        %v1485 = vrot.slane %v988, %v1484
        %v1494 = vunpack.c.l.b16 %v961
        %v1495 = vunpack.c.l.b16 %v962
        %v1496 = vunpack.c.l.b16 %v963
        %v1497 = vunpack.c.l.b16 %v964
        %v1498 = vpack.c.b16 %v1495, %v1494
        %v1499 = vpack.c.b16 %v1497, %v1496
        %1502 = vmatprep.subr.bf16.mxu0 0
        %1503 = vmatpush1.bf16.msra.mxu0 %v1498
        %1504 = vmatprep.subr.bf16.mxu0 0
        %1505 = vmatpush1.bf16.msra.mxu0 %v1499
        %1506 = vmatprep.subr.bf16.mxu0 0
        %1507 = vmatpush1.bf16.msra.mxu0 0
        %1508 = vmatprep.subr.bf16.mxu0 0
        %1509 = vmatpush1.bf16.msra.mxu0 0
        %1510 = vmatprep.subr.bf16.mxu0 0
        %1511 = vmatpush1.bf16.msra.mxu0 0
        %1512 = vmatprep.subr.bf16.mxu0 0
        %1513 = vmatpush1.bf16.msra.mxu0 0
        %1514 = vmatprep.subr.bf16.mxu0 0
        %1515 = vmatpush1.bf16.msra.mxu0 0
        %1516 = vmatprep.subr.bf16.mxu0 0
        %1517 = vmatpush1.bf16.msra.mxu0 0
        %1518 = vmatprep.subr.bf16.mxu0 0
        %1519 = vmatpush1.bf16.msra.mxu0 0
        %1520 = vmatprep.subr.bf16.mxu0 0
        %1521 = vmatpush1.bf16.msra.mxu0 0
        %1522 = vmatprep.subr.bf16.mxu0 0
        %1523 = vmatpush1.bf16.msra.mxu0 0
        %1524 = vmatprep.subr.bf16.mxu0 0
        %1525 = vmatpush1.bf16.msra.mxu0 0
        %1526 = vmatprep.subr.bf16.mxu0 0
        %1527 = vmatpush1.bf16.msra.mxu0 0
        %1528 = vmatprep.subr.bf16.mxu0 0
        %1529 = vmatpush1.bf16.msra.mxu0 0
        %1530 = vmatprep.subr.bf16.mxu0 0
        %1531 = vmatpush1.bf16.msra.mxu0 0
        %1532 = vmatprep.subr.bf16.mxu0 0
        %1533 = vmatpush1.bf16.msra.mxu0 0
        %1534 = vmatprep.mubr.bf16.mxu0 0
        %1535 = vmatmul.mubr.bf16.gmra.mrb[0].mxu0 %v1032
        %v1536 = vpop.f32.mrb[0].mxu0
        %v1537 = vadd.f32 %v1473, %v1536
        %v1538 = vpop.f32.mrb[0].mxu0
        %v1539 = vpop.f32.mrb[0].mxu0
        %v1540 = vpop.f32.mrb[0].mxu0
        %1541 = vdwg.mxu0
        %v1546 = vunpack.c.l.b16 %v965
        %v1547 = vunpack.c.l.b16 %v966
        %v1548 = vunpack.c.l.b16 %v967
        %v1549 = vunpack.c.l.b16 %v968
        %v1550 = vpack.c.b16 %v1547, %v1546
        %v1551 = vpack.c.b16 %v1549, %v1548
        %1554 = vmatprep.subr.bf16.mxu0 0
        %1555 = vmatpush1.bf16.msra.mxu0 %v1550
        %1556 = vmatprep.subr.bf16.mxu0 0
        %1557 = vmatpush1.bf16.msra.mxu0 %v1551
        %1558 = vmatprep.subr.bf16.mxu0 0
        %1559 = vmatpush1.bf16.msra.mxu0 0
        %1560 = vmatprep.subr.bf16.mxu0 0
        %1561 = vmatpush1.bf16.msra.mxu0 0
        %1562 = vmatprep.subr.bf16.mxu0 0
        %1563 = vmatpush1.bf16.msra.mxu0 0
        %1564 = vmatprep.subr.bf16.mxu0 0
        %1565 = vmatpush1.bf16.msra.mxu0 0
        %1566 = vmatprep.subr.bf16.mxu0 0
        %1567 = vmatpush1.bf16.msra.mxu0 0
        %1568 = vmatprep.subr.bf16.mxu0 0
        %1569 = vmatpush1.bf16.msra.mxu0 0
        %1570 = vmatprep.subr.bf16.mxu0 0
        %1571 = vmatpush1.bf16.msra.mxu0 0
        %1572 = vmatprep.subr.bf16.mxu0 0
        %1573 = vmatpush1.bf16.msra.mxu0 0
        %1574 = vmatprep.subr.bf16.mxu0 0
        %1575 = vmatpush1.bf16.msra.mxu0 0
        %1576 = vmatprep.subr.bf16.mxu0 0
        %1577 = vmatpush1.bf16.msra.mxu0 0
        %1578 = vmatprep.subr.bf16.mxu0 0
        %1579 = vmatpush1.bf16.msra.mxu0 0
        %1580 = vmatprep.subr.bf16.mxu0 0
        %1581 = vmatpush1.bf16.msra.mxu0 0
        %1582 = vmatprep.subr.bf16.mxu0 0
        %1583 = vmatpush1.bf16.msra.mxu0 0
        %1584 = vmatprep.subr.bf16.mxu0 0
        %1585 = vmatpush1.bf16.msra.mxu0 0
        %1586 = vmatprep.mubr.bf16.mxu0 0
        %1587 = vmatmul.mubr.bf16.gmra.mrb[0].mxu0 %v1032
        %v1588 = vpop.f32.mrb[0].mxu0
        %v1589 = vadd.f32 %v1477, %v1588
        %v1590 = vpop.f32.mrb[0].mxu0
        %v1591 = vpop.f32.mrb[0].mxu0
        %v1592 = vpop.f32.mrb[0].mxu0
        %1593 = vdwg.mxu0
        %v1598 = vunpack.c.l.b16 %v969
        %v1599 = vunpack.c.l.b16 %v970
        %v1600 = vunpack.c.l.b16 %v971
        %v1601 = vunpack.c.l.b16 %v972
        %v1602 = vpack.c.b16 %v1599, %v1598
        %v1603 = vpack.c.b16 %v1601, %v1600
        %1606 = vmatprep.subr.bf16.mxu0 0
        %1607 = vmatpush1.bf16.msra.mxu0 %v1602
        %1608 = vmatprep.subr.bf16.mxu0 0
        %1609 = vmatpush1.bf16.msra.mxu0 %v1603
        %1610 = vmatprep.subr.bf16.mxu0 0
        %1611 = vmatpush1.bf16.msra.mxu0 0
        %1612 = vmatprep.subr.bf16.mxu0 0
        %1613 = vmatpush1.bf16.msra.mxu0 0
        %1614 = vmatprep.subr.bf16.mxu0 0
        %1615 = vmatpush1.bf16.msra.mxu0 0
        %1616 = vmatprep.subr.bf16.mxu0 0
        %1617 = vmatpush1.bf16.msra.mxu0 0
        %1618 = vmatprep.subr.bf16.mxu0 0
        %1619 = vmatpush1.bf16.msra.mxu0 0
        %1620 = vmatprep.subr.bf16.mxu0 0
        %1621 = vmatpush1.bf16.msra.mxu0 0
        %1622 = vmatprep.subr.bf16.mxu0 0
        %1623 = vmatpush1.bf16.msra.mxu0 0
        %1624 = vmatprep.subr.bf16.mxu0 0
        %1625 = vmatpush1.bf16.msra.mxu0 0
        %1626 = vmatprep.subr.bf16.mxu0 0
        %1627 = vmatpush1.bf16.msra.mxu0 0
        %1628 = vmatprep.subr.bf16.mxu0 0
        %1629 = vmatpush1.bf16.msra.mxu0 0
        %1630 = vmatprep.subr.bf16.mxu0 0
        %1631 = vmatpush1.bf16.msra.mxu0 0
        %1632 = vmatprep.subr.bf16.mxu0 0
        %1633 = vmatpush1.bf16.msra.mxu0 0
        %1634 = vmatprep.subr.bf16.mxu0 0
        %1635 = vmatpush1.bf16.msra.mxu0 0
        %1636 = vmatprep.subr.bf16.mxu0 0
        %1637 = vmatpush1.bf16.msra.mxu0 0
        %1638 = vmatprep.mubr.bf16.mxu0 0
        %1639 = vmatmul.mubr.bf16.gmra.mrb[0].mxu0 %v1032
        %v1640 = vpop.f32.mrb[0].mxu0
        %v1641 = vadd.f32 %v1481, %v1640
        %v1642 = vpop.f32.mrb[0].mxu0
        %v1643 = vpop.f32.mrb[0].mxu0
        %v1644 = vpop.f32.mrb[0].mxu0
        %1645 = vdwg.mxu0
        %v1650 = vunpack.c.l.b16 %v973
        %v1651 = vunpack.c.l.b16 %v974
        %v1652 = vunpack.c.l.b16 %v975
        %v1653 = vunpack.c.l.b16 %v976
        %v1654 = vpack.c.b16 %v1651, %v1650
        %v1655 = vpack.c.b16 %v1653, %v1652
        %1658 = vmatprep.subr.bf16.mxu0 0
        %1659 = vmatpush1.bf16.msra.mxu0 %v1654
        %1660 = vmatprep.subr.bf16.mxu0 0
        %1661 = vmatpush1.bf16.msra.mxu0 %v1655
        %1662 = vmatprep.subr.bf16.mxu0 0
        %1663 = vmatpush1.bf16.msra.mxu0 0
        %1664 = vmatprep.subr.bf16.mxu0 0
        %1665 = vmatpush1.bf16.msra.mxu0 0
        %1666 = vmatprep.subr.bf16.mxu0 0
        %1667 = vmatpush1.bf16.msra.mxu0 0
        %1668 = vmatprep.subr.bf16.mxu0 0
        %1669 = vmatpush1.bf16.msra.mxu0 0
        %1670 = vmatprep.subr.bf16.mxu0 0
        %1671 = vmatpush1.bf16.msra.mxu0 0
        %1672 = vmatprep.subr.bf16.mxu0 0
        %1673 = vmatpush1.bf16.msra.mxu0 0
        %1674 = vmatprep.subr.bf16.mxu0 0
        %1675 = vmatpush1.bf16.msra.mxu0 0
        %1676 = vmatprep.subr.bf16.mxu0 0
        %1677 = vmatpush1.bf16.msra.mxu0 0
        %1678 = vmatprep.subr.bf16.mxu0 0
        %1679 = vmatpush1.bf16.msra.mxu0 0
        %1680 = vmatprep.subr.bf16.mxu0 0
        %1681 = vmatpush1.bf16.msra.mxu0 0
        %1682 = vmatprep.subr.bf16.mxu0 0
        %1683 = vmatpush1.bf16.msra.mxu0 0
        %1684 = vmatprep.subr.bf16.mxu0 0
        %1685 = vmatpush1.bf16.msra.mxu0 0
        %1686 = vmatprep.subr.bf16.mxu0 0
        %1687 = vmatpush1.bf16.msra.mxu0 0
        %1688 = vmatprep.subr.bf16.mxu0 0
        %1689 = vmatpush1.bf16.msra.mxu0 0
        %1690 = vmatprep.mubr.bf16.mxu0 0
        %1691 = vmatmul.mubr.bf16.gmra.mrb[0].mxu0 %v1032
        %v1692 = vpop.f32.mrb[0].mxu0
        %v1693 = vadd.f32 %v1485, %v1692
        %v1694 = vpop.f32.mrb[0].mxu0
        %v1695 = vpop.f32.mrb[0].mxu0
        %v1696 = vpop.f32.mrb[0].mxu0
        %1697 = vdwg.mxu0
        %v1698 = vpack.c.bf16 %v1230, %v1230
        %v1699 = vpack.c.bf16 %v1231, %v1231
        %v1700 = vpack.c.bf16 %v1232, %v1232
        %v1701 = vpack.c.bf16 %v1233, %v1233
        %v1702 = vpack.c.bf16 %v1305, %v1305
        %v1703 = vpack.c.bf16 %v1357, %v1357
        %v1704 = vpack.c.bf16 %v1409, %v1409
        %v1705 = vpack.c.bf16 %v1461, %v1461
        %vm1706 = vcmp.ne.f32.partialorder %v928, 0.0
        %v1707 = vsel %vm1706, 0.0, -1e+09
        %vm1708 = vcmask 64512
        %v1710 = vsel %vm1708, %v1698, 0
        %v1713 = vsel %vm1708, %v1702, 0
        %1715 = vmatprep.subr.bf16.mxu0 0
        %1716 = vmatpush1.bf16.xpose.msra.mxu0 %v1713
        %1717 = vmatprep.subr.bf16.mxu0 0
        %1718 = vmatpush1.bf16.xpose.msra.mxu0 0
        %1719 = vmatprep.subr.bf16.mxu0 0
        %1720 = vmatpush1.bf16.xpose.msra.mxu0 0
        %1721 = vmatprep.subr.bf16.mxu0 0
        %1722 = vmatpush1.bf16.xpose.msra.mxu0 0
        %1723 = vmatprep.subr.bf16.mxu0 0
        %1724 = vmatpush1.bf16.xpose.msra.mxu0 0
        %1725 = vmatprep.subr.bf16.mxu0 0
        %1726 = vmatpush1.bf16.xpose.msra.mxu0 0
        %1727 = vmatprep.subr.bf16.mxu0 0
        %1728 = vmatpush1.bf16.xpose.msra.mxu0 0
        %1729 = vmatprep.subr.bf16.mxu0 0
        %1730 = vmatpush1.bf16.xpose.msra.mxu0 0
        %1731 = vmatprep.subr.bf16.mxu0 0
        %1732 = vmatpush1.bf16.xpose.msra.mxu0 0
        %1733 = vmatprep.subr.bf16.mxu0 0
        %1734 = vmatpush1.bf16.xpose.msra.mxu0 0
        %1735 = vmatprep.subr.bf16.mxu0 0
        %1736 = vmatpush1.bf16.xpose.msra.mxu0 0
        %1737 = vmatprep.subr.bf16.mxu0 0
        %1738 = vmatpush1.bf16.xpose.msra.mxu0 0
        %1739 = vmatprep.subr.bf16.mxu0 0
        %1740 = vmatpush1.bf16.xpose.msra.mxu0 0
        %1741 = vmatprep.subr.bf16.mxu0 0
        %1742 = vmatpush1.bf16.xpose.msra.mxu0 0
        %1743 = vmatprep.subr.bf16.mxu0 0
        %1744 = vmatpush1.bf16.xpose.msra.mxu0 0
        %1745 = vmatprep.subr.bf16.mxu0 0
        %1746 = vmatpush1.bf16.xpose.msra.mxu0 0
        %1747 = vmatprep.mubr.bf16.mxu0 0
        %1748 = vmatmul.mubr.bf16.gmra.mrb[0].mxu0 %v1710
        %v1749 = vpop.f32.mrb[0].mxu0
        %v1750 = vadd.f32 %v1707, %v1749
        %v1751 = vpop.f32.mrb[0].mxu0
        %v1752 = vpop.f32.mrb[0].mxu0
        %v1753 = vpop.f32.mrb[0].mxu0
        %1754 = vdwg.mxu0
        %v1756 = vsel %vm1708, %v1699, 0
        %v1759 = vsel %vm1708, %v1703, 0
        %1761 = vmatprep.subr.bf16.mxu0 0
        %1762 = vmatpush1.bf16.xpose.msra.mxu0 %v1759
        %1763 = vmatprep.subr.bf16.mxu0 0
        %1764 = vmatpush1.bf16.xpose.msra.mxu0 0
        %1765 = vmatprep.subr.bf16.mxu0 0
        %1766 = vmatpush1.bf16.xpose.msra.mxu0 0
        %1767 = vmatprep.subr.bf16.mxu0 0
        %1768 = vmatpush1.bf16.xpose.msra.mxu0 0
        %1769 = vmatprep.subr.bf16.mxu0 0
        %1770 = vmatpush1.bf16.xpose.msra.mxu0 0
        %1771 = vmatprep.subr.bf16.mxu0 0
        %1772 = vmatpush1.bf16.xpose.msra.mxu0 0
        %1773 = vmatprep.subr.bf16.mxu0 0
        %1774 = vmatpush1.bf16.xpose.msra.mxu0 0
        %1775 = vmatprep.subr.bf16.mxu0 0
        %1776 = vmatpush1.bf16.xpose.msra.mxu0 0
        %1777 = vmatprep.subr.bf16.mxu0 0
        %1778 = vmatpush1.bf16.xpose.msra.mxu0 0
        %1779 = vmatprep.subr.bf16.mxu0 0
        %1780 = vmatpush1.bf16.xpose.msra.mxu0 0
        %1781 = vmatprep.subr.bf16.mxu0 0
        %1782 = vmatpush1.bf16.xpose.msra.mxu0 0
        %1783 = vmatprep.subr.bf16.mxu0 0
        %1784 = vmatpush1.bf16.xpose.msra.mxu0 0
        %1785 = vmatprep.subr.bf16.mxu0 0
        %1786 = vmatpush1.bf16.xpose.msra.mxu0 0
        %1787 = vmatprep.subr.bf16.mxu0 0
        %1788 = vmatpush1.bf16.xpose.msra.mxu0 0
        %1789 = vmatprep.subr.bf16.mxu0 0
        %1790 = vmatpush1.bf16.xpose.msra.mxu0 0
        %1791 = vmatprep.subr.bf16.mxu0 0
        %1792 = vmatpush1.bf16.xpose.msra.mxu0 0
        %1793 = vmatprep.mubr.bf16.mxu0 0
        %1794 = vmatmul.mubr.bf16.gmra.mrb[0].mxu0 %v1756
        %v1795 = vpop.f32.mrb[0].mxu0
        %v1796 = vadd.f32 %v1707, %v1795
        %v1797 = vpop.f32.mrb[0].mxu0
        %v1798 = vpop.f32.mrb[0].mxu0
        %v1799 = vpop.f32.mrb[0].mxu0
        %1800 = vdwg.mxu0
        %v1802 = vsel %vm1708, %v1700, 0
        %v1805 = vsel %vm1708, %v1704, 0
        %1807 = vmatprep.subr.bf16.mxu0 0
        %1808 = vmatpush1.bf16.xpose.msra.mxu0 %v1805
        %1809 = vmatprep.subr.bf16.mxu0 0
        %1810 = vmatpush1.bf16.xpose.msra.mxu0 0
        %1811 = vmatprep.subr.bf16.mxu0 0
        %1812 = vmatpush1.bf16.xpose.msra.mxu0 0
        %1813 = vmatprep.subr.bf16.mxu0 0
        %1814 = vmatpush1.bf16.xpose.msra.mxu0 0
        %1815 = vmatprep.subr.bf16.mxu0 0
        %1816 = vmatpush1.bf16.xpose.msra.mxu0 0
        %1817 = vmatprep.subr.bf16.mxu0 0
        %1818 = vmatpush1.bf16.xpose.msra.mxu0 0
        %1819 = vmatprep.subr.bf16.mxu0 0
        %1820 = vmatpush1.bf16.xpose.msra.mxu0 0
        %1821 = vmatprep.subr.bf16.mxu0 0
        %1822 = vmatpush1.bf16.xpose.msra.mxu0 0
        %1823 = vmatprep.subr.bf16.mxu0 0
        %1824 = vmatpush1.bf16.xpose.msra.mxu0 0
        %1825 = vmatprep.subr.bf16.mxu0 0
        %1826 = vmatpush1.bf16.xpose.msra.mxu0 0
        %1827 = vmatprep.subr.bf16.mxu0 0
        %1828 = vmatpush1.bf16.xpose.msra.mxu0 0
        %1829 = vmatprep.subr.bf16.mxu0 0
        %1830 = vmatpush1.bf16.xpose.msra.mxu0 0
        %1831 = vmatprep.subr.bf16.mxu0 0
        %1832 = vmatpush1.bf16.xpose.msra.mxu0 0
        %1833 = vmatprep.subr.bf16.mxu0 0
        %1834 = vmatpush1.bf16.xpose.msra.mxu0 0
        %1835 = vmatprep.subr.bf16.mxu0 0
        %1836 = vmatpush1.bf16.xpose.msra.mxu0 0
        %1837 = vmatprep.subr.bf16.mxu0 0
        %1838 = vmatpush1.bf16.xpose.msra.mxu0 0
        %1839 = vmatprep.mubr.bf16.mxu0 0
        %1840 = vmatmul.mubr.bf16.gmra.mrb[0].mxu0 %v1802
        %v1841 = vpop.f32.mrb[0].mxu0
        %v1842 = vadd.f32 %v1707, %v1841
        %v1843 = vpop.f32.mrb[0].mxu0
        %v1844 = vpop.f32.mrb[0].mxu0
        %v1845 = vpop.f32.mrb[0].mxu0
        %1846 = vdwg.mxu0
        %v1848 = vsel %vm1708, %v1701, 0
        %v1851 = vsel %vm1708, %v1705, 0
        %1853 = vmatprep.subr.bf16.mxu0 0
        %1854 = vmatpush1.bf16.xpose.msra.mxu0 %v1851
        %1855 = vmatprep.subr.bf16.mxu0 0
        %1856 = vmatpush1.bf16.xpose.msra.mxu0 0
        %1857 = vmatprep.subr.bf16.mxu0 0
        %1858 = vmatpush1.bf16.xpose.msra.mxu0 0
        %1859 = vmatprep.subr.bf16.mxu0 0
        %1860 = vmatpush1.bf16.xpose.msra.mxu0 0
        %1861 = vmatprep.subr.bf16.mxu0 0
        %1862 = vmatpush1.bf16.xpose.msra.mxu0 0
        %1863 = vmatprep.subr.bf16.mxu0 0
        %1864 = vmatpush1.bf16.xpose.msra.mxu0 0
        %1865 = vmatprep.subr.bf16.mxu0 0
        %1866 = vmatpush1.bf16.xpose.msra.mxu0 0
        %1867 = vmatprep.subr.bf16.mxu0 0
        %1868 = vmatpush1.bf16.xpose.msra.mxu0 0
        %1869 = vmatprep.subr.bf16.mxu0 0
        %1870 = vmatpush1.bf16.xpose.msra.mxu0 0
        %1871 = vmatprep.subr.bf16.mxu0 0
        %1872 = vmatpush1.bf16.xpose.msra.mxu0 0
        %1873 = vmatprep.subr.bf16.mxu0 0
        %1874 = vmatpush1.bf16.xpose.msra.mxu0 0
        %1875 = vmatprep.subr.bf16.mxu0 0
        %1876 = vmatpush1.bf16.xpose.msra.mxu0 0
        %1877 = vmatprep.subr.bf16.mxu0 0
        %1878 = vmatpush1.bf16.xpose.msra.mxu0 0
        %1879 = vmatprep.subr.bf16.mxu0 0
        %1880 = vmatpush1.bf16.xpose.msra.mxu0 0
        %1881 = vmatprep.subr.bf16.mxu0 0
        %1882 = vmatpush1.bf16.xpose.msra.mxu0 0
        %1883 = vmatprep.subr.bf16.mxu0 0
        %1884 = vmatpush1.bf16.xpose.msra.mxu0 0
        %1885 = vmatprep.mubr.bf16.mxu0 0
        %1886 = vmatmul.mubr.bf16.gmra.mrb[0].mxu0 %v1848
        %v1887 = vpop.f32.mrb[0].mxu0
        %v1888 = vadd.f32 %v1707, %v1887
        %v1889 = vpop.f32.mrb[0].mxu0
        %v1890 = vpop.f32.mrb[0].mxu0
        %v1891 = vpop.f32.mrb[0].mxu0
        %1892 = vdwg.mxu0
        %v1893 = vsel %vm1708, %v1750, -inf
        %1894 = vmax.xlane.f32.xlu0 %v1893
        %v1895 = vpop.xlane.xlu0 %1894
        %v1896 = vsel %vm1708, %v1796, -inf
        %1897 = vmax.xlane.f32.xlu0 %v1896
        %v1898 = vpop.xlane.xlu0 %1897
        %v1899 = vsel %vm1708, %v1842, -inf
        %1900 = vmax.xlane.f32.xlu0 %v1899
        %v1901 = vpop.xlane.xlu0 %1900
        %v1902 = vsel %vm1708, %v1888, -inf
        %1903 = vmax.xlane.f32.xlu0 %v1902
        %v1904 = vpop.xlane.xlu0 %1903
        %v1905 = vsub.f32 %v1750, %v1895
        %v1906 = vsub.f32 %v1796, %v1898
        %v1907 = vsub.f32 %v1842, %v1901
        %v1908 = vsub.f32 %v1888, %v1904
        %v1909 = vmul.f32 %v1905, 1.442695
        %v1910 = vpow.pop %v1909
        %v1911 = vmul.f32 %v1906, 1.442695
        %v1912 = vpow.pop %v1911
        %v1913 = vmul.f32 %v1907, 1.442695
        %v1914 = vpow.pop %v1913
        %v1915 = vmul.f32 %v1908, 1.442695
        %v1916 = vpow.pop %v1915
        %v1917 = vsel %vm1708, %v1910, 0.0
        %1918 = vadd.xlane.f32.xlu0 %v1917
        %v1919 = vpop.xlane.xlu0 %1918
        %v1920 = vsel %vm1708, %v1912, 0.0
        %1921 = vadd.xlane.f32.xlu0 %v1920
        %v1922 = vpop.xlane.xlu0 %1921
        %v1923 = vsel %vm1708, %v1914, 0.0
        %1924 = vadd.xlane.f32.xlu0 %v1923
        %v1925 = vpop.xlane.xlu0 %1924
        %v1926 = vsel %vm1708, %v1916, 0.0
        %1927 = vadd.xlane.f32.xlu0 %v1926
        %v1928 = vpop.xlane.xlu0 %1927
        %v1929 = vrcp.pop %v1919
        %v1930 = vrcp.pop %v1922
        %v1931 = vrcp.pop %v1925
        %v1932 = vrcp.pop %v1928
        %v1933 = vmul.f32 %v1910, %v1929
        %v1934 = vmul.f32 %v1912, %v1930
        %v1935 = vmul.f32 %v1914, %v1931
        %v1936 = vmul.f32 %v1916, %v1932
        %v1937 = vpack.c.bf16 %v1933, %v1933
        %v1938 = vpack.c.bf16 %v1934, %v1934
        %v1939 = vpack.c.bf16 %v1935, %v1935
        %v1940 = vpack.c.bf16 %v1936, %v1936
        %v1941 = vpack.c.bf16 %v1537, %v1537
        %v1942 = vpack.c.bf16 %v1589, %v1589
        %v1943 = vpack.c.bf16 %v1641, %v1641
        %v1944 = vpack.c.bf16 %v1693, %v1693
        %v1946 = vsel %vm1708, %v1937, 0
        %vm1948 = vcmask 1043456
        %v1950 = vsel %vm1948, %v1941, 0
        %1952 = vmatprep.subr.bf16.mxu0 0
        %1953 = vmatpush1.bf16.msra.mxu0 %v1950
        %1954 = vmatprep.subr.bf16.mxu0 0
        %1955 = vmatpush1.bf16.msra.mxu0 0
        %1956 = vmatprep.subr.bf16.mxu0 0
        %1957 = vmatpush1.bf16.msra.mxu0 0
        %1958 = vmatprep.subr.bf16.mxu0 0
        %1959 = vmatpush1.bf16.msra.mxu0 0
        %1960 = vmatprep.subr.bf16.mxu0 0
        %1961 = vmatpush1.bf16.msra.mxu0 0
        %1962 = vmatprep.subr.bf16.mxu0 0
        %1963 = vmatpush1.bf16.msra.mxu0 0
        %1964 = vmatprep.subr.bf16.mxu0 0
        %1965 = vmatpush1.bf16.msra.mxu0 0
        %1966 = vmatprep.subr.bf16.mxu0 0
        %1967 = vmatpush1.bf16.msra.mxu0 0
        %1968 = vmatprep.subr.bf16.mxu0 0
        %1969 = vmatpush1.bf16.msra.mxu0 0
        %1970 = vmatprep.subr.bf16.mxu0 0
        %1971 = vmatpush1.bf16.msra.mxu0 0
        %1972 = vmatprep.subr.bf16.mxu0 0
        %1973 = vmatpush1.bf16.msra.mxu0 0
        %1974 = vmatprep.subr.bf16.mxu0 0
        %1975 = vmatpush1.bf16.msra.mxu0 0
        %1976 = vmatprep.subr.bf16.mxu0 0
        %1977 = vmatpush1.bf16.msra.mxu0 0
        %1978 = vmatprep.subr.bf16.mxu0 0
        %1979 = vmatpush1.bf16.msra.mxu0 0
        %1980 = vmatprep.subr.bf16.mxu0 0
        %1981 = vmatpush1.bf16.msra.mxu0 0
        %1982 = vmatprep.subr.bf16.mxu0 0
        %1983 = vmatpush1.bf16.msra.mxu0 0
        %1984 = vmatprep.mubr.bf16.mxu0 0
        %1985 = vmatmul.mubr.bf16.gmra.mrb[0].mxu0 %v1946
        %v1986 = vpop.f32.mrb[0].mxu0
        %v1987 = vadd.f32 0.0, %v1986
        %v1988 = vpop.f32.mrb[0].mxu0
        %v1989 = vpop.f32.mrb[0].mxu0
        %v1990 = vpop.f32.mrb[0].mxu0
        %1991 = vdwg.mxu0
        %v1993 = vsel %vm1708, %v1938, 0
        %v1996 = vsel %vm1948, %v1942, 0
        %1998 = vmatprep.subr.bf16.mxu0 0
        %1999 = vmatpush1.bf16.msra.mxu0 %v1996
        %2000 = vmatprep.subr.bf16.mxu0 0
        %2001 = vmatpush1.bf16.msra.mxu0 0
        %2002 = vmatprep.subr.bf16.mxu0 0
        %2003 = vmatpush1.bf16.msra.mxu0 0
        %2004 = vmatprep.subr.bf16.mxu0 0
        %2005 = vmatpush1.bf16.msra.mxu0 0
        %2006 = vmatprep.subr.bf16.mxu0 0
        %2007 = vmatpush1.bf16.msra.mxu0 0
        %2008 = vmatprep.subr.bf16.mxu0 0
        %2009 = vmatpush1.bf16.msra.mxu0 0
        %2010 = vmatprep.subr.bf16.mxu0 0
        %2011 = vmatpush1.bf16.msra.mxu0 0
        %2012 = vmatprep.subr.bf16.mxu0 0
        %2013 = vmatpush1.bf16.msra.mxu0 0
        %2014 = vmatprep.subr.bf16.mxu0 0
        %2015 = vmatpush1.bf16.msra.mxu0 0
        %2016 = vmatprep.subr.bf16.mxu0 0
        %2017 = vmatpush1.bf16.msra.mxu0 0
        %2018 = vmatprep.subr.bf16.mxu0 0
        %2019 = vmatpush1.bf16.msra.mxu0 0
        %2020 = vmatprep.subr.bf16.mxu0 0
        %2021 = vmatpush1.bf16.msra.mxu0 0
        %2022 = vmatprep.subr.bf16.mxu0 0
        %2023 = vmatpush1.bf16.msra.mxu0 0
        %2024 = vmatprep.subr.bf16.mxu0 0
        %2025 = vmatpush1.bf16.msra.mxu0 0
        %2026 = vmatprep.subr.bf16.mxu0 0
        %2027 = vmatpush1.bf16.msra.mxu0 0
        %2028 = vmatprep.subr.bf16.mxu0 0
        %2029 = vmatpush1.bf16.msra.mxu0 0
        %2030 = vmatprep.mubr.bf16.mxu0 0
        %2031 = vmatmul.mubr.bf16.gmra.mrb[0].mxu0 %v1993
        %v2032 = vpop.f32.mrb[0].mxu0
        %v2033 = vadd.f32 0.0, %v2032
        %v2034 = vpop.f32.mrb[0].mxu0
        %v2035 = vpop.f32.mrb[0].mxu0
        %v2036 = vpop.f32.mrb[0].mxu0
        %2037 = vdwg.mxu0
        %v2039 = vsel %vm1708, %v1939, 0
        %v2042 = vsel %vm1948, %v1943, 0
        %2044 = vmatprep.subr.bf16.mxu0 0
        %2045 = vmatpush1.bf16.msra.mxu0 %v2042
        %2046 = vmatprep.subr.bf16.mxu0 0
        %2047 = vmatpush1.bf16.msra.mxu0 0
        %2048 = vmatprep.subr.bf16.mxu0 0
        %2049 = vmatpush1.bf16.msra.mxu0 0
        %2050 = vmatprep.subr.bf16.mxu0 0
        %2051 = vmatpush1.bf16.msra.mxu0 0
        %2052 = vmatprep.subr.bf16.mxu0 0
        %2053 = vmatpush1.bf16.msra.mxu0 0
        %2054 = vmatprep.subr.bf16.mxu0 0
        %2055 = vmatpush1.bf16.msra.mxu0 0
        %2056 = vmatprep.subr.bf16.mxu0 0
        %2057 = vmatpush1.bf16.msra.mxu0 0
        %2058 = vmatprep.subr.bf16.mxu0 0
        %2059 = vmatpush1.bf16.msra.mxu0 0
        %2060 = vmatprep.subr.bf16.mxu0 0
        %2061 = vmatpush1.bf16.msra.mxu0 0
        %2062 = vmatprep.subr.bf16.mxu0 0
        %2063 = vmatpush1.bf16.msra.mxu0 0
        %2064 = vmatprep.subr.bf16.mxu0 0
        %2065 = vmatpush1.bf16.msra.mxu0 0
        %2066 = vmatprep.subr.bf16.mxu0 0
        %2067 = vmatpush1.bf16.msra.mxu0 0
        %2068 = vmatprep.subr.bf16.mxu0 0
        %2069 = vmatpush1.bf16.msra.mxu0 0
        %2070 = vmatprep.subr.bf16.mxu0 0
        %2071 = vmatpush1.bf16.msra.mxu0 0
        %2072 = vmatprep.subr.bf16.mxu0 0
        %2073 = vmatpush1.bf16.msra.mxu0 0
        %2074 = vmatprep.subr.bf16.mxu0 0
        %2075 = vmatpush1.bf16.msra.mxu0 0
        %2076 = vmatprep.mubr.bf16.mxu0 0
        %2077 = vmatmul.mubr.bf16.gmra.mrb[0].mxu0 %v2039
        %v2078 = vpop.f32.mrb[0].mxu0
        %v2079 = vadd.f32 0.0, %v2078
        %v2080 = vpop.f32.mrb[0].mxu0
        %v2081 = vpop.f32.mrb[0].mxu0
        %v2082 = vpop.f32.mrb[0].mxu0
        %2083 = vdwg.mxu0
        %v2085 = vsel %vm1708, %v1940, 0
        %v2088 = vsel %vm1948, %v1944, 0
        %2090 = vmatprep.subr.bf16.mxu0 0
        %2091 = vmatpush1.bf16.msra.mxu0 %v2088
        %2092 = vmatprep.subr.bf16.mxu0 0
        %2093 = vmatpush1.bf16.msra.mxu0 0
        %2094 = vmatprep.subr.bf16.mxu0 0
        %2095 = vmatpush1.bf16.msra.mxu0 0
        %2096 = vmatprep.subr.bf16.mxu0 0
        %2097 = vmatpush1.bf16.msra.mxu0 0
        %2098 = vmatprep.subr.bf16.mxu0 0
        %2099 = vmatpush1.bf16.msra.mxu0 0
        %2100 = vmatprep.subr.bf16.mxu0 0
        %2101 = vmatpush1.bf16.msra.mxu0 0
        %2102 = vmatprep.subr.bf16.mxu0 0
        %2103 = vmatpush1.bf16.msra.mxu0 0
        %2104 = vmatprep.subr.bf16.mxu0 0
        %2105 = vmatpush1.bf16.msra.mxu0 0
        %2106 = vmatprep.subr.bf16.mxu0 0
        %2107 = vmatpush1.bf16.msra.mxu0 0
        %2108 = vmatprep.subr.bf16.mxu0 0
        %2109 = vmatpush1.bf16.msra.mxu0 0
        %2110 = vmatprep.subr.bf16.mxu0 0
        %2111 = vmatpush1.bf16.msra.mxu0 0
        %2112 = vmatprep.subr.bf16.mxu0 0
        %2113 = vmatpush1.bf16.msra.mxu0 0
        %2114 = vmatprep.subr.bf16.mxu0 0
        %2115 = vmatpush1.bf16.msra.mxu0 0
        %2116 = vmatprep.subr.bf16.mxu0 0
        %2117 = vmatpush1.bf16.msra.mxu0 0
        %2118 = vmatprep.subr.bf16.mxu0 0
        %2119 = vmatpush1.bf16.msra.mxu0 0
        %2120 = vmatprep.subr.bf16.mxu0 0
        %2121 = vmatpush1.bf16.msra.mxu0 0
        %2122 = vmatprep.mubr.bf16.mxu0 0
        %2123 = vmatmul.mubr.bf16.gmra.mrb[0].mxu0 %v2085
        %v2124 = vpop.f32.mrb[0].mxu0
        %v2125 = vadd.f32 0.0, %v2124
        %v2126 = vpop.f32.mrb[0].mxu0
        %v2127 = vpop.f32.mrb[0].mxu0
        %v2128 = vpop.f32.mrb[0].mxu0
        %2129 = vdwg.mxu0
        %v2130 = vpack.c.bf16 %v1987, %v1987
        %v2131 = vpack.c.bf16 %v2033, %v2033
        %v2132 = vpack.c.bf16 %v2079, %v2079
        %v2133 = vpack.c.bf16 %v2125, %v2125
        %v2135 = vsel %vm1708, %v2130, 0
        %v2138 = vsel %vm1948, %v989, 0
        %2140 = vmatprep.subr.bf16.mxu0 0
        %2141 = vmatpush1.bf16.msra.mxu0 %v2138
        %2142 = vmatprep.subr.bf16.mxu0 0
        %2143 = vmatpush1.bf16.msra.mxu0 0
        %2144 = vmatprep.subr.bf16.mxu0 0
        %2145 = vmatpush1.bf16.msra.mxu0 0
        %2146 = vmatprep.subr.bf16.mxu0 0
        %2147 = vmatpush1.bf16.msra.mxu0 0
        %2148 = vmatprep.subr.bf16.mxu0 0
        %2149 = vmatpush1.bf16.msra.mxu0 0
        %2150 = vmatprep.subr.bf16.mxu0 0
        %2151 = vmatpush1.bf16.msra.mxu0 0
        %2152 = vmatprep.subr.bf16.mxu0 0
        %2153 = vmatpush1.bf16.msra.mxu0 0
        %2154 = vmatprep.subr.bf16.mxu0 0
        %2155 = vmatpush1.bf16.msra.mxu0 0
        %2156 = vmatprep.subr.bf16.mxu0 0
        %2157 = vmatpush1.bf16.msra.mxu0 0
        %2158 = vmatprep.subr.bf16.mxu0 0
        %2159 = vmatpush1.bf16.msra.mxu0 0
        %2160 = vmatprep.subr.bf16.mxu0 0
        %2161 = vmatpush1.bf16.msra.mxu0 0
        %2162 = vmatprep.subr.bf16.mxu0 0
        %2163 = vmatpush1.bf16.msra.mxu0 0
        %2164 = vmatprep.subr.bf16.mxu0 0
        %2165 = vmatpush1.bf16.msra.mxu0 0
        %2166 = vmatprep.subr.bf16.mxu0 0
        %2167 = vmatpush1.bf16.msra.mxu0 0
        %2168 = vmatprep.subr.bf16.mxu0 0
        %2169 = vmatpush1.bf16.msra.mxu0 0
        %2170 = vmatprep.subr.bf16.mxu0 0
        %2171 = vmatpush1.bf16.msra.mxu0 0
        %2172 = vmatprep.mubr.bf16.mxu0 0
        %2173 = vmatmul.mubr.bf16.gmra.mrb[0].mxu0 %v2135
        %v2174 = vpop.f32.mrb[0].mxu0
        %v2175 = vadd.f32 0.0, %v2174
        %v2176 = vpop.f32.mrb[0].mxu0
        %v2177 = vpop.f32.mrb[0].mxu0
        %v2178 = vpop.f32.mrb[0].mxu0
        %2179 = vdwg.mxu0
        %v2181 = vsel %vm1708, %v2131, 0
        %v2184 = vsel %vm1948, %v990, 0
        %2186 = vmatprep.subr.bf16.mxu0 0
        %2187 = vmatpush1.bf16.msra.mxu0 %v2184
        %2188 = vmatprep.subr.bf16.mxu0 0
        %2189 = vmatpush1.bf16.msra.mxu0 0
        %2190 = vmatprep.subr.bf16.mxu0 0
        %2191 = vmatpush1.bf16.msra.mxu0 0
        %2192 = vmatprep.subr.bf16.mxu0 0
        %2193 = vmatpush1.bf16.msra.mxu0 0
        %2194 = vmatprep.subr.bf16.mxu0 0
        %2195 = vmatpush1.bf16.msra.mxu0 0
        %2196 = vmatprep.subr.bf16.mxu0 0
        %2197 = vmatpush1.bf16.msra.mxu0 0
        %2198 = vmatprep.subr.bf16.mxu0 0
        %2199 = vmatpush1.bf16.msra.mxu0 0
        %2200 = vmatprep.subr.bf16.mxu0 0
        %2201 = vmatpush1.bf16.msra.mxu0 0
        %2202 = vmatprep.subr.bf16.mxu0 0
        %2203 = vmatpush1.bf16.msra.mxu0 0
        %2204 = vmatprep.subr.bf16.mxu0 0
        %2205 = vmatpush1.bf16.msra.mxu0 0
        %2206 = vmatprep.subr.bf16.mxu0 0
        %2207 = vmatpush1.bf16.msra.mxu0 0
        %2208 = vmatprep.subr.bf16.mxu0 0
        %2209 = vmatpush1.bf16.msra.mxu0 0
        %2210 = vmatprep.subr.bf16.mxu0 0
        %2211 = vmatpush1.bf16.msra.mxu0 0
        %2212 = vmatprep.subr.bf16.mxu0 0
        %2213 = vmatpush1.bf16.msra.mxu0 0
        %2214 = vmatprep.subr.bf16.mxu0 0
        %2215 = vmatpush1.bf16.msra.mxu0 0
        %2216 = vmatprep.subr.bf16.mxu0 0
        %2217 = vmatpush1.bf16.msra.mxu0 0
        %2218 = vmatprep.mubr.bf16.mxu0 0
        %2219 = vmatmul.mubr.bf16.gmra.mrb[0].mxu0 %v2181
        %v2220 = vpop.f32.mrb[0].mxu0
        %v2221 = vadd.f32 0.0, %v2220
        %v2222 = vpop.f32.mrb[0].mxu0
        %v2223 = vpop.f32.mrb[0].mxu0
        %v2224 = vpop.f32.mrb[0].mxu0
        %2225 = vdwg.mxu0
        %v2227 = vsel %vm1708, %v2132, 0
        %v2230 = vsel %vm1948, %v991, 0
        %2232 = vmatprep.subr.bf16.mxu0 0
        %2233 = vmatpush1.bf16.msra.mxu0 %v2230
        %2234 = vmatprep.subr.bf16.mxu0 0
        %2235 = vmatpush1.bf16.msra.mxu0 0
        %2236 = vmatprep.subr.bf16.mxu0 0
        %2237 = vmatpush1.bf16.msra.mxu0 0
        %2238 = vmatprep.subr.bf16.mxu0 0
        %2239 = vmatpush1.bf16.msra.mxu0 0
        %2240 = vmatprep.subr.bf16.mxu0 0
        %2241 = vmatpush1.bf16.msra.mxu0 0
        %2242 = vmatprep.subr.bf16.mxu0 0
        %2243 = vmatpush1.bf16.msra.mxu0 0
        %2244 = vmatprep.subr.bf16.mxu0 0
        %2245 = vmatpush1.bf16.msra.mxu0 0
        %2246 = vmatprep.subr.bf16.mxu0 0
        %2247 = vmatpush1.bf16.msra.mxu0 0
        %2248 = vmatprep.subr.bf16.mxu0 0
        %2249 = vmatpush1.bf16.msra.mxu0 0
        %2250 = vmatprep.subr.bf16.mxu0 0
        %2251 = vmatpush1.bf16.msra.mxu0 0
        %2252 = vmatprep.subr.bf16.mxu0 0
        %2253 = vmatpush1.bf16.msra.mxu0 0
        %2254 = vmatprep.subr.bf16.mxu0 0
        %2255 = vmatpush1.bf16.msra.mxu0 0
        %2256 = vmatprep.subr.bf16.mxu0 0
        %2257 = vmatpush1.bf16.msra.mxu0 0
        %2258 = vmatprep.subr.bf16.mxu0 0
        %2259 = vmatpush1.bf16.msra.mxu0 0
        %2260 = vmatprep.subr.bf16.mxu0 0
        %2261 = vmatpush1.bf16.msra.mxu0 0
        %2262 = vmatprep.subr.bf16.mxu0 0
        %2263 = vmatpush1.bf16.msra.mxu0 0
        %2264 = vmatprep.mubr.bf16.mxu0 0
        %2265 = vmatmul.mubr.bf16.gmra.mrb[0].mxu0 %v2227
        %v2266 = vpop.f32.mrb[0].mxu0
        %v2267 = vadd.f32 0.0, %v2266
        %v2268 = vpop.f32.mrb[0].mxu0
        %v2269 = vpop.f32.mrb[0].mxu0
        %v2270 = vpop.f32.mrb[0].mxu0
        %2271 = vdwg.mxu0
        %v2273 = vsel %vm1708, %v2133, 0
        %v2276 = vsel %vm1948, %v992, 0
        %2278 = vmatprep.subr.bf16.mxu0 0
        %2279 = vmatpush1.bf16.msra.mxu0 %v2276
        %2280 = vmatprep.subr.bf16.mxu0 0
        %2281 = vmatpush1.bf16.msra.mxu0 0
        %2282 = vmatprep.subr.bf16.mxu0 0
        %2283 = vmatpush1.bf16.msra.mxu0 0
        %2284 = vmatprep.subr.bf16.mxu0 0
        %2285 = vmatpush1.bf16.msra.mxu0 0
        %2286 = vmatprep.subr.bf16.mxu0 0
        %2287 = vmatpush1.bf16.msra.mxu0 0
        %2288 = vmatprep.subr.bf16.mxu0 0
        %2289 = vmatpush1.bf16.msra.mxu0 0
        %2290 = vmatprep.subr.bf16.mxu0 0
        %2291 = vmatpush1.bf16.msra.mxu0 0
        %2292 = vmatprep.subr.bf16.mxu0 0
        %2293 = vmatpush1.bf16.msra.mxu0 0
        %2294 = vmatprep.subr.bf16.mxu0 0
        %2295 = vmatpush1.bf16.msra.mxu0 0
        %2296 = vmatprep.subr.bf16.mxu0 0
        %2297 = vmatpush1.bf16.msra.mxu0 0
        %2298 = vmatprep.subr.bf16.mxu0 0
        %2299 = vmatpush1.bf16.msra.mxu0 0
        %2300 = vmatprep.subr.bf16.mxu0 0
        %2301 = vmatpush1.bf16.msra.mxu0 0
        %2302 = vmatprep.subr.bf16.mxu0 0
        %2303 = vmatpush1.bf16.msra.mxu0 0
        %2304 = vmatprep.subr.bf16.mxu0 0
        %2305 = vmatpush1.bf16.msra.mxu0 0
        %2306 = vmatprep.subr.bf16.mxu0 0
        %2307 = vmatpush1.bf16.msra.mxu0 0
        %2308 = vmatprep.subr.bf16.mxu0 0
        %2309 = vmatpush1.bf16.msra.mxu0 0
        %2310 = vmatprep.mubr.bf16.mxu0 0
        %2311 = vmatmul.mubr.bf16.gmra.mrb[0].mxu0 %v2273
        %v2312 = vpop.f32.mrb[0].mxu0
        %v2313 = vadd.f32 0.0, %v2312
        %v2314 = vpop.f32.mrb[0].mxu0
        %v2315 = vpop.f32.mrb[0].mxu0
        %v2316 = vpop.f32.mrb[0].mxu0
        %2317 = vdwg.mxu0
        %v2318 = vsel %vm899, %v2175, 0.0
        %v2319 = vsel %vm899, %v2221, 0.0
        %v2320 = vadd.f32 %v2318, %v2319
        %v2321 = vsel %vm899, %v2267, 0.0
        %v2322 = vadd.f32 %v2320, %v2321
        %v2323 = vsel %vm899, %v2313, 0.0
        %v2324 = vadd.f32 %v2322, %v2323
        %v2326 = vlaneseq
        %v2327 = vshrl.u32 %v2326, 7
        %v2328 = vsub.s32 0, %v2327
        %v2329 = vrot.slane %v993, %v2328
        %v2331 = vadd.f32 %v2324, %v2329
        %v2332 = vadd.f32 %v895, %v2331
        %s2333 = scalar_lea.vmem [#allocation28], 1
        %v2334 = vld [vmem:[%s2333] sm:$0x1]
        %s2335 = scalar_lea.vmem [#allocation29], 1
        %v2336 = vld [vmem:[%s2335] sm:$0x1]
        %v2337 = vsel %vm899, %v2332, 0.0
        %2338 = vadd.xlane.f32.xlu0 %v2337
        %v2339 = vpop.xlane.xlu0 %2338
        %v2340 = vmul.f32 %v2339, %v903
        %v2341 = vsub.f32 %v2332, %v2340
        %v2342 = vmul.f32 %v2341, %v2341
        %v2343 = vsel %vm899, %v2342, 0.0
        %2344 = vadd.xlane.f32.xlu0 %v2343
        %v2345 = vpop.xlane.xlu0 %2344
        %v2346 = vmul.f32 %v2345, %v903
        %v2347 = vadd.f32 %v2346, 1e-05
        %v2348 = vrsqrt.pop %v2347
        %v2349 = vmul.f32 %v2341, %v2348
        %v2351 = vlaneseq
        %v2352 = vshrl.u32 %v2351, 7
        %v2353 = vsub.s32 0, %v2352
        %v2354 = vrot.slane %v2334, %v2353
        %v2356 = vmul.f32 %v2349, %v2354
        %v2358 = vlaneseq
        %v2359 = vshrl.u32 %v2358, 7
        %v2360 = vsub.s32 0, %v2359
        %v2361 = vrot.slane %v2336, %v2360
        %v2363 = vadd.f32 %v2356, %v2361
        %v2364 = vld [vmem:[%s770] sm:$0xff]
        %v2365 = vld [vmem:[#allocation16] sm:$0xf]
        %v2366 = vld [vmem:[#allocation16 + $0x4] sm:$0xf]
        %v2367 = vld [vmem:[#allocation16 + $0x8] sm:$0xf]
        %v2368 = vld [vmem:[#allocation16 + $0xc] sm:$0xf]
        %v2369 = vld [vmem:[#allocation16 + $0x10] sm:$0xf]
        %v2370 = vld [vmem:[#allocation16 + $0x14] sm:$0xf]
        %v2371 = vld [vmem:[#allocation16 + $0x18] sm:$0xf]
        %v2372 = vld [vmem:[#allocation16 + $0x1c] sm:$0xf]
        %v2373 = vld [vmem:[#allocation16 + $0x20] sm:$0xf]
        %v2374 = vld [vmem:[#allocation16 + $0x24] sm:$0xf]
        %v2375 = vld [vmem:[#allocation16 + $0x28] sm:$0xf]
        %v2376 = vld [vmem:[#allocation16 + $0x2c] sm:$0xf]
        %v2377 = vld [vmem:[#allocation16 + $0x30] sm:$0xf]
        %v2378 = vld [vmem:[#allocation16 + $0x34] sm:$0xf]
        %v2379 = vld [vmem:[#allocation16 + $0x38] sm:$0xf]
        %v2380 = vld [vmem:[#allocation16 + $0x3c] sm:$0xf]
        %v2381 = vld [vmem:[#allocation16 + $0x40] sm:$0xf]
        %v2382 = vld [vmem:[#allocation16 + $0x44] sm:$0xf]
        %v2383 = vld [vmem:[#allocation16 + $0x48] sm:$0xf]
        %v2384 = vld [vmem:[#allocation16 + $0x4c] sm:$0xf]
        %v2385 = vld [vmem:[#allocation16 + $0x50] sm:$0xf]
        %v2386 = vld [vmem:[#allocation16 + $0x54] sm:$0xf]
        %v2387 = vld [vmem:[#allocation16 + $0x58] sm:$0xf]
        %v2388 = vld [vmem:[#allocation16 + $0x5c] sm:$0xf]
        %v2389 = vld [vmem:[#allocation16 + $0x60] sm:$0xf]
        %v2390 = vld [vmem:[#allocation16 + $0x64] sm:$0xf]
        %v2391 = vld [vmem:[#allocation16 + $0x68] sm:$0xf]
        %v2392 = vld [vmem:[#allocation16 + $0x6c] sm:$0xf]
        %v2393 = vld [vmem:[#allocation16 + $0x70] sm:$0xf]
        %v2394 = vld [vmem:[#allocation16 + $0x74] sm:$0xf]
        %v2395 = vld [vmem:[#allocation16 + $0x78] sm:$0xf]
        %v2396 = vld [vmem:[#allocation16 + $0x7c] sm:$0xf]
        %v2397 = vld [vmem:[#allocation16 + $0x80] sm:$0xf]
        %v2398 = vld [vmem:[#allocation16 + $0x84] sm:$0xf]
        %v2399 = vld [vmem:[#allocation16 + $0x88] sm:$0xf]
        %v2400 = vld [vmem:[#allocation16 + $0x8c] sm:$0xf]
        %v2401 = vld [vmem:[#allocation16 + $0x90] sm:$0xf]
        %v2402 = vld [vmem:[#allocation16 + $0x94] sm:$0xf]
        %v2403 = vld [vmem:[#allocation16 + $0x98] sm:$0xf]
        %v2404 = vld [vmem:[#allocation16 + $0x9c] sm:$0xf]
        %v2405 = vld [vmem:[#allocation16 + $0xa0] sm:$0xf]
        %v2406 = vld [vmem:[#allocation16 + $0xa4] sm:$0xf]
        %v2407 = vld [vmem:[#allocation16 + $0xa8] sm:$0xf]
        %v2408 = vld [vmem:[#allocation16 + $0xac] sm:$0xf]
        %v2409 = vld [vmem:[#allocation16 + $0xb0] sm:$0xf]
        %v2410 = vld [vmem:[#allocation16 + $0xb4] sm:$0xf]
        %v2411 = vld [vmem:[#allocation16 + $0xb8] sm:$0xf]
        %v2412 = vld [vmem:[#allocation16 + $0xbc] sm:$0xf]
        %v2413 = vld [vmem:[#allocation17] sm:$0x1]
        %v2414 = vld [vmem:[#allocation17 + $0x1] sm:$0x1]
        %v2415 = vld [vmem:[#allocation17 + $0x2] sm:$0x1]
        %v2416 = vld [vmem:[#allocation17 + $0x3] sm:$0x1]
        %v2417 = vld [vmem:[#allocation17 + $0x4] sm:$0x1]
        %v2418 = vld [vmem:[#allocation17 + $0x5] sm:$0x1]
        %v2419 = vld [vmem:[#allocation17 + $0x6] sm:$0x1]
        %v2420 = vld [vmem:[#allocation17 + $0x7] sm:$0x1]
        %v2421 = vld [vmem:[#allocation17 + $0x8] sm:$0x1]
        %v2422 = vld [vmem:[#allocation17 + $0x9] sm:$0x1]
        %v2423 = vld [vmem:[#allocation17 + $0xa] sm:$0x1]
        %v2424 = vld [vmem:[#allocation17 + $0xb] sm:$0x1]
        %v2425 = vld [vmem:[#allocation19] sm:$0xf]
        %v2426 = vld [vmem:[#allocation19 + $0x4] sm:$0xf]
        %v2427 = vld [vmem:[#allocation19 + $0x8] sm:$0xf]
        %v2428 = vld [vmem:[#allocation19 + $0xc] sm:$0xf]
        %v2429 = vld [vmem:[#allocation20] sm:$0x1]
        %v2430 = vpack.c.bf16 %v2363, %v2363
        %v2431 = vpack.c.bf16 %v896, %v896
        %v2436 = vlaneseq
        %v2437 = vshrl.u32 %v2436, 7
        %v2438 = vsub.s32 0, %v2437
        %v2439 = vrot.slane %v2413, %v2438
        %v2440 = vlaneseq
        %v2441 = vshrl.u32 %v2440, 7
        %v2442 = vsub.s32 0, %v2441
        %v2443 = vrot.slane %v2414, %v2442
        %v2444 = vlaneseq
        %v2445 = vshrl.u32 %v2444, 7
        %v2446 = vsub.s32 0, %v2445
        %v2447 = vrot.slane %v2415, %v2446
        %v2448 = vlaneseq
        %v2449 = vshrl.u32 %v2448, 7
        %v2450 = vsub.s32 0, %v2449
        %v2451 = vrot.slane %v2416, %v2450
        %v2460 = vunpack.c.l.b16 %v2365
        %v2461 = vunpack.c.l.b16 %v2366
        %v2462 = vunpack.c.l.b16 %v2367
        %v2463 = vunpack.c.l.b16 %v2368
        %v2464 = vpack.c.b16 %v2461, %v2460
        %v2465 = vpack.c.b16 %v2463, %v2462
        %v2469 = vsel %vm899, %v2430, 0
        %2471 = vmatprep.subr.bf16.mxu0 0
        %2472 = vmatpush1.bf16.msra.mxu0 %v2464
        %2473 = vmatprep.subr.bf16.mxu0 0
        %2474 = vmatpush1.bf16.msra.mxu0 %v2465
        %2475 = vmatprep.subr.bf16.mxu0 0
        %2476 = vmatpush1.bf16.msra.mxu0 0
        %2477 = vmatprep.subr.bf16.mxu0 0
        %2478 = vmatpush1.bf16.msra.mxu0 0
        %2479 = vmatprep.subr.bf16.mxu0 0
        %2480 = vmatpush1.bf16.msra.mxu0 0
        %2481 = vmatprep.subr.bf16.mxu0 0
        %2482 = vmatpush1.bf16.msra.mxu0 0
        %2483 = vmatprep.subr.bf16.mxu0 0
        %2484 = vmatpush1.bf16.msra.mxu0 0
        %2485 = vmatprep.subr.bf16.mxu0 0
        %2486 = vmatpush1.bf16.msra.mxu0 0
        %2487 = vmatprep.subr.bf16.mxu0 0
        %2488 = vmatpush1.bf16.msra.mxu0 0
        %2489 = vmatprep.subr.bf16.mxu0 0
        %2490 = vmatpush1.bf16.msra.mxu0 0
        %2491 = vmatprep.subr.bf16.mxu0 0
        %2492 = vmatpush1.bf16.msra.mxu0 0
        %2493 = vmatprep.subr.bf16.mxu0 0
        %2494 = vmatpush1.bf16.msra.mxu0 0
        %2495 = vmatprep.subr.bf16.mxu0 0
        %2496 = vmatpush1.bf16.msra.mxu0 0
        %2497 = vmatprep.subr.bf16.mxu0 0
        %2498 = vmatpush1.bf16.msra.mxu0 0
        %2499 = vmatprep.subr.bf16.mxu0 0
        %2500 = vmatpush1.bf16.msra.mxu0 0
        %2501 = vmatprep.subr.bf16.mxu0 0
        %2502 = vmatpush1.bf16.msra.mxu0 0
        %2503 = vmatprep.mubr.bf16.mxu0 0
        %2504 = vmatmul.mubr.bf16.gmra.mrb[0].mxu0 %v2469
        %v2505 = vpop.f32.mrb[0].mxu0
        %v2506 = vadd.f32 %v2439, %v2505
        %v2507 = vpop.f32.mrb[0].mxu0
        %v2508 = vpop.f32.mrb[0].mxu0
        %v2509 = vpop.f32.mrb[0].mxu0
        %2510 = vdwg.mxu0
        %v2515 = vunpack.c.l.b16 %v2369
        %v2516 = vunpack.c.l.b16 %v2370
        %v2517 = vunpack.c.l.b16 %v2371
        %v2518 = vunpack.c.l.b16 %v2372
        %v2519 = vpack.c.b16 %v2516, %v2515
        %v2520 = vpack.c.b16 %v2518, %v2517
        %2523 = vmatprep.subr.bf16.mxu0 0
        %2524 = vmatpush1.bf16.msra.mxu0 %v2519
        %2525 = vmatprep.subr.bf16.mxu0 0
        %2526 = vmatpush1.bf16.msra.mxu0 %v2520
        %2527 = vmatprep.subr.bf16.mxu0 0
        %2528 = vmatpush1.bf16.msra.mxu0 0
        %2529 = vmatprep.subr.bf16.mxu0 0
        %2530 = vmatpush1.bf16.msra.mxu0 0
        %2531 = vmatprep.subr.bf16.mxu0 0
        %2532 = vmatpush1.bf16.msra.mxu0 0
        %2533 = vmatprep.subr.bf16.mxu0 0
        %2534 = vmatpush1.bf16.msra.mxu0 0
        %2535 = vmatprep.subr.bf16.mxu0 0
        %2536 = vmatpush1.bf16.msra.mxu0 0
        %2537 = vmatprep.subr.bf16.mxu0 0
        %2538 = vmatpush1.bf16.msra.mxu0 0
        %2539 = vmatprep.subr.bf16.mxu0 0
        %2540 = vmatpush1.bf16.msra.mxu0 0
        %2541 = vmatprep.subr.bf16.mxu0 0
        %2542 = vmatpush1.bf16.msra.mxu0 0
        %2543 = vmatprep.subr.bf16.mxu0 0
        %2544 = vmatpush1.bf16.msra.mxu0 0
        %2545 = vmatprep.subr.bf16.mxu0 0
        %2546 = vmatpush1.bf16.msra.mxu0 0
        %2547 = vmatprep.subr.bf16.mxu0 0
        %2548 = vmatpush1.bf16.msra.mxu0 0
        %2549 = vmatprep.subr.bf16.mxu0 0
        %2550 = vmatpush1.bf16.msra.mxu0 0
        %2551 = vmatprep.subr.bf16.mxu0 0
        %2552 = vmatpush1.bf16.msra.mxu0 0
        %2553 = vmatprep.subr.bf16.mxu0 0
        %2554 = vmatpush1.bf16.msra.mxu0 0
        %2555 = vmatprep.mubr.bf16.mxu0 0
        %2556 = vmatmul.mubr.bf16.gmra.mrb[0].mxu0 %v2469
        %v2557 = vpop.f32.mrb[0].mxu0
        %v2558 = vadd.f32 %v2443, %v2557
        %v2559 = vpop.f32.mrb[0].mxu0
        %v2560 = vpop.f32.mrb[0].mxu0
        %v2561 = vpop.f32.mrb[0].mxu0
        %2562 = vdwg.mxu0
        %v2567 = vunpack.c.l.b16 %v2373
        %v2568 = vunpack.c.l.b16 %v2374
        %v2569 = vunpack.c.l.b16 %v2375
        %v2570 = vunpack.c.l.b16 %v2376
        %v2571 = vpack.c.b16 %v2568, %v2567
        %v2572 = vpack.c.b16 %v2570, %v2569
        %2575 = vmatprep.subr.bf16.mxu0 0
        %2576 = vmatpush1.bf16.msra.mxu0 %v2571
        %2577 = vmatprep.subr.bf16.mxu0 0
        %2578 = vmatpush1.bf16.msra.mxu0 %v2572
        %2579 = vmatprep.subr.bf16.mxu0 0
        %2580 = vmatpush1.bf16.msra.mxu0 0
        %2581 = vmatprep.subr.bf16.mxu0 0
        %2582 = vmatpush1.bf16.msra.mxu0 0
        %2583 = vmatprep.subr.bf16.mxu0 0
        %2584 = vmatpush1.bf16.msra.mxu0 0
        %2585 = vmatprep.subr.bf16.mxu0 0
        %2586 = vmatpush1.bf16.msra.mxu0 0
        %2587 = vmatprep.subr.bf16.mxu0 0
        %2588 = vmatpush1.bf16.msra.mxu0 0
        %2589 = vmatprep.subr.bf16.mxu0 0
        %2590 = vmatpush1.bf16.msra.mxu0 0
        %2591 = vmatprep.subr.bf16.mxu0 0
        %2592 = vmatpush1.bf16.msra.mxu0 0
        %2593 = vmatprep.subr.bf16.mxu0 0
        %2594 = vmatpush1.bf16.msra.mxu0 0
        %2595 = vmatprep.subr.bf16.mxu0 0
        %2596 = vmatpush1.bf16.msra.mxu0 0
        %2597 = vmatprep.subr.bf16.mxu0 0
        %2598 = vmatpush1.bf16.msra.mxu0 0
        %2599 = vmatprep.subr.bf16.mxu0 0
        %2600 = vmatpush1.bf16.msra.mxu0 0
        %2601 = vmatprep.subr.bf16.mxu0 0
        %2602 = vmatpush1.bf16.msra.mxu0 0
        %2603 = vmatprep.subr.bf16.mxu0 0
        %2604 = vmatpush1.bf16.msra.mxu0 0
        %2605 = vmatprep.subr.bf16.mxu0 0
        %2606 = vmatpush1.bf16.msra.mxu0 0
        %2607 = vmatprep.mubr.bf16.mxu0 0
        %2608 = vmatmul.mubr.bf16.gmra.mrb[0].mxu0 %v2469
        %v2609 = vpop.f32.mrb[0].mxu0
        %v2610 = vadd.f32 %v2447, %v2609
        %v2611 = vpop.f32.mrb[0].mxu0
        %v2612 = vpop.f32.mrb[0].mxu0
        %v2613 = vpop.f32.mrb[0].mxu0
        %2614 = vdwg.mxu0
        %v2619 = vunpack.c.l.b16 %v2377
        %v2620 = vunpack.c.l.b16 %v2378
        %v2621 = vunpack.c.l.b16 %v2379
        %v2622 = vunpack.c.l.b16 %v2380
        %v2623 = vpack.c.b16 %v2620, %v2619
        %v2624 = vpack.c.b16 %v2622, %v2621
        %2627 = vmatprep.subr.bf16.mxu0 0
        %2628 = vmatpush1.bf16.msra.mxu0 %v2623
        %2629 = vmatprep.subr.bf16.mxu0 0
        %2630 = vmatpush1.bf16.msra.mxu0 %v2624
        %2631 = vmatprep.subr.bf16.mxu0 0
        %2632 = vmatpush1.bf16.msra.mxu0 0
        %2633 = vmatprep.subr.bf16.mxu0 0
        %2634 = vmatpush1.bf16.msra.mxu0 0
        %2635 = vmatprep.subr.bf16.mxu0 0
        %2636 = vmatpush1.bf16.msra.mxu0 0
        %2637 = vmatprep.subr.bf16.mxu0 0
        %2638 = vmatpush1.bf16.msra.mxu0 0
        %2639 = vmatprep.subr.bf16.mxu0 0
        %2640 = vmatpush1.bf16.msra.mxu0 0
        %2641 = vmatprep.subr.bf16.mxu0 0
        %2642 = vmatpush1.bf16.msra.mxu0 0
        %2643 = vmatprep.subr.bf16.mxu0 0
        %2644 = vmatpush1.bf16.msra.mxu0 0
        %2645 = vmatprep.subr.bf16.mxu0 0
        %2646 = vmatpush1.bf16.msra.mxu0 0
        %2647 = vmatprep.subr.bf16.mxu0 0
        %2648 = vmatpush1.bf16.msra.mxu0 0
        %2649 = vmatprep.subr.bf16.mxu0 0
        %2650 = vmatpush1.bf16.msra.mxu0 0
        %2651 = vmatprep.subr.bf16.mxu0 0
        %2652 = vmatpush1.bf16.msra.mxu0 0
        %2653 = vmatprep.subr.bf16.mxu0 0
        %2654 = vmatpush1.bf16.msra.mxu0 0
        %2655 = vmatprep.subr.bf16.mxu0 0
        %2656 = vmatpush1.bf16.msra.mxu0 0
        %2657 = vmatprep.subr.bf16.mxu0 0
        %2658 = vmatpush1.bf16.msra.mxu0 0
        %2659 = vmatprep.mubr.bf16.mxu0 0
        %2660 = vmatmul.mubr.bf16.gmra.mrb[0].mxu0 %v2469
        %v2661 = vpop.f32.mrb[0].mxu0
        %v2662 = vadd.f32 %v2451, %v2661
        %v2663 = vpop.f32.mrb[0].mxu0
        %v2664 = vpop.f32.mrb[0].mxu0
        %v2665 = vpop.f32.mrb[0].mxu0
        %2666 = vdwg.mxu0
        %v2667 = vmul.f32 %v2506, 0.35355338
        %v2668 = vmul.f32 %v2558, 0.35355338
        %v2669 = vmul.f32 %v2610, 0.35355338
        %v2670 = vmul.f32 %v2662, 0.35355338
        %v2675 = vlaneseq
        %v2676 = vshrl.u32 %v2675, 7
        %v2677 = vsub.s32 0, %v2676
        %v2678 = vrot.slane %v2417, %v2677
        %v2679 = vlaneseq
        %v2680 = vshrl.u32 %v2679, 7
        %v2681 = vsub.s32 0, %v2680
        %v2682 = vrot.slane %v2418, %v2681
        %v2683 = vlaneseq
        %v2684 = vshrl.u32 %v2683, 7
        %v2685 = vsub.s32 0, %v2684
        %v2686 = vrot.slane %v2419, %v2685
        %v2687 = vlaneseq
        %v2688 = vshrl.u32 %v2687, 7
        %v2689 = vsub.s32 0, %v2688
        %v2690 = vrot.slane %v2420, %v2689
        %v2699 = vunpack.c.l.b16 %v2381
        %v2700 = vunpack.c.l.b16 %v2382
        %v2701 = vunpack.c.l.b16 %v2383
        %v2702 = vunpack.c.l.b16 %v2384
        %v2703 = vpack.c.b16 %v2700, %v2699
        %v2704 = vpack.c.b16 %v2702, %v2701
        %v2708 = vsel %vm899, %v2431, 0
        %2710 = vmatprep.subr.bf16.mxu0 0
        %2711 = vmatpush1.bf16.msra.mxu0 %v2703
        %2712 = vmatprep.subr.bf16.mxu0 0
        %2713 = vmatpush1.bf16.msra.mxu0 %v2704
        %2714 = vmatprep.subr.bf16.mxu0 0
        %2715 = vmatpush1.bf16.msra.mxu0 0
        %2716 = vmatprep.subr.bf16.mxu0 0
        %2717 = vmatpush1.bf16.msra.mxu0 0
        %2718 = vmatprep.subr.bf16.mxu0 0
        %2719 = vmatpush1.bf16.msra.mxu0 0
        %2720 = vmatprep.subr.bf16.mxu0 0
        %2721 = vmatpush1.bf16.msra.mxu0 0
        %2722 = vmatprep.subr.bf16.mxu0 0
        %2723 = vmatpush1.bf16.msra.mxu0 0
        %2724 = vmatprep.subr.bf16.mxu0 0
        %2725 = vmatpush1.bf16.msra.mxu0 0
        %2726 = vmatprep.subr.bf16.mxu0 0
        %2727 = vmatpush1.bf16.msra.mxu0 0
        %2728 = vmatprep.subr.bf16.mxu0 0
        %2729 = vmatpush1.bf16.msra.mxu0 0
        %2730 = vmatprep.subr.bf16.mxu0 0
        %2731 = vmatpush1.bf16.msra.mxu0 0
        %2732 = vmatprep.subr.bf16.mxu0 0
        %2733 = vmatpush1.bf16.msra.mxu0 0
        %2734 = vmatprep.subr.bf16.mxu0 0
        %2735 = vmatpush1.bf16.msra.mxu0 0
        %2736 = vmatprep.subr.bf16.mxu0 0
        %2737 = vmatpush1.bf16.msra.mxu0 0
        %2738 = vmatprep.subr.bf16.mxu0 0
        %2739 = vmatpush1.bf16.msra.mxu0 0
        %2740 = vmatprep.subr.bf16.mxu0 0
        %2741 = vmatpush1.bf16.msra.mxu0 0
        %2742 = vmatprep.mubr.bf16.mxu0 0
        %2743 = vmatmul.mubr.bf16.gmra.mrb[0].mxu0 %v2708
        %v2744 = vpop.f32.mrb[0].mxu0
        %v2745 = vadd.f32 %v2678, %v2744
        %v2746 = vpop.f32.mrb[0].mxu0
        %v2747 = vpop.f32.mrb[0].mxu0
        %v2748 = vpop.f32.mrb[0].mxu0
        %2749 = vdwg.mxu0
        %v2754 = vunpack.c.l.b16 %v2385
        %v2755 = vunpack.c.l.b16 %v2386
        %v2756 = vunpack.c.l.b16 %v2387
        %v2757 = vunpack.c.l.b16 %v2388
        %v2758 = vpack.c.b16 %v2755, %v2754
        %v2759 = vpack.c.b16 %v2757, %v2756
        %2762 = vmatprep.subr.bf16.mxu0 0
        %2763 = vmatpush1.bf16.msra.mxu0 %v2758
        %2764 = vmatprep.subr.bf16.mxu0 0
        %2765 = vmatpush1.bf16.msra.mxu0 %v2759
        %2766 = vmatprep.subr.bf16.mxu0 0
        %2767 = vmatpush1.bf16.msra.mxu0 0
        %2768 = vmatprep.subr.bf16.mxu0 0
        %2769 = vmatpush1.bf16.msra.mxu0 0
        %2770 = vmatprep.subr.bf16.mxu0 0
        %2771 = vmatpush1.bf16.msra.mxu0 0
        %2772 = vmatprep.subr.bf16.mxu0 0
        %2773 = vmatpush1.bf16.msra.mxu0 0
        %2774 = vmatprep.subr.bf16.mxu0 0
        %2775 = vmatpush1.bf16.msra.mxu0 0
        %2776 = vmatprep.subr.bf16.mxu0 0
        %2777 = vmatpush1.bf16.msra.mxu0 0
        %2778 = vmatprep.subr.bf16.mxu0 0
        %2779 = vmatpush1.bf16.msra.mxu0 0
        %2780 = vmatprep.subr.bf16.mxu0 0
        %2781 = vmatpush1.bf16.msra.mxu0 0
        %2782 = vmatprep.subr.bf16.mxu0 0
        %2783 = vmatpush1.bf16.msra.mxu0 0
        %2784 = vmatprep.subr.bf16.mxu0 0
        %2785 = vmatpush1.bf16.msra.mxu0 0
        %2786 = vmatprep.subr.bf16.mxu0 0
        %2787 = vmatpush1.bf16.msra.mxu0 0
        %2788 = vmatprep.subr.bf16.mxu0 0
        %2789 = vmatpush1.bf16.msra.mxu0 0
        %2790 = vmatprep.subr.bf16.mxu0 0
        %2791 = vmatpush1.bf16.msra.mxu0 0
        %2792 = vmatprep.subr.bf16.mxu0 0
        %2793 = vmatpush1.bf16.msra.mxu0 0
        %2794 = vmatprep.mubr.bf16.mxu0 0
        %2795 = vmatmul.mubr.bf16.gmra.mrb[0].mxu0 %v2708
        %v2796 = vpop.f32.mrb[0].mxu0
        %v2797 = vadd.f32 %v2682, %v2796
        %v2798 = vpop.f32.mrb[0].mxu0
        %v2799 = vpop.f32.mrb[0].mxu0
        %v2800 = vpop.f32.mrb[0].mxu0
        %2801 = vdwg.mxu0
        %v2806 = vunpack.c.l.b16 %v2389
        %v2807 = vunpack.c.l.b16 %v2390
        %v2808 = vunpack.c.l.b16 %v2391
        %v2809 = vunpack.c.l.b16 %v2392
        %v2810 = vpack.c.b16 %v2807, %v2806
        %v2811 = vpack.c.b16 %v2809, %v2808
        %2814 = vmatprep.subr.bf16.mxu0 0
        %2815 = vmatpush1.bf16.msra.mxu0 %v2810
        %2816 = vmatprep.subr.bf16.mxu0 0
        %2817 = vmatpush1.bf16.msra.mxu0 %v2811
        %2818 = vmatprep.subr.bf16.mxu0 0
        %2819 = vmatpush1.bf16.msra.mxu0 0
        %2820 = vmatprep.subr.bf16.mxu0 0
        %2821 = vmatpush1.bf16.msra.mxu0 0
        %2822 = vmatprep.subr.bf16.mxu0 0
        %2823 = vmatpush1.bf16.msra.mxu0 0
        %2824 = vmatprep.subr.bf16.mxu0 0
        %2825 = vmatpush1.bf16.msra.mxu0 0
        %2826 = vmatprep.subr.bf16.mxu0 0
        %2827 = vmatpush1.bf16.msra.mxu0 0
        %2828 = vmatprep.subr.bf16.mxu0 0
        %2829 = vmatpush1.bf16.msra.mxu0 0
        %2830 = vmatprep.subr.bf16.mxu0 0
        %2831 = vmatpush1.bf16.msra.mxu0 0
        %2832 = vmatprep.subr.bf16.mxu0 0
        %2833 = vmatpush1.bf16.msra.mxu0 0
        %2834 = vmatprep.subr.bf16.mxu0 0
        %2835 = vmatpush1.bf16.msra.mxu0 0
        %2836 = vmatprep.subr.bf16.mxu0 0
        %2837 = vmatpush1.bf16.msra.mxu0 0
        %2838 = vmatprep.subr.bf16.mxu0 0
        %2839 = vmatpush1.bf16.msra.mxu0 0
        %2840 = vmatprep.subr.bf16.mxu0 0
        %2841 = vmatpush1.bf16.msra.mxu0 0
        %2842 = vmatprep.subr.bf16.mxu0 0
        %2843 = vmatpush1.bf16.msra.mxu0 0
        %2844 = vmatprep.subr.bf16.mxu0 0
        %2845 = vmatpush1.bf16.msra.mxu0 0
        %2846 = vmatprep.mubr.bf16.mxu0 0
        %2847 = vmatmul.mubr.bf16.gmra.mrb[0].mxu0 %v2708
        %v2848 = vpop.f32.mrb[0].mxu0
        %v2849 = vadd.f32 %v2686, %v2848
        %v2850 = vpop.f32.mrb[0].mxu0
        %v2851 = vpop.f32.mrb[0].mxu0
        %v2852 = vpop.f32.mrb[0].mxu0
        %2853 = vdwg.mxu0
        %v2858 = vunpack.c.l.b16 %v2393
        %v2859 = vunpack.c.l.b16 %v2394
        %v2860 = vunpack.c.l.b16 %v2395
        %v2861 = vunpack.c.l.b16 %v2396
        %v2862 = vpack.c.b16 %v2859, %v2858
        %v2863 = vpack.c.b16 %v2861, %v2860
        %2866 = vmatprep.subr.bf16.mxu0 0
        %2867 = vmatpush1.bf16.msra.mxu0 %v2862
        %2868 = vmatprep.subr.bf16.mxu0 0
        %2869 = vmatpush1.bf16.msra.mxu0 %v2863
        %2870 = vmatprep.subr.bf16.mxu0 0
        %2871 = vmatpush1.bf16.msra.mxu0 0
        %2872 = vmatprep.subr.bf16.mxu0 0
        %2873 = vmatpush1.bf16.msra.mxu0 0
        %2874 = vmatprep.subr.bf16.mxu0 0
        %2875 = vmatpush1.bf16.msra.mxu0 0
        %2876 = vmatprep.subr.bf16.mxu0 0
        %2877 = vmatpush1.bf16.msra.mxu0 0
        %2878 = vmatprep.subr.bf16.mxu0 0
        %2879 = vmatpush1.bf16.msra.mxu0 0
        %2880 = vmatprep.subr.bf16.mxu0 0
        %2881 = vmatpush1.bf16.msra.mxu0 0
        %2882 = vmatprep.subr.bf16.mxu0 0
        %2883 = vmatpush1.bf16.msra.mxu0 0
        %2884 = vmatprep.subr.bf16.mxu0 0
        %2885 = vmatpush1.bf16.msra.mxu0 0
        %2886 = vmatprep.subr.bf16.mxu0 0
        %2887 = vmatpush1.bf16.msra.mxu0 0
        %2888 = vmatprep.subr.bf16.mxu0 0
        %2889 = vmatpush1.bf16.msra.mxu0 0
        %2890 = vmatprep.subr.bf16.mxu0 0
        %2891 = vmatpush1.bf16.msra.mxu0 0
        %2892 = vmatprep.subr.bf16.mxu0 0
        %2893 = vmatpush1.bf16.msra.mxu0 0
        %2894 = vmatprep.subr.bf16.mxu0 0
        %2895 = vmatpush1.bf16.msra.mxu0 0
        %2896 = vmatprep.subr.bf16.mxu0 0
        %2897 = vmatpush1.bf16.msra.mxu0 0
        %2898 = vmatprep.mubr.bf16.mxu0 0
        %2899 = vmatmul.mubr.bf16.gmra.mrb[0].mxu0 %v2708
        %v2900 = vpop.f32.mrb[0].mxu0
        %v2901 = vadd.f32 %v2690, %v2900
        %v2902 = vpop.f32.mrb[0].mxu0
        %v2903 = vpop.f32.mrb[0].mxu0
        %v2904 = vpop.f32.mrb[0].mxu0
        %2905 = vdwg.mxu0
        %v2910 = vlaneseq
        %v2911 = vshrl.u32 %v2910, 7
        %v2912 = vsub.s32 0, %v2911
        %v2913 = vrot.slane %v2421, %v2912
        %v2914 = vlaneseq
        %v2915 = vshrl.u32 %v2914, 7
        %v2916 = vsub.s32 0, %v2915
        %v2917 = vrot.slane %v2422, %v2916
        %v2918 = vlaneseq
        %v2919 = vshrl.u32 %v2918, 7
        %v2920 = vsub.s32 0, %v2919
        %v2921 = vrot.slane %v2423, %v2920
        %v2922 = vlaneseq
        %v2923 = vshrl.u32 %v2922, 7
        %v2924 = vsub.s32 0, %v2923
        %v2925 = vrot.slane %v2424, %v2924
        %v2934 = vunpack.c.l.b16 %v2397
        %v2935 = vunpack.c.l.b16 %v2398
        %v2936 = vunpack.c.l.b16 %v2399
        %v2937 = vunpack.c.l.b16 %v2400
        %v2938 = vpack.c.b16 %v2935, %v2934
        %v2939 = vpack.c.b16 %v2937, %v2936
        %2942 = vmatprep.subr.bf16.mxu0 0
        %2943 = vmatpush1.bf16.msra.mxu0 %v2938
        %2944 = vmatprep.subr.bf16.mxu0 0
        %2945 = vmatpush1.bf16.msra.mxu0 %v2939
        %2946 = vmatprep.subr.bf16.mxu0 0
        %2947 = vmatpush1.bf16.msra.mxu0 0
        %2948 = vmatprep.subr.bf16.mxu0 0
        %2949 = vmatpush1.bf16.msra.mxu0 0
        %2950 = vmatprep.subr.bf16.mxu0 0
        %2951 = vmatpush1.bf16.msra.mxu0 0
        %2952 = vmatprep.subr.bf16.mxu0 0
        %2953 = vmatpush1.bf16.msra.mxu0 0
        %2954 = vmatprep.subr.bf16.mxu0 0
        %2955 = vmatpush1.bf16.msra.mxu0 0
        %2956 = vmatprep.subr.bf16.mxu0 0
        %2957 = vmatpush1.bf16.msra.mxu0 0
        %2958 = vmatprep.subr.bf16.mxu0 0
        %2959 = vmatpush1.bf16.msra.mxu0 0
        %2960 = vmatprep.subr.bf16.mxu0 0
        %2961 = vmatpush1.bf16.msra.mxu0 0
        %2962 = vmatprep.subr.bf16.mxu0 0
        %2963 = vmatpush1.bf16.msra.mxu0 0
        %2964 = vmatprep.subr.bf16.mxu0 0
        %2965 = vmatpush1.bf16.msra.mxu0 0
        %2966 = vmatprep.subr.bf16.mxu0 0
        %2967 = vmatpush1.bf16.msra.mxu0 0
        %2968 = vmatprep.subr.bf16.mxu0 0
        %2969 = vmatpush1.bf16.msra.mxu0 0
        %2970 = vmatprep.subr.bf16.mxu0 0
        %2971 = vmatpush1.bf16.msra.mxu0 0
        %2972 = vmatprep.subr.bf16.mxu0 0
        %2973 = vmatpush1.bf16.msra.mxu0 0
        %2974 = vmatprep.mubr.bf16.mxu0 0
        %2975 = vmatmul.mubr.bf16.gmra.mrb[0].mxu0 %v2708
        %v2976 = vpop.f32.mrb[0].mxu0
        %v2977 = vadd.f32 %v2913, %v2976
        %v2978 = vpop.f32.mrb[0].mxu0
        %v2979 = vpop.f32.mrb[0].mxu0
        %v2980 = vpop.f32.mrb[0].mxu0
        %2981 = vdwg.mxu0
        %v2986 = vunpack.c.l.b16 %v2401
        %v2987 = vunpack.c.l.b16 %v2402
        %v2988 = vunpack.c.l.b16 %v2403
        %v2989 = vunpack.c.l.b16 %v2404
        %v2990 = vpack.c.b16 %v2987, %v2986
        %v2991 = vpack.c.b16 %v2989, %v2988
        %2994 = vmatprep.subr.bf16.mxu0 0
        %2995 = vmatpush1.bf16.msra.mxu0 %v2990
        %2996 = vmatprep.subr.bf16.mxu0 0
        %2997 = vmatpush1.bf16.msra.mxu0 %v2991
        %2998 = vmatprep.subr.bf16.mxu0 0
        %2999 = vmatpush1.bf16.msra.mxu0 0
        %3000 = vmatprep.subr.bf16.mxu0 0
        %3001 = vmatpush1.bf16.msra.mxu0 0
        %3002 = vmatprep.subr.bf16.mxu0 0
        %3003 = vmatpush1.bf16.msra.mxu0 0
        %3004 = vmatprep.subr.bf16.mxu0 0
        %3005 = vmatpush1.bf16.msra.mxu0 0
        %3006 = vmatprep.subr.bf16.mxu0 0
        %3007 = vmatpush1.bf16.msra.mxu0 0
        %3008 = vmatprep.subr.bf16.mxu0 0
        %3009 = vmatpush1.bf16.msra.mxu0 0
        %3010 = vmatprep.subr.bf16.mxu0 0
        %3011 = vmatpush1.bf16.msra.mxu0 0
        %3012 = vmatprep.subr.bf16.mxu0 0
        %3013 = vmatpush1.bf16.msra.mxu0 0
        %3014 = vmatprep.subr.bf16.mxu0 0
        %3015 = vmatpush1.bf16.msra.mxu0 0
        %3016 = vmatprep.subr.bf16.mxu0 0
        %3017 = vmatpush1.bf16.msra.mxu0 0
        %3018 = vmatprep.subr.bf16.mxu0 0
        %3019 = vmatpush1.bf16.msra.mxu0 0
        %3020 = vmatprep.subr.bf16.mxu0 0
        %3021 = vmatpush1.bf16.msra.mxu0 0
        %3022 = vmatprep.subr.bf16.mxu0 0
        %3023 = vmatpush1.bf16.msra.mxu0 0
        %3024 = vmatprep.subr.bf16.mxu0 0
        %3025 = vmatpush1.bf16.msra.mxu0 0
        %3026 = vmatprep.mubr.bf16.mxu0 0
        %3027 = vmatmul.mubr.bf16.gmra.mrb[0].mxu0 %v2708
        %v3028 = vpop.f32.mrb[0].mxu0
        %v3029 = vadd.f32 %v2917, %v3028
        %v3030 = vpop.f32.mrb[0].mxu0
        %v3031 = vpop.f32.mrb[0].mxu0
        %v3032 = vpop.f32.mrb[0].mxu0
        %3033 = vdwg.mxu0
        %v3038 = vunpack.c.l.b16 %v2405
        %v3039 = vunpack.c.l.b16 %v2406
        %v3040 = vunpack.c.l.b16 %v2407
        %v3041 = vunpack.c.l.b16 %v2408
        %v3042 = vpack.c.b16 %v3039, %v3038
        %v3043 = vpack.c.b16 %v3041, %v3040
        %3046 = vmatprep.subr.bf16.mxu0 0
        %3047 = vmatpush1.bf16.msra.mxu0 %v3042
        %3048 = vmatprep.subr.bf16.mxu0 0
        %3049 = vmatpush1.bf16.msra.mxu0 %v3043
        %3050 = vmatprep.subr.bf16.mxu0 0
        %3051 = vmatpush1.bf16.msra.mxu0 0
        %3052 = vmatprep.subr.bf16.mxu0 0
        %3053 = vmatpush1.bf16.msra.mxu0 0
        %3054 = vmatprep.subr.bf16.mxu0 0
        %3055 = vmatpush1.bf16.msra.mxu0 0
        %3056 = vmatprep.subr.bf16.mxu0 0
        %3057 = vmatpush1.bf16.msra.mxu0 0
        %3058 = vmatprep.subr.bf16.mxu0 0
        %3059 = vmatpush1.bf16.msra.mxu0 0
        %3060 = vmatprep.subr.bf16.mxu0 0
        %3061 = vmatpush1.bf16.msra.mxu0 0
        %3062 = vmatprep.subr.bf16.mxu0 0
        %3063 = vmatpush1.bf16.msra.mxu0 0
        %3064 = vmatprep.subr.bf16.mxu0 0
        %3065 = vmatpush1.bf16.msra.mxu0 0
        %3066 = vmatprep.subr.bf16.mxu0 0
        %3067 = vmatpush1.bf16.msra.mxu0 0
        %3068 = vmatprep.subr.bf16.mxu0 0
        %3069 = vmatpush1.bf16.msra.mxu0 0
        %3070 = vmatprep.subr.bf16.mxu0 0
        %3071 = vmatpush1.bf16.msra.mxu0 0
        %3072 = vmatprep.subr.bf16.mxu0 0
        %3073 = vmatpush1.bf16.msra.mxu0 0
        %3074 = vmatprep.subr.bf16.mxu0 0
        %3075 = vmatpush1.bf16.msra.mxu0 0
        %3076 = vmatprep.subr.bf16.mxu0 0
        %3077 = vmatpush1.bf16.msra.mxu0 0
        %3078 = vmatprep.mubr.bf16.mxu0 0
        %3079 = vmatmul.mubr.bf16.gmra.mrb[0].mxu0 %v2708
        %v3080 = vpop.f32.mrb[0].mxu0
        %v3081 = vadd.f32 %v2921, %v3080
        %v3082 = vpop.f32.mrb[0].mxu0
        %v3083 = vpop.f32.mrb[0].mxu0
        %v3084 = vpop.f32.mrb[0].mxu0
        %3085 = vdwg.mxu0
        %v3090 = vunpack.c.l.b16 %v2409
        %v3091 = vunpack.c.l.b16 %v2410
        %v3092 = vunpack.c.l.b16 %v2411
        %v3093 = vunpack.c.l.b16 %v2412
        %v3094 = vpack.c.b16 %v3091, %v3090
        %v3095 = vpack.c.b16 %v3093, %v3092
        %3098 = vmatprep.subr.bf16.mxu0 0
        %3099 = vmatpush1.bf16.msra.mxu0 %v3094
        %3100 = vmatprep.subr.bf16.mxu0 0
        %3101 = vmatpush1.bf16.msra.mxu0 %v3095
        %3102 = vmatprep.subr.bf16.mxu0 0
        %3103 = vmatpush1.bf16.msra.mxu0 0
        %3104 = vmatprep.subr.bf16.mxu0 0
        %3105 = vmatpush1.bf16.msra.mxu0 0
        %3106 = vmatprep.subr.bf16.mxu0 0
        %3107 = vmatpush1.bf16.msra.mxu0 0
        %3108 = vmatprep.subr.bf16.mxu0 0
        %3109 = vmatpush1.bf16.msra.mxu0 0
        %3110 = vmatprep.subr.bf16.mxu0 0
        %3111 = vmatpush1.bf16.msra.mxu0 0
        %3112 = vmatprep.subr.bf16.mxu0 0
        %3113 = vmatpush1.bf16.msra.mxu0 0
        %3114 = vmatprep.subr.bf16.mxu0 0
        %3115 = vmatpush1.bf16.msra.mxu0 0
        %3116 = vmatprep.subr.bf16.mxu0 0
        %3117 = vmatpush1.bf16.msra.mxu0 0
        %3118 = vmatprep.subr.bf16.mxu0 0
        %3119 = vmatpush1.bf16.msra.mxu0 0
        %3120 = vmatprep.subr.bf16.mxu0 0
        %3121 = vmatpush1.bf16.msra.mxu0 0
        %3122 = vmatprep.subr.bf16.mxu0 0
        %3123 = vmatpush1.bf16.msra.mxu0 0
        %3124 = vmatprep.subr.bf16.mxu0 0
        %3125 = vmatpush1.bf16.msra.mxu0 0
        %3126 = vmatprep.subr.bf16.mxu0 0
        %3127 = vmatpush1.bf16.msra.mxu0 0
        %3128 = vmatprep.subr.bf16.mxu0 0
        %3129 = vmatpush1.bf16.msra.mxu0 0
        %3130 = vmatprep.mubr.bf16.mxu0 0
        %3131 = vmatmul.mubr.bf16.gmra.mrb[0].mxu0 %v2708
        %v3132 = vpop.f32.mrb[0].mxu0
        %v3133 = vadd.f32 %v2925, %v3132
        %v3134 = vpop.f32.mrb[0].mxu0
        %v3135 = vpop.f32.mrb[0].mxu0
        %v3136 = vpop.f32.mrb[0].mxu0
        %3137 = vdwg.mxu0
        %v3138 = vpack.c.bf16 %v2667, %v2667
        %v3139 = vpack.c.bf16 %v2668, %v2668
        %v3140 = vpack.c.bf16 %v2669, %v2669
        %v3141 = vpack.c.bf16 %v2670, %v2670
        %v3142 = vpack.c.bf16 %v2745, %v2745
        %v3143 = vpack.c.bf16 %v2797, %v2797
        %v3144 = vpack.c.bf16 %v2849, %v2849
        %v3145 = vpack.c.bf16 %v2901, %v2901
        %vm3146 = vcmp.ne.f32.partialorder %v2364, 0.0
        %v3147 = vsel %vm3146, 0.0, -1e+09
        %v3149 = vsel %vm1708, %v3138, 0
        %v3152 = vsel %vm1708, %v3142, 0
        %3154 = vmatprep.subr.bf16.mxu0 0
        %3155 = vmatpush1.bf16.xpose.msra.mxu0 %v3152
        %3156 = vmatprep.subr.bf16.mxu0 0
        %3157 = vmatpush1.bf16.xpose.msra.mxu0 0
        %3158 = vmatprep.subr.bf16.mxu0 0
        %3159 = vmatpush1.bf16.xpose.msra.mxu0 0
        %3160 = vmatprep.subr.bf16.mxu0 0
        %3161 = vmatpush1.bf16.xpose.msra.mxu0 0
        %3162 = vmatprep.subr.bf16.mxu0 0
        %3163 = vmatpush1.bf16.xpose.msra.mxu0 0
        %3164 = vmatprep.subr.bf16.mxu0 0
        %3165 = vmatpush1.bf16.xpose.msra.mxu0 0
        %3166 = vmatprep.subr.bf16.mxu0 0
        %3167 = vmatpush1.bf16.xpose.msra.mxu0 0
        %3168 = vmatprep.subr.bf16.mxu0 0
        %3169 = vmatpush1.bf16.xpose.msra.mxu0 0
        %3170 = vmatprep.subr.bf16.mxu0 0
        %3171 = vmatpush1.bf16.xpose.msra.mxu0 0
        %3172 = vmatprep.subr.bf16.mxu0 0
        %3173 = vmatpush1.bf16.xpose.msra.mxu0 0
        %3174 = vmatprep.subr.bf16.mxu0 0
        %3175 = vmatpush1.bf16.xpose.msra.mxu0 0
        %3176 = vmatprep.subr.bf16.mxu0 0
        %3177 = vmatpush1.bf16.xpose.msra.mxu0 0
        %3178 = vmatprep.subr.bf16.mxu0 0
        %3179 = vmatpush1.bf16.xpose.msra.mxu0 0
        %3180 = vmatprep.subr.bf16.mxu0 0
        %3181 = vmatpush1.bf16.xpose.msra.mxu0 0
        %3182 = vmatprep.subr.bf16.mxu0 0
        %3183 = vmatpush1.bf16.xpose.msra.mxu0 0
        %3184 = vmatprep.subr.bf16.mxu0 0
        %3185 = vmatpush1.bf16.xpose.msra.mxu0 0
        %3186 = vmatprep.mubr.bf16.mxu0 0
        %3187 = vmatmul.mubr.bf16.gmra.mrb[0].mxu0 %v3149
        %v3188 = vpop.f32.mrb[0].mxu0
        %v3189 = vadd.f32 %v3147, %v3188
        %v3190 = vpop.f32.mrb[0].mxu0
        %v3191 = vpop.f32.mrb[0].mxu0
        %v3192 = vpop.f32.mrb[0].mxu0
        %3193 = vdwg.mxu0
        %v3195 = vsel %vm1708, %v3139, 0
        %v3198 = vsel %vm1708, %v3143, 0
        %3200 = vmatprep.subr.bf16.mxu0 0
        %3201 = vmatpush1.bf16.xpose.msra.mxu0 %v3198
        %3202 = vmatprep.subr.bf16.mxu0 0
        %3203 = vmatpush1.bf16.xpose.msra.mxu0 0
        %3204 = vmatprep.subr.bf16.mxu0 0
        %3205 = vmatpush1.bf16.xpose.msra.mxu0 0
        %3206 = vmatprep.subr.bf16.mxu0 0
        %3207 = vmatpush1.bf16.xpose.msra.mxu0 0
        %3208 = vmatprep.subr.bf16.mxu0 0
        %3209 = vmatpush1.bf16.xpose.msra.mxu0 0
        %3210 = vmatprep.subr.bf16.mxu0 0
        %3211 = vmatpush1.bf16.xpose.msra.mxu0 0
        %3212 = vmatprep.subr.bf16.mxu0 0
        %3213 = vmatpush1.bf16.xpose.msra.mxu0 0
        %3214 = vmatprep.subr.bf16.mxu0 0
        %3215 = vmatpush1.bf16.xpose.msra.mxu0 0
        %3216 = vmatprep.subr.bf16.mxu0 0
        %3217 = vmatpush1.bf16.xpose.msra.mxu0 0
        %3218 = vmatprep.subr.bf16.mxu0 0
        %3219 = vmatpush1.bf16.xpose.msra.mxu0 0
        %3220 = vmatprep.subr.bf16.mxu0 0
        %3221 = vmatpush1.bf16.xpose.msra.mxu0 0
        %3222 = vmatprep.subr.bf16.mxu0 0
        %3223 = vmatpush1.bf16.xpose.msra.mxu0 0
        %3224 = vmatprep.subr.bf16.mxu0 0
        %3225 = vmatpush1.bf16.xpose.msra.mxu0 0
        %3226 = vmatprep.subr.bf16.mxu0 0
        %3227 = vmatpush1.bf16.xpose.msra.mxu0 0
        %3228 = vmatprep.subr.bf16.mxu0 0
        %3229 = vmatpush1.bf16.xpose.msra.mxu0 0
        %3230 = vmatprep.subr.bf16.mxu0 0
        %3231 = vmatpush1.bf16.xpose.msra.mxu0 0
        %3232 = vmatprep.mubr.bf16.mxu0 0
        %3233 = vmatmul.mubr.bf16.gmra.mrb[0].mxu0 %v3195
        %v3234 = vpop.f32.mrb[0].mxu0
        %v3235 = vadd.f32 %v3147, %v3234
        %v3236 = vpop.f32.mrb[0].mxu0
        %v3237 = vpop.f32.mrb[0].mxu0
        %v3238 = vpop.f32.mrb[0].mxu0
        %3239 = vdwg.mxu0
        %v3241 = vsel %vm1708, %v3140, 0
        %v3244 = vsel %vm1708, %v3144, 0
        %3246 = vmatprep.subr.bf16.mxu0 0
        %3247 = vmatpush1.bf16.xpose.msra.mxu0 %v3244
        %3248 = vmatprep.subr.bf16.mxu0 0
        %3249 = vmatpush1.bf16.xpose.msra.mxu0 0
        %3250 = vmatprep.subr.bf16.mxu0 0
        %3251 = vmatpush1.bf16.xpose.msra.mxu0 0
        %3252 = vmatprep.subr.bf16.mxu0 0
        %3253 = vmatpush1.bf16.xpose.msra.mxu0 0
        %3254 = vmatprep.subr.bf16.mxu0 0
        %3255 = vmatpush1.bf16.xpose.msra.mxu0 0
        %3256 = vmatprep.subr.bf16.mxu0 0
        %3257 = vmatpush1.bf16.xpose.msra.mxu0 0
        %3258 = vmatprep.subr.bf16.mxu0 0
        %3259 = vmatpush1.bf16.xpose.msra.mxu0 0
        %3260 = vmatprep.subr.bf16.mxu0 0
        %3261 = vmatpush1.bf16.xpose.msra.mxu0 0
        %3262 = vmatprep.subr.bf16.mxu0 0
        %3263 = vmatpush1.bf16.xpose.msra.mxu0 0
        %3264 = vmatprep.subr.bf16.mxu0 0
        %3265 = vmatpush1.bf16.xpose.msra.mxu0 0
        %3266 = vmatprep.subr.bf16.mxu0 0
        %3267 = vmatpush1.bf16.xpose.msra.mxu0 0
        %3268 = vmatprep.subr.bf16.mxu0 0
        %3269 = vmatpush1.bf16.xpose.msra.mxu0 0
        %3270 = vmatprep.subr.bf16.mxu0 0
        %3271 = vmatpush1.bf16.xpose.msra.mxu0 0
        %3272 = vmatprep.subr.bf16.mxu0 0
        %3273 = vmatpush1.bf16.xpose.msra.mxu0 0
        %3274 = vmatprep.subr.bf16.mxu0 0
        %3275 = vmatpush1.bf16.xpose.msra.mxu0 0
        %3276 = vmatprep.subr.bf16.mxu0 0
        %3277 = vmatpush1.bf16.xpose.msra.mxu0 0
        %3278 = vmatprep.mubr.bf16.mxu0 0
        %3279 = vmatmul.mubr.bf16.gmra.mrb[0].mxu0 %v3241
        %v3280 = vpop.f32.mrb[0].mxu0
        %v3281 = vadd.f32 %v3147, %v3280
        %v3282 = vpop.f32.mrb[0].mxu0
        %v3283 = vpop.f32.mrb[0].mxu0
        %v3284 = vpop.f32.mrb[0].mxu0
        %3285 = vdwg.mxu0
        %v3287 = vsel %vm1708, %v3141, 0
        %v3290 = vsel %vm1708, %v3145, 0
        %3292 = vmatprep.subr.bf16.mxu0 0
        %3293 = vmatpush1.bf16.xpose.msra.mxu0 %v3290
        %3294 = vmatprep.subr.bf16.mxu0 0
        %3295 = vmatpush1.bf16.xpose.msra.mxu0 0
        %3296 = vmatprep.subr.bf16.mxu0 0
        %3297 = vmatpush1.bf16.xpose.msra.mxu0 0
        %3298 = vmatprep.subr.bf16.mxu0 0
        %3299 = vmatpush1.bf16.xpose.msra.mxu0 0
        %3300 = vmatprep.subr.bf16.mxu0 0
        %3301 = vmatpush1.bf16.xpose.msra.mxu0 0
        %3302 = vmatprep.subr.bf16.mxu0 0
        %3303 = vmatpush1.bf16.xpose.msra.mxu0 0
        %3304 = vmatprep.subr.bf16.mxu0 0
        %3305 = vmatpush1.bf16.xpose.msra.mxu0 0
        %3306 = vmatprep.subr.bf16.mxu0 0
        %3307 = vmatpush1.bf16.xpose.msra.mxu0 0
        %3308 = vmatprep.subr.bf16.mxu0 0
        %3309 = vmatpush1.bf16.xpose.msra.mxu0 0
        %3310 = vmatprep.subr.bf16.mxu0 0
        %3311 = vmatpush1.bf16.xpose.msra.mxu0 0
        %3312 = vmatprep.subr.bf16.mxu0 0
        %3313 = vmatpush1.bf16.xpose.msra.mxu0 0
        %3314 = vmatprep.subr.bf16.mxu0 0
        %3315 = vmatpush1.bf16.xpose.msra.mxu0 0
        %3316 = vmatprep.subr.bf16.mxu0 0
        %3317 = vmatpush1.bf16.xpose.msra.mxu0 0
        %3318 = vmatprep.subr.bf16.mxu0 0
        %3319 = vmatpush1.bf16.xpose.msra.mxu0 0
        %3320 = vmatprep.subr.bf16.mxu0 0
        %3321 = vmatpush1.bf16.xpose.msra.mxu0 0
        %3322 = vmatprep.subr.bf16.mxu0 0
        %3323 = vmatpush1.bf16.xpose.msra.mxu0 0
        %3324 = vmatprep.mubr.bf16.mxu0 0
        %3325 = vmatmul.mubr.bf16.gmra.mrb[0].mxu0 %v3287
        %v3326 = vpop.f32.mrb[0].mxu0
        %v3327 = vadd.f32 %v3147, %v3326
        %v3328 = vpop.f32.mrb[0].mxu0
        %v3329 = vpop.f32.mrb[0].mxu0
        %v3330 = vpop.f32.mrb[0].mxu0
        %3331 = vdwg.mxu0
        %v3332 = vsel %vm1708, %v3189, -inf
        %3333 = vmax.xlane.f32.xlu0 %v3332
        %v3334 = vpop.xlane.xlu0 %3333
        %v3335 = vsel %vm1708, %v3235, -inf
        %3336 = vmax.xlane.f32.xlu0 %v3335
        %v3337 = vpop.xlane.xlu0 %3336
        %v3338 = vsel %vm1708, %v3281, -inf
        %3339 = vmax.xlane.f32.xlu0 %v3338
        %v3340 = vpop.xlane.xlu0 %3339
        %v3341 = vsel %vm1708, %v3327, -inf
        %3342 = vmax.xlane.f32.xlu0 %v3341
        %v3343 = vpop.xlane.xlu0 %3342
        %v3344 = vsub.f32 %v3189, %v3334
        %v3345 = vsub.f32 %v3235, %v3337
        %v3346 = vsub.f32 %v3281, %v3340
        %v3347 = vsub.f32 %v3327, %v3343
        %v3348 = vmul.f32 %v3344, 1.442695
        %v3349 = vpow.pop %v3348
        %v3350 = vmul.f32 %v3345, 1.442695
        %v3351 = vpow.pop %v3350
        %v3352 = vmul.f32 %v3346, 1.442695
        %v3353 = vpow.pop %v3352
        %v3354 = vmul.f32 %v3347, 1.442695
        %v3355 = vpow.pop %v3354
        %v3356 = vsel %vm1708, %v3349, 0.0
        %3357 = vadd.xlane.f32.xlu0 %v3356
        %v3358 = vpop.xlane.xlu0 %3357
        %v3359 = vsel %vm1708, %v3351, 0.0
        %3360 = vadd.xlane.f32.xlu0 %v3359
        %v3361 = vpop.xlane.xlu0 %3360
        %v3362 = vsel %vm1708, %v3353, 0.0
        %3363 = vadd.xlane.f32.xlu0 %v3362
        %v3364 = vpop.xlane.xlu0 %3363
        %v3365 = vsel %vm1708, %v3355, 0.0
        %3366 = vadd.xlane.f32.xlu0 %v3365
        %v3367 = vpop.xlane.xlu0 %3366
        %v3368 = vrcp.pop %v3358
        %v3369 = vrcp.pop %v3361
        %v3370 = vrcp.pop %v3364
        %v3371 = vrcp.pop %v3367
        %v3372 = vmul.f32 %v3349, %v3368
        %v3373 = vmul.f32 %v3351, %v3369
        %v3374 = vmul.f32 %v3353, %v3370
        %v3375 = vmul.f32 %v3355, %v3371
        %v3376 = vpack.c.bf16 %v3372, %v3372
        %v3377 = vpack.c.bf16 %v3373, %v3373
        %v3378 = vpack.c.bf16 %v3374, %v3374
        %v3379 = vpack.c.bf16 %v3375, %v3375
        %v3380 = vpack.c.bf16 %v2977, %v2977
        %v3381 = vpack.c.bf16 %v3029, %v3029
        %v3382 = vpack.c.bf16 %v3081, %v3081
        %v3383 = vpack.c.bf16 %v3133, %v3133
        %v3385 = vsel %vm1708, %v3376, 0
        %v3388 = vsel %vm1948, %v3380, 0
        %3390 = vmatprep.subr.bf16.mxu0 0
        %3391 = vmatpush1.bf16.msra.mxu0 %v3388
        %3392 = vmatprep.subr.bf16.mxu0 0
        %3393 = vmatpush1.bf16.msra.mxu0 0
        %3394 = vmatprep.subr.bf16.mxu0 0
        %3395 = vmatpush1.bf16.msra.mxu0 0
        %3396 = vmatprep.subr.bf16.mxu0 0
        %3397 = vmatpush1.bf16.msra.mxu0 0
        %3398 = vmatprep.subr.bf16.mxu0 0
        %3399 = vmatpush1.bf16.msra.mxu0 0
        %3400 = vmatprep.subr.bf16.mxu0 0
        %3401 = vmatpush1.bf16.msra.mxu0 0
        %3402 = vmatprep.subr.bf16.mxu0 0
        %3403 = vmatpush1.bf16.msra.mxu0 0
        %3404 = vmatprep.subr.bf16.mxu0 0
        %3405 = vmatpush1.bf16.msra.mxu0 0
        %3406 = vmatprep.subr.bf16.mxu0 0
        %3407 = vmatpush1.bf16.msra.mxu0 0
        %3408 = vmatprep.subr.bf16.mxu0 0
        %3409 = vmatpush1.bf16.msra.mxu0 0
        %3410 = vmatprep.subr.bf16.mxu0 0
        %3411 = vmatpush1.bf16.msra.mxu0 0
        %3412 = vmatprep.subr.bf16.mxu0 0
        %3413 = vmatpush1.bf16.msra.mxu0 0
        %3414 = vmatprep.subr.bf16.mxu0 0
        %3415 = vmatpush1.bf16.msra.mxu0 0
        %3416 = vmatprep.subr.bf16.mxu0 0
        %3417 = vmatpush1.bf16.msra.mxu0 0
        %3418 = vmatprep.subr.bf16.mxu0 0
        %3419 = vmatpush1.bf16.msra.mxu0 0
        %3420 = vmatprep.subr.bf16.mxu0 0
        %3421 = vmatpush1.bf16.msra.mxu0 0
        %3422 = vmatprep.mubr.bf16.mxu0 0
        %3423 = vmatmul.mubr.bf16.gmra.mrb[0].mxu0 %v3385
        %v3424 = vpop.f32.mrb[0].mxu0
        %v3425 = vadd.f32 0.0, %v3424
        %v3426 = vpop.f32.mrb[0].mxu0
        %v3427 = vpop.f32.mrb[0].mxu0
        %v3428 = vpop.f32.mrb[0].mxu0
        %3429 = vdwg.mxu0
        %v3431 = vsel %vm1708, %v3377, 0
        %v3434 = vsel %vm1948, %v3381, 0
        %3436 = vmatprep.subr.bf16.mxu0 0
        %3437 = vmatpush1.bf16.msra.mxu0 %v3434
        %3438 = vmatprep.subr.bf16.mxu0 0
        %3439 = vmatpush1.bf16.msra.mxu0 0
        %3440 = vmatprep.subr.bf16.mxu0 0
        %3441 = vmatpush1.bf16.msra.mxu0 0
        %3442 = vmatprep.subr.bf16.mxu0 0
        %3443 = vmatpush1.bf16.msra.mxu0 0
        %3444 = vmatprep.subr.bf16.mxu0 0
        %3445 = vmatpush1.bf16.msra.mxu0 0
        %3446 = vmatprep.subr.bf16.mxu0 0
        %3447 = vmatpush1.bf16.msra.mxu0 0
        %3448 = vmatprep.subr.bf16.mxu0 0
        %3449 = vmatpush1.bf16.msra.mxu0 0
        %3450 = vmatprep.subr.bf16.mxu0 0
        %3451 = vmatpush1.bf16.msra.mxu0 0
        %3452 = vmatprep.subr.bf16.mxu0 0
        %3453 = vmatpush1.bf16.msra.mxu0 0
        %3454 = vmatprep.subr.bf16.mxu0 0
        %3455 = vmatpush1.bf16.msra.mxu0 0
        %3456 = vmatprep.subr.bf16.mxu0 0
        %3457 = vmatpush1.bf16.msra.mxu0 0
        %3458 = vmatprep.subr.bf16.mxu0 0
        %3459 = vmatpush1.bf16.msra.mxu0 0
        %3460 = vmatprep.subr.bf16.mxu0 0
        %3461 = vmatpush1.bf16.msra.mxu0 0
        %3462 = vmatprep.subr.bf16.mxu0 0
        %3463 = vmatpush1.bf16.msra.mxu0 0
        %3464 = vmatprep.subr.bf16.mxu0 0
        %3465 = vmatpush1.bf16.msra.mxu0 0
        %3466 = vmatprep.subr.bf16.mxu0 0
        %3467 = vmatpush1.bf16.msra.mxu0 0
        %3468 = vmatprep.mubr.bf16.mxu0 0
        %3469 = vmatmul.mubr.bf16.gmra.mrb[0].mxu0 %v3431
        %v3470 = vpop.f32.mrb[0].mxu0
        %v3471 = vadd.f32 0.0, %v3470
        %v3472 = vpop.f32.mrb[0].mxu0
        %v3473 = vpop.f32.mrb[0].mxu0
        %v3474 = vpop.f32.mrb[0].mxu0
        %3475 = vdwg.mxu0
        %v3477 = vsel %vm1708, %v3378, 0
        %v3480 = vsel %vm1948, %v3382, 0
        %3482 = vmatprep.subr.bf16.mxu0 0
        %3483 = vmatpush1.bf16.msra.mxu0 %v3480
        %3484 = vmatprep.subr.bf16.mxu0 0
        %3485 = vmatpush1.bf16.msra.mxu0 0
        %3486 = vmatprep.subr.bf16.mxu0 0
        %3487 = vmatpush1.bf16.msra.mxu0 0
        %3488 = vmatprep.subr.bf16.mxu0 0
        %3489 = vmatpush1.bf16.msra.mxu0 0
        %3490 = vmatprep.subr.bf16.mxu0 0
        %3491 = vmatpush1.bf16.msra.mxu0 0
        %3492 = vmatprep.subr.bf16.mxu0 0
        %3493 = vmatpush1.bf16.msra.mxu0 0
        %3494 = vmatprep.subr.bf16.mxu0 0
        %3495 = vmatpush1.bf16.msra.mxu0 0
        %3496 = vmatprep.subr.bf16.mxu0 0
        %3497 = vmatpush1.bf16.msra.mxu0 0
        %3498 = vmatprep.subr.bf16.mxu0 0
        %3499 = vmatpush1.bf16.msra.mxu0 0
        %3500 = vmatprep.subr.bf16.mxu0 0
        %3501 = vmatpush1.bf16.msra.mxu0 0
        %3502 = vmatprep.subr.bf16.mxu0 0
        %3503 = vmatpush1.bf16.msra.mxu0 0
        %3504 = vmatprep.subr.bf16.mxu0 0
        %3505 = vmatpush1.bf16.msra.mxu0 0
        %3506 = vmatprep.subr.bf16.mxu0 0
        %3507 = vmatpush1.bf16.msra.mxu0 0
        %3508 = vmatprep.subr.bf16.mxu0 0
        %3509 = vmatpush1.bf16.msra.mxu0 0
        %3510 = vmatprep.subr.bf16.mxu0 0
        %3511 = vmatpush1.bf16.msra.mxu0 0
        %3512 = vmatprep.subr.bf16.mxu0 0
        %3513 = vmatpush1.bf16.msra.mxu0 0
        %3514 = vmatprep.mubr.bf16.mxu0 0
        %3515 = vmatmul.mubr.bf16.gmra.mrb[0].mxu0 %v3477
        %v3516 = vpop.f32.mrb[0].mxu0
        %v3517 = vadd.f32 0.0, %v3516
        %v3518 = vpop.f32.mrb[0].mxu0
        %v3519 = vpop.f32.mrb[0].mxu0
        %v3520 = vpop.f32.mrb[0].mxu0
        %3521 = vdwg.mxu0
        %v3523 = vsel %vm1708, %v3379, 0
        %v3526 = vsel %vm1948, %v3383, 0
        %3528 = vmatprep.subr.bf16.mxu0 0
        %3529 = vmatpush1.bf16.msra.mxu0 %v3526
        %3530 = vmatprep.subr.bf16.mxu0 0
        %3531 = vmatpush1.bf16.msra.mxu0 0
        %3532 = vmatprep.subr.bf16.mxu0 0
        %3533 = vmatpush1.bf16.msra.mxu0 0
        %3534 = vmatprep.subr.bf16.mxu0 0
        %3535 = vmatpush1.bf16.msra.mxu0 0
        %3536 = vmatprep.subr.bf16.mxu0 0
        %3537 = vmatpush1.bf16.msra.mxu0 0
        %3538 = vmatprep.subr.bf16.mxu0 0
        %3539 = vmatpush1.bf16.msra.mxu0 0
        %3540 = vmatprep.subr.bf16.mxu0 0
        %3541 = vmatpush1.bf16.msra.mxu0 0
        %3542 = vmatprep.subr.bf16.mxu0 0
        %3543 = vmatpush1.bf16.msra.mxu0 0
        %3544 = vmatprep.subr.bf16.mxu0 0
        %3545 = vmatpush1.bf16.msra.mxu0 0
        %3546 = vmatprep.subr.bf16.mxu0 0
        %3547 = vmatpush1.bf16.msra.mxu0 0
        %3548 = vmatprep.subr.bf16.mxu0 0
        %3549 = vmatpush1.bf16.msra.mxu0 0
        %3550 = vmatprep.subr.bf16.mxu0 0
        %3551 = vmatpush1.bf16.msra.mxu0 0
        %3552 = vmatprep.subr.bf16.mxu0 0
        %3553 = vmatpush1.bf16.msra.mxu0 0
        %3554 = vmatprep.subr.bf16.mxu0 0
        %3555 = vmatpush1.bf16.msra.mxu0 0
        %3556 = vmatprep.subr.bf16.mxu0 0
        %3557 = vmatpush1.bf16.msra.mxu0 0
        %3558 = vmatprep.subr.bf16.mxu0 0
        %3559 = vmatpush1.bf16.msra.mxu0 0
        %3560 = vmatprep.mubr.bf16.mxu0 0
        %3561 = vmatmul.mubr.bf16.gmra.mrb[0].mxu0 %v3523
        %v3562 = vpop.f32.mrb[0].mxu0
        %v3563 = vadd.f32 0.0, %v3562
        %v3564 = vpop.f32.mrb[0].mxu0
        %v3565 = vpop.f32.mrb[0].mxu0
        %v3566 = vpop.f32.mrb[0].mxu0
        %3567 = vdwg.mxu0
        %v3568 = vpack.c.bf16 %v3425, %v3425
        %v3569 = vpack.c.bf16 %v3471, %v3471
        %v3570 = vpack.c.bf16 %v3517, %v3517
        %v3571 = vpack.c.bf16 %v3563, %v3563
        %v3573 = vsel %vm1708, %v3568, 0
        %v3576 = vsel %vm1948, %v2425, 0
        %3578 = vmatprep.subr.bf16.mxu0 0
        %3579 = vmatpush1.bf16.msra.mxu0 %v3576
        %3580 = vmatprep.subr.bf16.mxu0 0
        %3581 = vmatpush1.bf16.msra.mxu0 0
        %3582 = vmatprep.subr.bf16.mxu0 0
        %3583 = vmatpush1.bf16.msra.mxu0 0
        %3584 = vmatprep.subr.bf16.mxu0 0
        %3585 = vmatpush1.bf16.msra.mxu0 0
        %3586 = vmatprep.subr.bf16.mxu0 0
        %3587 = vmatpush1.bf16.msra.mxu0 0
        %3588 = vmatprep.subr.bf16.mxu0 0
        %3589 = vmatpush1.bf16.msra.mxu0 0
        %3590 = vmatprep.subr.bf16.mxu0 0
        %3591 = vmatpush1.bf16.msra.mxu0 0
        %3592 = vmatprep.subr.bf16.mxu0 0
        %3593 = vmatpush1.bf16.msra.mxu0 0
        %3594 = vmatprep.subr.bf16.mxu0 0
        %3595 = vmatpush1.bf16.msra.mxu0 0
        %3596 = vmatprep.subr.bf16.mxu0 0
        %3597 = vmatpush1.bf16.msra.mxu0 0
        %3598 = vmatprep.subr.bf16.mxu0 0
        %3599 = vmatpush1.bf16.msra.mxu0 0
        %3600 = vmatprep.subr.bf16.mxu0 0
        %3601 = vmatpush1.bf16.msra.mxu0 0
        %3602 = vmatprep.subr.bf16.mxu0 0
        %3603 = vmatpush1.bf16.msra.mxu0 0
        %3604 = vmatprep.subr.bf16.mxu0 0
        %3605 = vmatpush1.bf16.msra.mxu0 0
        %3606 = vmatprep.subr.bf16.mxu0 0
        %3607 = vmatpush1.bf16.msra.mxu0 0
        %3608 = vmatprep.subr.bf16.mxu0 0
        %3609 = vmatpush1.bf16.msra.mxu0 0
        %3610 = vmatprep.mubr.bf16.mxu0 0
        %3611 = vmatmul.mubr.bf16.gmra.mrb[0].mxu0 %v3573
        %v3612 = vpop.f32.mrb[0].mxu0
        %v3613 = vadd.f32 0.0, %v3612
        %v3614 = vpop.f32.mrb[0].mxu0
        %v3615 = vpop.f32.mrb[0].mxu0
        %v3616 = vpop.f32.mrb[0].mxu0
        %3617 = vdwg.mxu0
        %v3619 = vsel %vm1708, %v3569, 0
        %v3622 = vsel %vm1948, %v2426, 0
        %3624 = vmatprep.subr.bf16.mxu0 0
        %3625 = vmatpush1.bf16.msra.mxu0 %v3622
        %3626 = vmatprep.subr.bf16.mxu0 0
        %3627 = vmatpush1.bf16.msra.mxu0 0
        %3628 = vmatprep.subr.bf16.mxu0 0
        %3629 = vmatpush1.bf16.msra.mxu0 0
        %3630 = vmatprep.subr.bf16.mxu0 0
        %3631 = vmatpush1.bf16.msra.mxu0 0
        %3632 = vmatprep.subr.bf16.mxu0 0
        %3633 = vmatpush1.bf16.msra.mxu0 0
        %3634 = vmatprep.subr.bf16.mxu0 0
        %3635 = vmatpush1.bf16.msra.mxu0 0
        %3636 = vmatprep.subr.bf16.mxu0 0
        %3637 = vmatpush1.bf16.msra.mxu0 0
        %3638 = vmatprep.subr.bf16.mxu0 0
        %3639 = vmatpush1.bf16.msra.mxu0 0
        %3640 = vmatprep.subr.bf16.mxu0 0
        %3641 = vmatpush1.bf16.msra.mxu0 0
        %3642 = vmatprep.subr.bf16.mxu0 0
        %3643 = vmatpush1.bf16.msra.mxu0 0
        %3644 = vmatprep.subr.bf16.mxu0 0
        %3645 = vmatpush1.bf16.msra.mxu0 0
        %3646 = vmatprep.subr.bf16.mxu0 0
        %3647 = vmatpush1.bf16.msra.mxu0 0
        %3648 = vmatprep.subr.bf16.mxu0 0
        %3649 = vmatpush1.bf16.msra.mxu0 0
        %3650 = vmatprep.subr.bf16.mxu0 0
        %3651 = vmatpush1.bf16.msra.mxu0 0
        %3652 = vmatprep.subr.bf16.mxu0 0
        %3653 = vmatpush1.bf16.msra.mxu0 0
        %3654 = vmatprep.subr.bf16.mxu0 0
        %3655 = vmatpush1.bf16.msra.mxu0 0
        %3656 = vmatprep.mubr.bf16.mxu0 0
        %3657 = vmatmul.mubr.bf16.gmra.mrb[0].mxu0 %v3619
        %v3658 = vpop.f32.mrb[0].mxu0
        %v3659 = vadd.f32 0.0, %v3658
        %v3660 = vpop.f32.mrb[0].mxu0
        %v3661 = vpop.f32.mrb[0].mxu0
        %v3662 = vpop.f32.mrb[0].mxu0
        %3663 = vdwg.mxu0
        %v3665 = vsel %vm1708, %v3570, 0
        %v3668 = vsel %vm1948, %v2427, 0
        %3670 = vmatprep.subr.bf16.mxu0 0
        %3671 = vmatpush1.bf16.msra.mxu0 %v3668
        %3672 = vmatprep.subr.bf16.mxu0 0
        %3673 = vmatpush1.bf16.msra.mxu0 0
        %3674 = vmatprep.subr.bf16.mxu0 0
        %3675 = vmatpush1.bf16.msra.mxu0 0
        %3676 = vmatprep.subr.bf16.mxu0 0
        %3677 = vmatpush1.bf16.msra.mxu0 0
        %3678 = vmatprep.subr.bf16.mxu0 0
        %3679 = vmatpush1.bf16.msra.mxu0 0
        %3680 = vmatprep.subr.bf16.mxu0 0
        %3681 = vmatpush1.bf16.msra.mxu0 0
        %3682 = vmatprep.subr.bf16.mxu0 0
        %3683 = vmatpush1.bf16.msra.mxu0 0
        %3684 = vmatprep.subr.bf16.mxu0 0
        %3685 = vmatpush1.bf16.msra.mxu0 0
        %3686 = vmatprep.subr.bf16.mxu0 0
        %3687 = vmatpush1.bf16.msra.mxu0 0
        %3688 = vmatprep.subr.bf16.mxu0 0
        %3689 = vmatpush1.bf16.msra.mxu0 0
        %3690 = vmatprep.subr.bf16.mxu0 0
        %3691 = vmatpush1.bf16.msra.mxu0 0
        %3692 = vmatprep.subr.bf16.mxu0 0
        %3693 = vmatpush1.bf16.msra.mxu0 0
        %3694 = vmatprep.subr.bf16.mxu0 0
        %3695 = vmatpush1.bf16.msra.mxu0 0
        %3696 = vmatprep.subr.bf16.mxu0 0
        %3697 = vmatpush1.bf16.msra.mxu0 0
        %3698 = vmatprep.subr.bf16.mxu0 0
        %3699 = vmatpush1.bf16.msra.mxu0 0
        %3700 = vmatprep.subr.bf16.mxu0 0
        %3701 = vmatpush1.bf16.msra.mxu0 0
        %3702 = vmatprep.mubr.bf16.mxu0 0
        %3703 = vmatmul.mubr.bf16.gmra.mrb[0].mxu0 %v3665
        %v3704 = vpop.f32.mrb[0].mxu0
        %v3705 = vadd.f32 0.0, %v3704
        %v3706 = vpop.f32.mrb[0].mxu0
        %v3707 = vpop.f32.mrb[0].mxu0
        %v3708 = vpop.f32.mrb[0].mxu0
        %3709 = vdwg.mxu0
        %v3711 = vsel %vm1708, %v3571, 0
        %v3714 = vsel %vm1948, %v2428, 0
        %3716 = vmatprep.subr.bf16.mxu0 0
        %3717 = vmatpush1.bf16.msra.mxu0 %v3714
        %3718 = vmatprep.subr.bf16.mxu0 0
        %3719 = vmatpush1.bf16.msra.mxu0 0
        %3720 = vmatprep.subr.bf16.mxu0 0
        %3721 = vmatpush1.bf16.msra.mxu0 0
        %3722 = vmatprep.subr.bf16.mxu0 0
        %3723 = vmatpush1.bf16.msra.mxu0 0
        %3724 = vmatprep.subr.bf16.mxu0 0
        %3725 = vmatpush1.bf16.msra.mxu0 0
        %3726 = vmatprep.subr.bf16.mxu0 0
        %3727 = vmatpush1.bf16.msra.mxu0 0
        %3728 = vmatprep.subr.bf16.mxu0 0
        %3729 = vmatpush1.bf16.msra.mxu0 0
        %3730 = vmatprep.subr.bf16.mxu0 0
        %3731 = vmatpush1.bf16.msra.mxu0 0
        %3732 = vmatprep.subr.bf16.mxu0 0
        %3733 = vmatpush1.bf16.msra.mxu0 0
        %3734 = vmatprep.subr.bf16.mxu0 0
        %3735 = vmatpush1.bf16.msra.mxu0 0
        %3736 = vmatprep.subr.bf16.mxu0 0
        %3737 = vmatpush1.bf16.msra.mxu0 0
        %3738 = vmatprep.subr.bf16.mxu0 0
        %3739 = vmatpush1.bf16.msra.mxu0 0
        %3740 = vmatprep.subr.bf16.mxu0 0
        %3741 = vmatpush1.bf16.msra.mxu0 0
        %3742 = vmatprep.subr.bf16.mxu0 0
        %3743 = vmatpush1.bf16.msra.mxu0 0
        %3744 = vmatprep.subr.bf16.mxu0 0
        %3745 = vmatpush1.bf16.msra.mxu0 0
        %3746 = vmatprep.subr.bf16.mxu0 0
        %3747 = vmatpush1.bf16.msra.mxu0 0
        %3748 = vmatprep.mubr.bf16.mxu0 0
        %3749 = vmatmul.mubr.bf16.gmra.mrb[0].mxu0 %v3711
        %v3750 = vpop.f32.mrb[0].mxu0
        %v3751 = vadd.f32 0.0, %v3750
        %v3752 = vpop.f32.mrb[0].mxu0
        %v3753 = vpop.f32.mrb[0].mxu0
        %v3754 = vpop.f32.mrb[0].mxu0
        %3755 = vdwg.mxu0
        %v3756 = vsel %vm899, %v3613, 0.0
        %v3757 = vsel %vm899, %v3659, 0.0
        %v3758 = vadd.f32 %v3756, %v3757
        %v3759 = vsel %vm899, %v3705, 0.0
        %v3760 = vadd.f32 %v3758, %v3759
        %v3761 = vsel %vm899, %v3751, 0.0
        %v3762 = vadd.f32 %v3760, %v3761
        %v3764 = vlaneseq
        %v3765 = vshrl.u32 %v3764, 7
        %v3766 = vsub.s32 0, %v3765
        %v3767 = vrot.slane %v2429, %v3766
        %v3769 = vadd.f32 %v3762, %v3767
        %v3770 = vadd.f32 %v2332, %v3769
        %s3771 = scalar_lea.vmem [#allocation28], 2
        %v3772 = vld [vmem:[%s3771] sm:$0x1]
        %s3773 = scalar_lea.vmem [#allocation29], 2
        %v3774 = vld [vmem:[%s3773] sm:$0x1]
        %v3775 = vsel %vm899, %v3770, 0.0
        %3776 = vadd.xlane.f32.xlu0 %v3775
        %v3777 = vpop.xlane.xlu0 %3776
        %v3778 = vmul.f32 %v3777, %v903
        %v3779 = vsub.f32 %v3770, %v3778
        %v3780 = vmul.f32 %v3779, %v3779
        %v3781 = vsel %vm899, %v3780, 0.0
        %3782 = vadd.xlane.f32.xlu0 %v3781
        %v3783 = vpop.xlane.xlu0 %3782
        %v3784 = vmul.f32 %v3783, %v903
        %v3785 = vadd.f32 %v3784, 1e-05
        %v3786 = vrsqrt.pop %v3785
        %v3787 = vmul.f32 %v3779, %v3786
        %v3789 = vlaneseq
        %v3790 = vshrl.u32 %v3789, 7
        %v3791 = vsub.s32 0, %v3790
        %v3792 = vrot.slane %v3772, %v3791
        %v3794 = vmul.f32 %v3787, %v3792
        %v3796 = vlaneseq
        %v3797 = vshrl.u32 %v3796, 7
        %v3798 = vsub.s32 0, %v3797
        %v3799 = vrot.slane %v3774, %v3798
        %v3801 = vadd.f32 %v3794, %v3799
        %v3802 = vpack.c.bf16 %v3801, %v3801
        %v3803 = vld [vmem:[#allocation22] sm:$0xf]
        %v3804 = vld [vmem:[#allocation22 + $0x4] sm:$0xf]
        %v3805 = vld [vmem:[#allocation22 + $0x8] sm:$0xf]
        %v3806 = vld [vmem:[#allocation22 + $0xc] sm:$0xf]
        %v3807 = vld [vmem:[#allocation23] sm:$0x1]
        %v3809 = vlaneseq
        %v3810 = vshrl.u32 %v3809, 7
        %v3811 = vsub.s32 0, %v3810
        %v3812 = vrot.slane %v3807, %v3811
        %v3818 = vunpack.c.l.b16 %v3803
        %v3819 = vunpack.c.l.b16 %v3804
        %v3820 = vunpack.c.l.b16 %v3805
        %v3821 = vunpack.c.l.b16 %v3806
        %v3822 = vpack.c.b16 %v3819, %v3818
        %v3823 = vpack.c.b16 %v3821, %v3820
        %v3827 = vsel %vm899, %v3802, 0
        %3829 = vmatprep.subr.bf16.mxu0 0
        %3830 = vmatpush1.bf16.msra.mxu0 %v3822
        %3831 = vmatprep.subr.bf16.mxu0 0
        %3832 = vmatpush1.bf16.msra.mxu0 %v3823
        %3833 = vmatprep.subr.bf16.mxu0 0
        %3834 = vmatpush1.bf16.msra.mxu0 0
        %3835 = vmatprep.subr.bf16.mxu0 0
        %3836 = vmatpush1.bf16.msra.mxu0 0
        %3837 = vmatprep.subr.bf16.mxu0 0
        %3838 = vmatpush1.bf16.msra.mxu0 0
        %3839 = vmatprep.subr.bf16.mxu0 0
        %3840 = vmatpush1.bf16.msra.mxu0 0
        %3841 = vmatprep.subr.bf16.mxu0 0
        %3842 = vmatpush1.bf16.msra.mxu0 0
        %3843 = vmatprep.subr.bf16.mxu0 0
        %3844 = vmatpush1.bf16.msra.mxu0 0
        %3845 = vmatprep.subr.bf16.mxu0 0
        %3846 = vmatpush1.bf16.msra.mxu0 0
        %3847 = vmatprep.subr.bf16.mxu0 0
        %3848 = vmatpush1.bf16.msra.mxu0 0
        %3849 = vmatprep.subr.bf16.mxu0 0
        %3850 = vmatpush1.bf16.msra.mxu0 0
        %3851 = vmatprep.subr.bf16.mxu0 0
        %3852 = vmatpush1.bf16.msra.mxu0 0
        %3853 = vmatprep.subr.bf16.mxu0 0
        %3854 = vmatpush1.bf16.msra.mxu0 0
        %3855 = vmatprep.subr.bf16.mxu0 0
        %3856 = vmatpush1.bf16.msra.mxu0 0
        %3857 = vmatprep.subr.bf16.mxu0 0
        %3858 = vmatpush1.bf16.msra.mxu0 0
        %3859 = vmatprep.subr.bf16.mxu0 0
        %3860 = vmatpush1.bf16.msra.mxu0 0
        %3861 = vmatprep.mubr.bf16.mxu0 0
        %3862 = vmatmul.mubr.bf16.gmra.mrb[0].mxu0 %v3827
        %v3863 = vpop.f32.mrb[0].mxu0
        %v3864 = vadd.f32 %v3812, %v3863
        %v3865 = vpop.f32.mrb[0].mxu0
        %v3866 = vpop.f32.mrb[0].mxu0
        %v3867 = vpop.f32.mrb[0].mxu0
        %3868 = vdwg.mxu0
        %v3869 = vmax.f32 %v3864, 0.0
        %v3870 = vpack.c.bf16 %v3869, %v3869
        %v3871 = vld [vmem:[#allocation25] sm:$0xf]
        %v3872 = vld [vmem:[#allocation25 + $0x4] sm:$0xf]
        %v3873 = vld [vmem:[#allocation25 + $0x8] sm:$0xf]
        %v3874 = vld [vmem:[#allocation25 + $0xc] sm:$0xf]
        %v3875 = vld [vmem:[#allocation25 + $0x10] sm:$0xf]
        %v3876 = vld [vmem:[#allocation25 + $0x14] sm:$0xf]
        %v3877 = vld [vmem:[#allocation25 + $0x18] sm:$0xf]
        %v3878 = vld [vmem:[#allocation25 + $0x1c] sm:$0xf]
        %v3879 = vld [vmem:[#allocation26] sm:$0x1]
        %v3881 = vlaneseq
        %v3882 = vshrl.u32 %v3881, 7
        %v3883 = vsub.s32 0, %v3882
        %v3884 = vrot.slane %v3879, %v3883
        %v3894 = vunpack.c.l.b16 %v3871
        %v3895 = vunpack.c.l.b16 %v3872
        %v3896 = vunpack.c.l.b16 %v3873
        %v3897 = vunpack.c.l.b16 %v3874
        %v3898 = vunpack.c.l.b16 %v3875
        %v3899 = vunpack.c.l.b16 %v3876
        %v3900 = vunpack.c.l.b16 %v3877
        %v3901 = vunpack.c.l.b16 %v3878
        %v3902 = vpack.c.b16 %v3895, %v3894
        %v3903 = vpack.c.b16 %v3897, %v3896
        %v3904 = vpack.c.b16 %v3899, %v3898
        %v3905 = vpack.c.b16 %v3901, %v3900
        %vm3910 = vcmask 523264
        %v3912 = vsel %vm3910, %v3870, 0
        %3914 = vmatprep.subr.bf16.mxu0 0
        %3915 = vmatpush1.bf16.msra.mxu0 %v3902
        %3916 = vmatprep.subr.bf16.mxu0 0
        %3917 = vmatpush1.bf16.msra.mxu0 %v3903
        %3918 = vmatprep.subr.bf16.mxu0 0
        %3919 = vmatpush1.bf16.msra.mxu0 %v3904
        %3920 = vmatprep.subr.bf16.mxu0 0
        %3921 = vmatpush1.bf16.msra.mxu0 %v3905
        %3922 = vmatprep.subr.bf16.mxu0 0
        %3923 = vmatpush1.bf16.msra.mxu0 0
        %3924 = vmatprep.subr.bf16.mxu0 0
        %3925 = vmatpush1.bf16.msra.mxu0 0
        %3926 = vmatprep.subr.bf16.mxu0 0
        %3927 = vmatpush1.bf16.msra.mxu0 0
        %3928 = vmatprep.subr.bf16.mxu0 0
        %3929 = vmatpush1.bf16.msra.mxu0 0
        %3930 = vmatprep.subr.bf16.mxu0 0
        %3931 = vmatpush1.bf16.msra.mxu0 0
        %3932 = vmatprep.subr.bf16.mxu0 0
        %3933 = vmatpush1.bf16.msra.mxu0 0
        %3934 = vmatprep.subr.bf16.mxu0 0
        %3935 = vmatpush1.bf16.msra.mxu0 0
        %3936 = vmatprep.subr.bf16.mxu0 0
        %3937 = vmatpush1.bf16.msra.mxu0 0
        %3938 = vmatprep.subr.bf16.mxu0 0
        %3939 = vmatpush1.bf16.msra.mxu0 0
        %3940 = vmatprep.subr.bf16.mxu0 0
        %3941 = vmatpush1.bf16.msra.mxu0 0
        %3942 = vmatprep.subr.bf16.mxu0 0
        %3943 = vmatpush1.bf16.msra.mxu0 0
        %3944 = vmatprep.subr.bf16.mxu0 0
        %3945 = vmatpush1.bf16.msra.mxu0 0
        %3946 = vmatprep.mubr.bf16.mxu0 0
        %3947 = vmatmul.mubr.bf16.gmra.mrb[0].mxu0 %v3912
        %v3948 = vpop.f32.mrb[0].mxu0
        %v3949 = vadd.f32 %v3884, %v3948
        %v3950 = vpop.f32.mrb[0].mxu0
        %v3951 = vpop.f32.mrb[0].mxu0
        %v3952 = vpop.f32.mrb[0].mxu0
        %3953 = vdwg.mxu0
        %v3954 = vadd.f32 %v3770, %v3949
        %3955 = vst.msk [vmem:[%s893] sm:$0xff] %vm899, %v3954
        %s3956 = sand.u32 %s454, 1
        %s3957 = scalar_lea.sflag [#allocation4], %s3956
        %s3958 = sand.u32 %s454, 1
        %s3959 = smul.addr %s3958, 8
        %s3960 = scalar_lea.vmem [#allocation31], %s3959
        // Predicated region
        $region165: #{tpu_custom_call.1} parent=91 // pred_check
          %p3961 = pneg %p464
        $region166: #{tpu_custom_call.1} parent=91 // pred_check_branch
          %3963 = sbr.rel (%p3961) target = $region168
        $region167: #{tpu_custom_call.1} parent=91 // pred_region
          %s3965 = ssub.s32 128, 128
          %3966 = vsyncadd %s3957, %s3965
          %s3967 = smul.addr %s48, 128
          %s3968 = scalar_lea.hbm %s18, %s3967
          %s3970 = sshll.u32 %s3960, 4
          %s3971 = int_to_ptr.vmem [resolvable:$true] %s3970
          %3973 = dma.vmem_to_hbm [thread:$0]  %s3971, 128, %s3968, %s3957
        $region168: #{tpu_custom_call.1} parent=91 // pred_fallthru
          _
      $region92: #{tpu_custom_call.1} parent=5 // pred_fallthru
        _
      %p3974 = scmp.le.s32.totalorder 2, %s43
      // Predicated region
      $region169: #{tpu_custom_call.1} parent=5 // pred_check
        %p3975 = pneg %p3974
      $region170: #{tpu_custom_call.1} parent=5 // pred_check_branch
        %3977 = sbr.rel (%p3975) target = $region172
      $region171: #{tpu_custom_call.1} parent=5 // pred_region
        %s3978 = ssub.s32 %s43, 2
        // Predicated region
        $region173: #{tpu_custom_call.1} parent=171 // pred_check
          %p3979 = pneg %p470
        $region174: #{tpu_custom_call.1} parent=171 // pred_check_branch
          %3981 = sbr.rel (%p3979) target = $region176
        $region175: #{tpu_custom_call.1} parent=171 // pred_region
          %s3982 = sand.u32 %s455, 1
          %s3983 = scalar_lea.sflag [#allocation4], %s3982
          %s3984 = sand.u32 %s455, 1
          %s3985 = smul.addr %s3984, 8
          %s3986 = scalar_lea.vmem [#allocation31], %s3985
          %3987 = dma.done %s3983, 128
        $region176: #{tpu_custom_call.1} parent=171 // pred_fallthru
          _
      $region172: #{tpu_custom_call.1} parent=5 // pred_fallthru
        _
    $region6: #{tpu_custom_call.1} parent=1 // loop_footer
      %s47 = sadd.s32 1, %s43
    $region7: #{tpu_custom_call.1} parent=1 // loop_footer_branch
      %42 = sbr.rel target = $region3
    $region8: #{tpu_custom_call.1} parent=1 // loop_exit
      _
    %3988 = vsyncpa [#allocation3], 1
    %s3989 = scalar_lea.sflag [#allocation3], 1
    %3990 = vsyncpa %s3989, 1
    %3991 = vsyncpa [#allocation6], 1
    %s3992 = scalar_lea.sflag [#allocation6], 1
    %3993 = vsyncpa %s3992, 1
    %3994 = vsyncpa [#allocation9], 1
    %s3995 = scalar_lea.sflag [#allocation9], 1
    %3996 = vsyncpa %s3995, 1
    %3997 = vsyncpa [#allocation12], 1
    %3998 = vsyncpa [#allocation15], 1
    %3999 = vsyncpa [#allocation18], 1
    %4000 = vsyncpa [#allocation21], 1
    %4001 = vsyncpa [#allocation24], 1
    %4002 = vsyncpa [#allocation27], 1
    %4003 = vsyncpa [#allocation30], 1
    %4004 = vsyncpa [#allocation4], 1
    %s4005 = scalar_lea.sflag [#allocation4], 1
    %4006 = vsyncpa %s4005, 1

</llo_original>
